<compile_context>
chip_gen: v6e
topology: v6e:2x2x1
jax: 0.10.0
libtpu: 0.0.40
codegen_flags: <defaults>
</compile_context>

<pallas_src>
import numpy as np
import jax
import jax.numpy as jnp
from jax.experimental import pallas as pl
from jax.experimental.pallas import tpu as pltpu


def conv_out_len(seq_len, ker_size, stride, padding, dilation, stack):
    for _ in range(stack):
        seq_len = int((seq_len + 2 * padding - dilation * (ker_size - 1) - 1) / stride + 1)
    return seq_len


# ------------------------- selection-matrix helpers --------------------------
# Conv1d(stride S, padding P): output row m at tap k reads input row m*S + k - P.
def _conv_selection(L_in, K, S, P):
    L_out = (L_in + 2 * P - K) // S + 1
    pad = np.zeros((L_in + 2 * P, L_in), np.float32)
    pad[np.arange(L_in) + P, np.arange(L_in)] = 1.0
    sel = np.stack([pad[k: k + (L_out - 1) * S + 1: S, :] for k in range(K)], axis=0)
    return jnp.asarray(sel), L_out                      # (K, L_out, L_in)


# ConvTranspose1d == zero-dilate by S, pad (K-1-P, K-1-P+out_pad), stride-1 conv
# with the flipped kernel.  The dilation + padding is a 0/1 scatter matrix.
def _tconv_selection(L_in, K, S, P, out_pad):
    L_dil = (L_in - 1) * S + 1
    pad_l = K - 1 - P
    pad_r = K - 1 - P + out_pad
    L_tot = L_dil + pad_l + pad_r
    L_out = L_tot - K + 1
    scat = np.zeros((L_tot, L_in), np.float32)
    scat[pad_l + np.arange(L_in) * S, np.arange(L_in)] = 1.0
    sel = np.stack([scat[k: k + L_out, :] for k in range(K)], axis=0)
    return jnp.asarray(sel), L_out                      # (K, L_out, L_in)


# ------------------------------ model params ---------------------------------
def init_params(key, input_size, num_filters, embedding_dim, seq_len,
                kernel_size, stride, padding):
    keys = jax.random.split(key, 32)
    ki = iter(keys)

    def rnd(shape, scale=0.1):
        return scale * jax.random.normal(next(ki), shape, dtype=jnp.float32)

    params = {}
    enc_convs = []
    in_ch = input_size
    for out_ch in num_filters:
        enc_convs.append((rnd((out_ch, in_ch, kernel_size)), rnd((out_ch,))))
        in_ch = out_ch
    params["enc_convs"] = enc_convs
    params["enc_1x1_w"] = rnd((embedding_dim, num_filters[-1], 1))
    params["enc_1x1_b"] = rnd((embedding_dim,))
    # MultiheadAttention (only V / out projections matter for seq_len == 1)
    params["attn_wv"] = rnd((embedding_dim, embedding_dim))
    params["attn_bv"] = rnd((embedding_dim,))
    params["attn_wo"] = rnd((embedding_dim, embedding_dim))
    params["attn_bo"] = rnd((embedding_dim,))
    params["ln_gamma"] = jnp.ones((embedding_dim,), jnp.float32)
    params["ln_beta"] = jnp.zeros((embedding_dim,), jnp.float32)

    # decoder bookkeeping (mirrors ConvDecoder.__init__)
    num_blocks = len(num_filters)
    s = seq_len
    out_pad = []
    for _ in range(num_blocks):
        out_pad.append(s % 2)
        s = conv_out_len(s, kernel_size, stride, padding, 1, 1)
    comp_len = s
    if stride > 1:
        if kernel_size % 2 == 1:
            out_pad = [1 - p for p in out_pad[::-1]]
        else:
            out_pad = out_pad[::-1]
    else:
        out_pad = [0] * num_blocks
    params["compressed_len"] = comp_len
    params["output_padding"] = out_pad

    params["up_w"] = rnd((comp_len, 1))       # nn.Linear(1, compressed_len)
    params["up_b"] = rnd((comp_len,))
    dec_channels = num_filters[::-1]
    dec_convts = []
    in_ch = embedding_dim
    for out_ch in dec_channels:
        dec_convts.append((rnd((in_ch, out_ch, kernel_size)), rnd((out_ch,))))
        in_ch = out_ch
    params["dec_convts"] = dec_convts
    params["dec_1x1_w"] = rnd((input_size, dec_channels[-1], 1))
    params["dec_1x1_b"] = rnd((input_size,))
    return params


# ------------------ one-time kernel-ready parameter prep ---------------------
def prepare_params(params, *, seq_len, kernel_size, stride, padding):
    K, S, P = kernel_size, stride, padding
    assert K - 1 - P >= 0, "padding > kernel_size - 1 not supported"
    # TODO(synk): normalization='batch' (BatchNorm1d) is not implemented (default is 'none').
    f32 = jnp.float32
    prep = {}

    enc_sel, enc_w, enc_b = [], [], []
    L = seq_len
    for (w, b) in params["enc_convs"]:                     # w: (Cout, Cin, K)
        sel, L = _conv_selection(L, K, S, P)
        enc_sel.append(sel)
        enc_w.append(jnp.transpose(w.astype(f32), (2, 1, 0)))       # (K, Cin, Cout)
        enc_b.append(b.astype(f32).reshape(1, -1))
    prep["enc_sel"], prep["enc_w"], prep["enc_b"] = enc_sel, enc_w, enc_b

    prep["e1x1_w"] = params["enc_1x1_w"][:, :, 0].T.astype(f32)     # (C_last, E)
    prep["e1x1_b"] = params["enc_1x1_b"].astype(f32).reshape(1, -1)

    # length-1 attention collapses to out_proj(v_proj(x)) -> one fused affine map
    wv, bv = params["attn_wv"].astype(f32), params["attn_bv"].astype(f32)
    wo, bo = params["attn_wo"].astype(f32), params["attn_bo"].astype(f32)
    prep["attn_w"] = wv.T @ wo.T                                     # (E, E)
    prep["attn_b"] = (bv @ wo.T + bo).reshape(1, -1)
    prep["ln_g"] = params["ln_gamma"].astype(f32).reshape(1, -1)
    prep["ln_b"] = params["ln_beta"].astype(f32).reshape(1, -1)

    prep["up_w"] = params["up_w"].astype(f32).reshape(-1, 1)         # (comp_len, 1)
    prep["up_b"] = params["up_b"].astype(f32).reshape(-1, 1)

    dec_sel, dec_w, dec_b = [], [], []
    L = params["compressed_len"]
    for (w, b), op in zip(params["dec_convts"], params["output_padding"]):
        sel, L = _tconv_selection(L, K, S, P, op)                    # w: (Cin, Cout, K)
        dec_sel.append(sel)
        dec_w.append(jnp.transpose(jnp.flip(w.astype(f32), axis=2), (2, 0, 1)))  # (K, Cin, Cout)
        dec_b.append(b.astype(f32).reshape(1, -1))
    prep["dec_sel"], prep["dec_w"], prep["dec_b"] = dec_sel, dec_w, dec_b

    prep["d1x1_w"] = params["dec_1x1_w"][:, :, 0].T.astype(f32)      # (C_last, out_dim)
    prep["d1x1_b"] = params["dec_1x1_b"].astype(f32).reshape(1, -1)
    return prep


# ------------------------------ fused forward ---------------------------------
def fused_forward(prep, x):
    B, Lx, Cin = x.shape
    x = x.astype(jnp.float32)

    enc_sel, enc_w, enc_b = prep["enc_sel"], prep["enc_w"], prep["enc_b"]
    dec_sel, dec_w, dec_b = prep["dec_sel"], prep["dec_w"], prep["dec_b"]
    n_enc, n_dec = len(enc_w), len(dec_w)

    flat = [x]
    for s, w, b in zip(enc_sel, enc_w, enc_b):
        flat += [s, w, b]
    flat += [prep["e1x1_w"], prep["e1x1_b"], prep["attn_w"], prep["attn_b"],
             prep["ln_g"], prep["ln_b"], prep["up_w"], prep["up_b"]]
    for s, w, b in zip(dec_sel, dec_w, dec_b):
        flat += [s, w, b]
    flat += [prep["d1x1_w"], prep["d1x1_b"]]

    out_dim = prep["d1x1_w"].shape[1]
    L_final = dec_sel[-1].shape[1]
    n_in = len(flat)

    def kernel(*refs):
        in_refs, out_ref = refs[:n_in], refs[n_in]
        it = iter(in_refs)
        x_ref = next(it)
        enc = [(next(it), next(it), next(it)) for _ in range(n_enc)]
        e1w, e1b, aw, ab, lng, lnb, upw, upb = [next(it) for _ in range(8)]
        dec = [(next(it), next(it), next(it)) for _ in range(n_dec)]
        d1w, d1b = next(it), next(it)
        f32 = jnp.float32

        # ---- encoder Conv1d + ReLU stack (stride/padding folded into sel) ----
        h = x_ref[0]                                       # (L, Cin), rows = time
        for s_ref, w_ref, b_ref in enc:
            acc = b_ref[...]                               # (1, Cout)
            for k in range(s_ref.shape[0]):
                xk = jnp.dot(s_ref[k], h, preferred_element_type=f32)       # (Lout, Cin)
                acc = acc + jnp.dot(xk, w_ref[k], preferred_element_type=f32)
            h = jnp.maximum(acc, 0.0)

        # ---- global max-pool over time + encoder 1x1 conv ----
        pooled = jnp.max(h, axis=0, keepdims=True)                          # (1, C_last)
        emb = jnp.dot(pooled, e1w[...], preferred_element_type=f32) + e1b[...]

        # ---- MHA on a length-1 sequence (softmax == 1 -> single fused affine),
        #      residual + LayerNorm ----
        y = jnp.dot(emb, aw[...], preferred_element_type=f32) + ab[...] + emb
        mean = jnp.mean(y, axis=-1, keepdims=True)
        var = jnp.mean(jnp.square(y - mean), axis=-1, keepdims=True)
        emb = (y - mean) * jax.lax.rsqrt(var + 1e-5) * lng[...] + lnb[...]  # (1, E)

        # ---- decoder upsample: nn.Linear(1, comp_len) == outer product (VPU) ----
        h = emb * upw[...] + upb[...]                                        # (comp_len, E)

        # ---- decoder ConvTranspose1d + ReLU stack (dilation/pad folded into sel) ----
        for s_ref, w_ref, b_ref in dec:
            acc = b_ref[...]
            for k in range(s_ref.shape[0]):
                xk = jnp.dot(s_ref[k], h, preferred_element_type=f32)
                acc = acc + jnp.dot(xk, w_ref[k], preferred_element_type=f32)
            h = jnp.maximum(acc, 0.0)

        # ---- decoder 1x1 conv; rows already time-major == final transpose(2,1) ----
        out_ref[0] = jnp.dot(h, d1w[...], preferred_element_type=f32) + d1b[...]

    def spec_full(a):
        nd = a.ndim
        return pl.BlockSpec(a.shape, lambda b, _nd=nd: (0,) * _nd)

    in_specs = [pl.BlockSpec((1, Lx, Cin), lambda b: (b, 0, 0))]
    in_specs += [spec_full(a) for a in flat[1:]]

    return pl.pallas_call(
        kernel,
        out_shape=jax.ShapeDtypeStruct((B, L_final, out_dim), jnp.float32),
        grid=(B,),
        in_specs=in_specs,
        out_specs=pl.BlockSpec((1, L_final, out_dim), lambda b: (b, 0, 0)),
        compiler_params=pltpu.CompilerParams(dimension_semantics=("parallel",)),
    )(*flat)


if __name__ == "__main__":
    INPUT_SIZE = 4
    NUM_FILTERS = [8, 16]
    EMBEDDING_DIM = 32
    SEQ_LEN = 16
    KERNEL_SIZE = 3
    STRIDE = 2
    PADDING = 0
    BATCH = 2

    key = jax.random.PRNGKey(0)
    pkey, xkey = jax.random.split(key)
    params = init_params(pkey, INPUT_SIZE, NUM_FILTERS, EMBEDDING_DIM, SEQ_LEN,
                         KERNEL_SIZE, STRIDE, PADDING)
    prep = prepare_params(params, seq_len=SEQ_LEN, kernel_size=KERNEL_SIZE,
                          stride=STRIDE, padding=PADDING)
    x = jax.random.normal(xkey, (BATCH, SEQ_LEN, INPUT_SIZE), dtype=jnp.float32)

    forward = jax.jit(fused_forward)
    out = jax.block_until_ready(forward(prep, x))
    assert out.shape == (BATCH, SEQ_LEN, INPUT_SIZE), out.shape
    assert bool(jnp.all(jnp.isfinite(out)))
    print("KERNEL_OK")
</pallas_src>

<mosaic_0001>
module attributes {stable_mosaic.version = 11 : i64} {
  func.func @kernel(%arg0: i32, %arg1: memref<1x16x4xf32, #tpu.memory_space<vmem>>, %arg2: memref<3x7x16xf32, #tpu.memory_space<vmem>>, %arg3: memref<3x4x8xf32, #tpu.memory_space<vmem>>, %arg4: memref<1x8xf32, #tpu.memory_space<vmem>>, %arg5: memref<3x3x7xf32, #tpu.memory_space<vmem>>, %arg6: memref<3x8x16xf32, #tpu.memory_space<vmem>>, %arg7: memref<1x16xf32, #tpu.memory_space<vmem>>, %arg8: memref<16x32xf32, #tpu.memory_space<vmem>>, %arg9: memref<1x32xf32, #tpu.memory_space<vmem>>, %arg10: memref<32x32xf32, #tpu.memory_space<vmem>>, %arg11: memref<1x32xf32, #tpu.memory_space<vmem>>, %arg12: memref<1x32xf32, #tpu.memory_space<vmem>>, %arg13: memref<1x32xf32, #tpu.memory_space<vmem>>, %arg14: memref<3x1xf32, #tpu.memory_space<vmem>>, %arg15: memref<3x1xf32, #tpu.memory_space<vmem>>, %arg16: memref<3x7x3xf32, #tpu.memory_space<vmem>>, %arg17: memref<3x32x16xf32, #tpu.memory_space<vmem>>, %arg18: memref<1x16xf32, #tpu.memory_space<vmem>>, %arg19: memref<3x16x7xf32, #tpu.memory_space<vmem>>, %arg20: memref<3x16x8xf32, #tpu.memory_space<vmem>>, %arg21: memref<1x8xf32, #tpu.memory_space<vmem>>, %arg22: memref<8x4xf32, #tpu.memory_space<vmem>>, %arg23: memref<1x4xf32, #tpu.memory_space<vmem>>, %arg24: memref<1x16x4xf32, #tpu.memory_space<vmem>>) attributes {dimension_semantics = [#tpu.dimension_semantics<parallel>], iteration_bounds = array<i64: 2>, scalar_prefetch = 0 : i64, scratch_operands = 0 : i64, tpu.core_type = #tpu.core_type<tc>, window_params = [{transform_indices = @transform_0, window_bounds = array<i64: 1, 16, 4>}, {pipeline_mode = #tpu.pipeline_mode<synchronous>, transform_indices = @transform_1, window_bounds = array<i64: 3, 7, 16>}, {pipeline_mode = #tpu.pipeline_mode<synchronous>, transform_indices = @transform_2, window_bounds = array<i64: 3, 4, 8>}, {pipeline_mode = #tpu.pipeline_mode<synchronous>, transform_indices = @transform_3, window_bounds = array<i64: 1, 8>}, {pipeline_mode = #tpu.pipeline_mode<synchronous>, transform_indices = @transform_4, window_bounds = array<i64: 3, 3, 7>}, {pipeline_mode = #tpu.pipeline_mode<synchronous>, transform_indices = @transform_5, window_bounds = array<i64: 3, 8, 16>}, {pipeline_mode = #tpu.pipeline_mode<synchronous>, transform_indices = @transform_6, window_bounds = array<i64: 1, 16>}, {pipeline_mode = #tpu.pipeline_mode<synchronous>, transform_indices = @transform_7, window_bounds = array<i64: 16, 32>}, {pipeline_mode = #tpu.pipeline_mode<synchronous>, transform_indices = @transform_8, window_bounds = array<i64: 1, 32>}, {pipeline_mode = #tpu.pipeline_mode<synchronous>, transform_indices = @transform_9, window_bounds = array<i64: 32, 32>}, {pipeline_mode = #tpu.pipeline_mode<synchronous>, transform_indices = @transform_10, window_bounds = array<i64: 1, 32>}, {pipeline_mode = #tpu.pipeline_mode<synchronous>, transform_indices = @transform_11, window_bounds = array<i64: 1, 32>}, {pipeline_mode = #tpu.pipeline_mode<synchronous>, transform_indices = @transform_12, window_bounds = array<i64: 1, 32>}, {pipeline_mode = #tpu.pipeline_mode<synchronous>, transform_indices = @transform_13, window_bounds = array<i64: 3, 1>}, {pipeline_mode = #tpu.pipeline_mode<synchronous>, transform_indices = @transform_14, window_bounds = array<i64: 3, 1>}, {pipeline_mode = #tpu.pipeline_mode<synchronous>, transform_indices = @transform_15, window_bounds = array<i64: 3, 7, 3>}, {pipeline_mode = #tpu.pipeline_mode<synchronous>, transform_indices = @transform_16, window_bounds = array<i64: 3, 32, 16>}, {pipeline_mode = #tpu.pipeline_mode<synchronous>, transform_indices = @transform_17, window_bounds = array<i64: 1, 16>}, {pipeline_mode = #tpu.pipeline_mode<synchronous>, transform_indices = @transform_18, window_bounds = array<i64: 3, 16, 7>}, {pipeline_mode = #tpu.pipeline_mode<synchronous>, transform_indices = @transform_19, window_bounds = array<i64: 3, 16, 8>}, {pipeline_mode = #tpu.pipeline_mode<synchronous>, transform_indices = @transform_20, window_bounds = array<i64: 1, 8>}, {pipeline_mode = #tpu.pipeline_mode<synchronous>, transform_indices = @transform_21, window_bounds = array<i64: 8, 4>}, {pipeline_mode = #tpu.pipeline_mode<synchronous>, transform_indices = @transform_22, window_bounds = array<i64: 1, 4>}, {transform_indices = @transform_23, window_bounds = array<i64: 1, 16, 4>}]} {
    %c0 = arith.constant 0 : index
    %c0_0 = arith.constant 0 : index
    %c0_1 = arith.constant 0 : index
    %0 = vector.load %arg1[%c0, %c0_0, %c0_1] : memref<1x16x4xf32, #tpu.memory_space<vmem>>, vector<1x16x4xf32>
    %1 = vector.shape_cast %0 : vector<1x16x4xf32> to vector<16x4xf32>
    %c0_2 = arith.constant 0 : index
    %c0_3 = arith.constant 0 : index
    %2 = vector.load %arg4[%c0_2, %c0_3] : memref<1x8xf32, #tpu.memory_space<vmem>>, vector<1x8xf32>
    %c0_4 = arith.constant 0 : index
    %c0_5 = arith.constant 0 : index
    %c0_6 = arith.constant 0 : index
    %3 = vector.load %arg2[%c0_4, %c0_5, %c0_6] : memref<3x7x16xf32, #tpu.memory_space<vmem>>, vector<1x7x16xf32>
    %4 = vector.shape_cast %3 : vector<1x7x16xf32> to vector<7x16xf32>
    %cst = arith.constant dense<0.000000e+00> : vector<7x4xf32>
    %5 = tpu.matmul %4, %1, %cst {dimension_numbers = #tpu.dot_dimension_numbers<[1], [0], [0], [1], [0, 0, 1, 1], [], []>} : vector<7x16xf32>, vector<16x4xf32>, vector<7x4xf32> -> vector<7x4xf32>
    %c0_7 = arith.constant 0 : index
    %c0_8 = arith.constant 0 : index
    %c0_9 = arith.constant 0 : index
    %6 = vector.load %arg3[%c0_7, %c0_8, %c0_9] : memref<3x4x8xf32, #tpu.memory_space<vmem>>, vector<1x4x8xf32>
    %7 = vector.shape_cast %6 : vector<1x4x8xf32> to vector<4x8xf32>
    %cst_10 = arith.constant dense<0.000000e+00> : vector<7x8xf32>
    %8 = tpu.matmul %5, %7, %cst_10 {dimension_numbers = #tpu.dot_dimension_numbers<[1], [0], [0], [1], [0, 0, 1, 1], [], []>} : vector<7x4xf32>, vector<4x8xf32>, vector<7x8xf32> -> vector<7x8xf32>
    %9 = vector.broadcast %2 : vector<1x8xf32> to vector<7x8xf32>
    %10 = arith.addf %9, %8 : vector<7x8xf32>
    %c1 = arith.constant 1 : index
    %c0_11 = arith.constant 0 : index
    %c0_12 = arith.constant 0 : index
    %11 = vector.load %arg2[%c1, %c0_11, %c0_12] : memref<3x7x16xf32, #tpu.memory_space<vmem>>, vector<1x7x16xf32>
    %12 = vector.shape_cast %11 : vector<1x7x16xf32> to vector<7x16xf32>
    %cst_13 = arith.constant dense<0.000000e+00> : vector<7x4xf32>
    %13 = tpu.matmul %12, %1, %cst_13 {dimension_numbers = #tpu.dot_dimension_numbers<[1], [0], [0], [1], [0, 0, 1, 1], [], []>} : vector<7x16xf32>, vector<16x4xf32>, vector<7x4xf32> -> vector<7x4xf32>
    %c1_14 = arith.constant 1 : index
    %c0_15 = arith.constant 0 : index
    %c0_16 = arith.constant 0 : index
    %14 = vector.load %arg3[%c1_14, %c0_15, %c0_16] : memref<3x4x8xf32, #tpu.memory_space<vmem>>, vector<1x4x8xf32>
    %15 = vector.shape_cast %14 : vector<1x4x8xf32> to vector<4x8xf32>
    %cst_17 = arith.constant dense<0.000000e+00> : vector<7x8xf32>
    %16 = tpu.matmul %13, %15, %cst_17 {dimension_numbers = #tpu.dot_dimension_numbers<[1], [0], [0], [1], [0, 0, 1, 1], [], []>} : vector<7x4xf32>, vector<4x8xf32>, vector<7x8xf32> -> vector<7x8xf32>
    %17 = arith.addf %10, %16 : vector<7x8xf32>
    %c2 = arith.constant 2 : index
    %c0_18 = arith.constant 0 : index
    %c0_19 = arith.constant 0 : index
    %18 = vector.load %arg2[%c2, %c0_18, %c0_19] : memref<3x7x16xf32, #tpu.memory_space<vmem>>, vector<1x7x16xf32>
    %19 = vector.shape_cast %18 : vector<1x7x16xf32> to vector<7x16xf32>
    %cst_20 = arith.constant dense<0.000000e+00> : vector<7x4xf32>
    %20 = tpu.matmul %19, %1, %cst_20 {dimension_numbers = #tpu.dot_dimension_numbers<[1], [0], [0], [1], [0, 0, 1, 1], [], []>} : vector<7x16xf32>, vector<16x4xf32>, vector<7x4xf32> -> vector<7x4xf32>
    %c2_21 = arith.constant 2 : index
    %c0_22 = arith.constant 0 : index
    %c0_23 = arith.constant 0 : index
    %21 = vector.load %arg3[%c2_21, %c0_22, %c0_23] : memref<3x4x8xf32, #tpu.memory_space<vmem>>, vector<1x4x8xf32>
    %22 = vector.shape_cast %21 : vector<1x4x8xf32> to vector<4x8xf32>
    %cst_24 = arith.constant dense<0.000000e+00> : vector<7x8xf32>
    %23 = tpu.matmul %20, %22, %cst_24 {dimension_numbers = #tpu.dot_dimension_numbers<[1], [0], [0], [1], [0, 0, 1, 1], [], []>} : vector<7x4xf32>, vector<4x8xf32>, vector<7x8xf32> -> vector<7x8xf32>
    %24 = arith.addf %17, %23 : vector<7x8xf32>
    %cst_25 = arith.constant 0.000000e+00 : f32
    %25 = vector.broadcast %cst_25 : f32 to vector<7x8xf32>
    %26 = arith.maximumf %24, %25 : vector<7x8xf32>
    %c0_26 = arith.constant 0 : index
    %c0_27 = arith.constant 0 : index
    %27 = vector.load %arg7[%c0_26, %c0_27] : memref<1x16xf32, #tpu.memory_space<vmem>>, vector<1x16xf32>
    %c0_28 = arith.constant 0 : index
    %c0_29 = arith.constant 0 : index
    %c0_30 = arith.constant 0 : index
    %28 = vector.load %arg5[%c0_28, %c0_29, %c0_30] : memref<3x3x7xf32, #tpu.memory_space<vmem>>, vector<1x3x7xf32>
    %29 = vector.shape_cast %28 : vector<1x3x7xf32> to vector<3x7xf32>
    %cst_31 = arith.constant dense<0.000000e+00> : vector<3x8xf32>
    %30 = tpu.matmul %29, %26, %cst_31 {dimension_numbers = #tpu.dot_dimension_numbers<[1], [0], [0], [1], [0, 0, 1, 1], [], []>} : vector<3x7xf32>, vector<7x8xf32>, vector<3x8xf32> -> vector<3x8xf32>
    %c0_32 = arith.constant 0 : index
    %c0_33 = arith.constant 0 : index
    %c0_34 = arith.constant 0 : index
    %31 = vector.load %arg6[%c0_32, %c0_33, %c0_34] : memref<3x8x16xf32, #tpu.memory_space<vmem>>, vector<1x8x16xf32>
    %32 = vector.shape_cast %31 : vector<1x8x16xf32> to vector<8x16xf32>
    %cst_35 = arith.constant dense<0.000000e+00> : vector<3x16xf32>
    %33 = tpu.matmul %30, %32, %cst_35 {dimension_numbers = #tpu.dot_dimension_numbers<[1], [0], [0], [1], [0, 0, 1, 1], [], []>} : vector<3x8xf32>, vector<8x16xf32>, vector<3x16xf32> -> vector<3x16xf32>
    %34 = vector.broadcast %27 : vector<1x16xf32> to vector<3x16xf32>
    %35 = arith.addf %34, %33 : vector<3x16xf32>
    %c1_36 = arith.constant 1 : index
    %c0_37 = arith.constant 0 : index
    %c0_38 = arith.constant 0 : index
    %36 = vector.load %arg5[%c1_36, %c0_37, %c0_38] : memref<3x3x7xf32, #tpu.memory_space<vmem>>, vector<1x3x7xf32>
    %37 = vector.shape_cast %36 : vector<1x3x7xf32> to vector<3x7xf32>
    %cst_39 = arith.constant dense<0.000000e+00> : vector<3x8xf32>
    %38 = tpu.matmul %37, %26, %cst_39 {dimension_numbers = #tpu.dot_dimension_numbers<[1], [0], [0], [1], [0, 0, 1, 1], [], []>} : vector<3x7xf32>, vector<7x8xf32>, vector<3x8xf32> -> vector<3x8xf32>
    %c1_40 = arith.constant 1 : index
    %c0_41 = arith.constant 0 : index
    %c0_42 = arith.constant 0 : index
    %39 = vector.load %arg6[%c1_40, %c0_41, %c0_42] : memref<3x8x16xf32, #tpu.memory_space<vmem>>, vector<1x8x16xf32>
    %40 = vector.shape_cast %39 : vector<1x8x16xf32> to vector<8x16xf32>
    %cst_43 = arith.constant dense<0.000000e+00> : vector<3x16xf32>
    %41 = tpu.matmul %38, %40, %cst_43 {dimension_numbers = #tpu.dot_dimension_numbers<[1], [0], [0], [1], [0, 0, 1, 1], [], []>} : vector<3x8xf32>, vector<8x16xf32>, vector<3x16xf32> -> vector<3x16xf32>
    %42 = arith.addf %35, %41 : vector<3x16xf32>
    %c2_44 = arith.constant 2 : index
    %c0_45 = arith.constant 0 : index
    %c0_46 = arith.constant 0 : index
    %43 = vector.load %arg5[%c2_44, %c0_45, %c0_46] : memref<3x3x7xf32, #tpu.memory_space<vmem>>, vector<1x3x7xf32>
    %44 = vector.shape_cast %43 : vector<1x3x7xf32> to vector<3x7xf32>
    %cst_47 = arith.constant dense<0.000000e+00> : vector<3x8xf32>
    %45 = tpu.matmul %44, %26, %cst_47 {dimension_numbers = #tpu.dot_dimension_numbers<[1], [0], [0], [1], [0, 0, 1, 1], [], []>} : vector<3x7xf32>, vector<7x8xf32>, vector<3x8xf32> -> vector<3x8xf32>
    %c2_48 = arith.constant 2 : index
    %c0_49 = arith.constant 0 : index
    %c0_50 = arith.constant 0 : index
    %46 = vector.load %arg6[%c2_48, %c0_49, %c0_50] : memref<3x8x16xf32, #tpu.memory_space<vmem>>, vector<1x8x16xf32>
    %47 = vector.shape_cast %46 : vector<1x8x16xf32> to vector<8x16xf32>
    %cst_51 = arith.constant dense<0.000000e+00> : vector<3x16xf32>
    %48 = tpu.matmul %45, %47, %cst_51 {dimension_numbers = #tpu.dot_dimension_numbers<[1], [0], [0], [1], [0, 0, 1, 1], [], []>} : vector<3x8xf32>, vector<8x16xf32>, vector<3x16xf32> -> vector<3x16xf32>
    %49 = arith.addf %42, %48 : vector<3x16xf32>
    %cst_52 = arith.constant 0.000000e+00 : f32
    %50 = vector.broadcast %cst_52 : f32 to vector<3x16xf32>
    %51 = arith.maximumf %49, %50 : vector<3x16xf32>
    %cst_53 = arith.constant dense<0xFF800000> : vector<16xf32>
    %52 = vector.multi_reduction <maximumf>, %51, %cst_53 [0] : vector<3x16xf32> to vector<16xf32>
    %53 = vector.shape_cast %52 : vector<16xf32> to vector<1x16xf32>
    %c0_54 = arith.constant 0 : index
    %c0_55 = arith.constant 0 : index
    %54 = vector.load %arg8[%c0_54, %c0_55] : memref<16x32xf32, #tpu.memory_space<vmem>>, vector<16x32xf32>
    %cst_56 = arith.constant dense<0.000000e+00> : vector<1x32xf32>
    %55 = tpu.matmul %53, %54, %cst_56 {dimension_numbers = #tpu.dot_dimension_numbers<[1], [0], [0], [1], [0, 0, 1, 1], [], []>} : vector<1x16xf32>, vector<16x32xf32>, vector<1x32xf32> -> vector<1x32xf32>
    %c0_57 = arith.constant 0 : index
    %c0_58 = arith.constant 0 : index
    %56 = vector.load %arg9[%c0_57, %c0_58] : memref<1x32xf32, #tpu.memory_space<vmem>>, vector<1x32xf32>
    %57 = arith.addf %55, %56 : vector<1x32xf32>
    %c0_59 = arith.constant 0 : index
    %c0_60 = arith.constant 0 : index
    %58 = vector.load %arg10[%c0_59, %c0_60] : memref<32x32xf32, #tpu.memory_space<vmem>>, vector<32x32xf32>
    %cst_61 = arith.constant dense<0.000000e+00> : vector<1x32xf32>
    %59 = tpu.matmul %57, %58, %cst_61 {dimension_numbers = #tpu.dot_dimension_numbers<[1], [0], [0], [1], [0, 0, 1, 1], [], []>} : vector<1x32xf32>, vector<32x32xf32>, vector<1x32xf32> -> vector<1x32xf32>
    %c0_62 = arith.constant 0 : index
    %c0_63 = arith.constant 0 : index
    %60 = vector.load %arg11[%c0_62, %c0_63] : memref<1x32xf32, #tpu.memory_space<vmem>>, vector<1x32xf32>
    %61 = arith.addf %59, %60 : vector<1x32xf32>
    %62 = arith.addf %61, %57 : vector<1x32xf32>
    %cst_64 = arith.constant dense<0.000000e+00> : vector<1xf32>
    %63 = vector.multi_reduction <add>, %62, %cst_64 [1] : vector<1x32xf32> to vector<1xf32>
    %64 = vector.shape_cast %63 : vector<1xf32> to vector<1x1xf32>
    %cst_65 = arith.constant 3.200000e+01 : f32
    %65 = vector.broadcast %cst_65 : f32 to vector<1x1xf32>
    %66 = arith.divf %64, %65 : vector<1x1xf32>
    %67 = vector.broadcast %66 : vector<1x1xf32> to vector<1x32xf32>
    %68 = arith.subf %62, %67 : vector<1x32xf32>
    %69 = arith.mulf %68, %68 : vector<1x32xf32>
    %cst_66 = arith.constant dense<0.000000e+00> : vector<1xf32>
    %70 = vector.multi_reduction <add>, %69, %cst_66 [1] : vector<1x32xf32> to vector<1xf32>
    %71 = vector.shape_cast %70 : vector<1xf32> to vector<1x1xf32>
    %cst_67 = arith.constant 3.200000e+01 : f32
    %72 = vector.broadcast %cst_67 : f32 to vector<1x1xf32>
    %73 = arith.divf %71, %72 : vector<1x1xf32>
    %74 = vector.broadcast %66 : vector<1x1xf32> to vector<1x32xf32>
    %75 = arith.subf %62, %74 : vector<1x32xf32>
    %cst_68 = arith.constant 9.99999974E-6 : f32
    %76 = vector.broadcast %cst_68 : f32 to vector<1x1xf32>
    %77 = arith.addf %73, %76 : vector<1x1xf32>
    %78 = math.rsqrt %77 : vector<1x1xf32>
    %79 = vector.broadcast %78 : vector<1x1xf32> to vector<1x32xf32>
    %80 = arith.mulf %75, %79 : vector<1x32xf32>
    %c0_69 = arith.constant 0 : index
    %c0_70 = arith.constant 0 : index
    %81 = vector.load %arg12[%c0_69, %c0_70] : memref<1x32xf32, #tpu.memory_space<vmem>>, vector<1x32xf32>
    %82 = arith.mulf %80, %81 : vector<1x32xf32>
    %c0_71 = arith.constant 0 : index
    %c0_72 = arith.constant 0 : index
    %83 = vector.load %arg13[%c0_71, %c0_72] : memref<1x32xf32, #tpu.memory_space<vmem>>, vector<1x32xf32>
    %84 = arith.addf %82, %83 : vector<1x32xf32>
    %c0_73 = arith.constant 0 : index
    %c0_74 = arith.constant 0 : index
    %85 = vector.load %arg14[%c0_73, %c0_74] : memref<3x1xf32, #tpu.memory_space<vmem>>, vector<3x1xf32>
    %86 = vector.broadcast %84 : vector<1x32xf32> to vector<3x32xf32>
    %87 = vector.broadcast %85 : vector<3x1xf32> to vector<3x32xf32>
    %88 = arith.mulf %86, %87 : vector<3x32xf32>
    %c0_75 = arith.constant 0 : index
    %c0_76 = arith.constant 0 : index
    %89 = vector.load %arg15[%c0_75, %c0_76] : memref<3x1xf32, #tpu.memory_space<vmem>>, vector<3x1xf32>
    %90 = vector.broadcast %89 : vector<3x1xf32> to vector<3x32xf32>
    %91 = arith.addf %88, %90 : vector<3x32xf32>
    %c0_77 = arith.constant 0 : index
    %c0_78 = arith.constant 0 : index
    %92 = vector.load %arg18[%c0_77, %c0_78] : memref<1x16xf32, #tpu.memory_space<vmem>>, vector<1x16xf32>
    %c0_79 = arith.constant 0 : index
    %c0_80 = arith.constant 0 : index
    %c0_81 = arith.constant 0 : index
    %93 = vector.load %arg16[%c0_79, %c0_80, %c0_81] : memref<3x7x3xf32, #tpu.memory_space<vmem>>, vector<1x7x3xf32>
    %94 = vector.shape_cast %93 : vector<1x7x3xf32> to vector<7x3xf32>
    %cst_82 = arith.constant dense<0.000000e+00> : vector<7x32xf32>
    %95 = tpu.matmul %94, %91, %cst_82 {dimension_numbers = #tpu.dot_dimension_numbers<[1], [0], [0], [1], [0, 0, 1, 1], [], []>} : vector<7x3xf32>, vector<3x32xf32>, vector<7x32xf32> -> vector<7x32xf32>
    %c0_83 = arith.constant 0 : index
    %c0_84 = arith.constant 0 : index
    %c0_85 = arith.constant 0 : index
    %96 = vector.load %arg17[%c0_83, %c0_84, %c0_85] : memref<3x32x16xf32, #tpu.memory_space<vmem>>, vector<1x32x16xf32>
    %97 = vector.shape_cast %96 : vector<1x32x16xf32> to vector<32x16xf32>
    %cst_86 = arith.constant dense<0.000000e+00> : vector<7x16xf32>
    %98 = tpu.matmul %95, %97, %cst_86 {dimension_numbers = #tpu.dot_dimension_numbers<[1], [0], [0], [1], [0, 0, 1, 1], [], []>} : vector<7x32xf32>, vector<32x16xf32>, vector<7x16xf32> -> vector<7x16xf32>
    %99 = vector.broadcast %92 : vector<1x16xf32> to vector<7x16xf32>
    %100 = arith.addf %99, %98 : vector<7x16xf32>
    %c1_87 = arith.constant 1 : index
    %c0_88 = arith.constant 0 : index
    %c0_89 = arith.constant 0 : index
    %101 = vector.load %arg16[%c1_87, %c0_88, %c0_89] : memref<3x7x3xf32, #tpu.memory_space<vmem>>, vector<1x7x3xf32>
    %102 = vector.shape_cast %101 : vector<1x7x3xf32> to vector<7x3xf32>
    %cst_90 = arith.constant dense<0.000000e+00> : vector<7x32xf32>
    %103 = tpu.matmul %102, %91, %cst_90 {dimension_numbers = #tpu.dot_dimension_numbers<[1], [0], [0], [1], [0, 0, 1, 1], [], []>} : vector<7x3xf32>, vector<3x32xf32>, vector<7x32xf32> -> vector<7x32xf32>
    %c1_91 = arith.constant 1 : index
    %c0_92 = arith.constant 0 : index
    %c0_93 = arith.constant 0 : index
    %104 = vector.load %arg17[%c1_91, %c0_92, %c0_93] : memref<3x32x16xf32, #tpu.memory_space<vmem>>, vector<1x32x16xf32>
    %105 = vector.shape_cast %104 : vector<1x32x16xf32> to vector<32x16xf32>
    %cst_94 = arith.constant dense<0.000000e+00> : vector<7x16xf32>
    %106 = tpu.matmul %103, %105, %cst_94 {dimension_numbers = #tpu.dot_dimension_numbers<[1], [0], [0], [1], [0, 0, 1, 1], [], []>} : vector<7x32xf32>, vector<32x16xf32>, vector<7x16xf32> -> vector<7x16xf32>
    %107 = arith.addf %100, %106 : vector<7x16xf32>
    %c2_95 = arith.constant 2 : index
    %c0_96 = arith.constant 0 : index
    %c0_97 = arith.constant 0 : index
    %108 = vector.load %arg16[%c2_95, %c0_96, %c0_97] : memref<3x7x3xf32, #tpu.memory_space<vmem>>, vector<1x7x3xf32>
    %109 = vector.shape_cast %108 : vector<1x7x3xf32> to vector<7x3xf32>
    %cst_98 = arith.constant dense<0.000000e+00> : vector<7x32xf32>
    %110 = tpu.matmul %109, %91, %cst_98 {dimension_numbers = #tpu.dot_dimension_numbers<[1], [0], [0], [1], [0, 0, 1, 1], [], []>} : vector<7x3xf32>, vector<3x32xf32>, vector<7x32xf32> -> vector<7x32xf32>
    %c2_99 = arith.constant 2 : index
    %c0_100 = arith.constant 0 : index
    %c0_101 = arith.constant 0 : index
    %111 = vector.load %arg17[%c2_99, %c0_100, %c0_101] : memref<3x32x16xf32, #tpu.memory_space<vmem>>, vector<1x32x16xf32>
    %112 = vector.shape_cast %111 : vector<1x32x16xf32> to vector<32x16xf32>
    %cst_102 = arith.constant dense<0.000000e+00> : vector<7x16xf32>
    %113 = tpu.matmul %110, %112, %cst_102 {dimension_numbers = #tpu.dot_dimension_numbers<[1], [0], [0], [1], [0, 0, 1, 1], [], []>} : vector<7x32xf32>, vector<32x16xf32>, vector<7x16xf32> -> vector<7x16xf32>
    %114 = arith.addf %107, %113 : vector<7x16xf32>
    %cst_103 = arith.constant 0.000000e+00 : f32
    %115 = vector.broadcast %cst_103 : f32 to vector<7x16xf32>
    %116 = arith.maximumf %114, %115 : vector<7x16xf32>
    %c0_104 = arith.constant 0 : index
    %c0_105 = arith.constant 0 : index
    %117 = vector.load %arg21[%c0_104, %c0_105] : memref<1x8xf32, #tpu.memory_space<vmem>>, vector<1x8xf32>
    %c0_106 = arith.constant 0 : index
    %c0_107 = arith.constant 0 : index
    %c0_108 = arith.constant 0 : index
    %118 = vector.load %arg19[%c0_106, %c0_107, %c0_108] : memref<3x16x7xf32, #tpu.memory_space<vmem>>, vector<1x16x7xf32>
    %119 = vector.shape_cast %118 : vector<1x16x7xf32> to vector<16x7xf32>
    %cst_109 = arith.constant dense<0.000000e+00> : vector<16x16xf32>
    %120 = tpu.matmul %119, %116, %cst_109 {dimension_numbers = #tpu.dot_dimension_numbers<[1], [0], [0], [1], [0, 0, 1, 1], [], []>} : vector<16x7xf32>, vector<7x16xf32>, vector<16x16xf32> -> vector<16x16xf32>
    %c0_110 = arith.constant 0 : index
    %c0_111 = arith.constant 0 : index
    %c0_112 = arith.constant 0 : index
    %121 = vector.load %arg20[%c0_110, %c0_111, %c0_112] : memref<3x16x8xf32, #tpu.memory_space<vmem>>, vector<1x16x8xf32>
    %122 = vector.shape_cast %121 : vector<1x16x8xf32> to vector<16x8xf32>
    %cst_113 = arith.constant dense<0.000000e+00> : vector<16x8xf32>
    %123 = tpu.matmul %120, %122, %cst_113 {dimension_numbers = #tpu.dot_dimension_numbers<[1], [0], [0], [1], [0, 0, 1, 1], [], []>} : vector<16x16xf32>, vector<16x8xf32>, vector<16x8xf32> -> vector<16x8xf32>
    %124 = vector.broadcast %117 : vector<1x8xf32> to vector<16x8xf32>
    %125 = arith.addf %124, %123 : vector<16x8xf32>
    %c1_114 = arith.constant 1 : index
    %c0_115 = arith.constant 0 : index
    %c0_116 = arith.constant 0 : index
    %126 = vector.load %arg19[%c1_114, %c0_115, %c0_116] : memref<3x16x7xf32, #tpu.memory_space<vmem>>, vector<1x16x7xf32>
    %127 = vector.shape_cast %126 : vector<1x16x7xf32> to vector<16x7xf32>
    %cst_117 = arith.constant dense<0.000000e+00> : vector<16x16xf32>
    %128 = tpu.matmul %127, %116, %cst_117 {dimension_numbers = #tpu.dot_dimension_numbers<[1], [0], [0], [1], [0, 0, 1, 1], [], []>} : vector<16x7xf32>, vector<7x16xf32>, vector<16x16xf32> -> vector<16x16xf32>
    %c1_118 = arith.constant 1 : index
    %c0_119 = arith.constant 0 : index
    %c0_120 = arith.constant 0 : index
    %129 = vector.load %arg20[%c1_118, %c0_119, %c0_120] : memref<3x16x8xf32, #tpu.memory_space<vmem>>, vector<1x16x8xf32>
    %130 = vector.shape_cast %129 : vector<1x16x8xf32> to vector<16x8xf32>
    %cst_121 = arith.constant dense<0.000000e+00> : vector<16x8xf32>
    %131 = tpu.matmul %128, %130, %cst_121 {dimension_numbers = #tpu.dot_dimension_numbers<[1], [0], [0], [1], [0, 0, 1, 1], [], []>} : vector<16x16xf32>, vector<16x8xf32>, vector<16x8xf32> -> vector<16x8xf32>
    %132 = arith.addf %125, %131 : vector<16x8xf32>
    %c2_122 = arith.constant 2 : index
    %c0_123 = arith.constant 0 : index
    %c0_124 = arith.constant 0 : index
    %133 = vector.load %arg19[%c2_122, %c0_123, %c0_124] : memref<3x16x7xf32, #tpu.memory_space<vmem>>, vector<1x16x7xf32>
    %134 = vector.shape_cast %133 : vector<1x16x7xf32> to vector<16x7xf32>
    %cst_125 = arith.constant dense<0.000000e+00> : vector<16x16xf32>
    %135 = tpu.matmul %134, %116, %cst_125 {dimension_numbers = #tpu.dot_dimension_numbers<[1], [0], [0], [1], [0, 0, 1, 1], [], []>} : vector<16x7xf32>, vector<7x16xf32>, vector<16x16xf32> -> vector<16x16xf32>
    %c2_126 = arith.constant 2 : index
    %c0_127 = arith.constant 0 : index
    %c0_128 = arith.constant 0 : index
    %136 = vector.load %arg20[%c2_126, %c0_127, %c0_128] : memref<3x16x8xf32, #tpu.memory_space<vmem>>, vector<1x16x8xf32>
    %137 = vector.shape_cast %136 : vector<1x16x8xf32> to vector<16x8xf32>
    %cst_129 = arith.constant dense<0.000000e+00> : vector<16x8xf32>
    %138 = tpu.matmul %135, %137, %cst_129 {dimension_numbers = #tpu.dot_dimension_numbers<[1], [0], [0], [1], [0, 0, 1, 1], [], []>} : vector<16x16xf32>, vector<16x8xf32>, vector<16x8xf32> -> vector<16x8xf32>
    %139 = arith.addf %132, %138 : vector<16x8xf32>
    %cst_130 = arith.constant 0.000000e+00 : f32
    %140 = vector.broadcast %cst_130 : f32 to vector<16x8xf32>
    %141 = arith.maximumf %139, %140 : vector<16x8xf32>
    %c0_131 = arith.constant 0 : index
    %c0_132 = arith.constant 0 : index
    %142 = vector.load %arg22[%c0_131, %c0_132] : memref<8x4xf32, #tpu.memory_space<vmem>>, vector<8x4xf32>
    %cst_133 = arith.constant dense<0.000000e+00> : vector<16x4xf32>
    %143 = tpu.matmul %141, %142, %cst_133 {dimension_numbers = #tpu.dot_dimension_numbers<[1], [0], [0], [1], [0, 0, 1, 1], [], []>} : vector<16x8xf32>, vector<8x4xf32>, vector<16x4xf32> -> vector<16x4xf32>
    %c0_134 = arith.constant 0 : index
    %c0_135 = arith.constant 0 : index
    %144 = vector.load %arg23[%c0_134, %c0_135] : memref<1x4xf32, #tpu.memory_space<vmem>>, vector<1x4xf32>
    %145 = vector.broadcast %144 : vector<1x4xf32> to vector<16x4xf32>
    %146 = arith.addf %143, %145 : vector<16x4xf32>
    %c0_136 = arith.constant 0 : index
    %c0_137 = arith.constant 0 : index
    %c0_138 = arith.constant 0 : index
    %147 = vector.load %arg24[%c0_136, %c0_137, %c0_138] : memref<1x16x4xf32, #tpu.memory_space<vmem>>, vector<1x16x4xf32>
    %148 = vector.shape_cast %147 : vector<1x16x4xf32> to vector<16x4xf32>
    %149 = vector.shape_cast %146 : vector<16x4xf32> to vector<1x16x4xf32>
    tpu.vector_store %arg24[%c0_136, %c0_137, %c0_138], %149 {strides = array<i32>} : memref<1x16x4xf32, #tpu.memory_space<vmem>>, vector<1x16x4xf32>,
    return
  }
  func.func @transform_0(%arg0: i32) -> (i32, i32, i32) {
    %c0_i32 = arith.constant 0 : i32
    %c0_i32_0 = arith.constant 0 : i32
    %c0_i32_1 = arith.constant 0 : i32
    return %arg0, %c0_i32, %c0_i32_0 : i32, i32, i32
  }
  func.func @transform_1(%arg0: i32) -> (i32, i32, i32) {
    %c0_i32 = arith.constant 0 : i32
    %c0_i32_0 = arith.constant 0 : i32
    %c0_i32_1 = arith.constant 0 : i32
    %c0_i32_2 = arith.constant 0 : i32
    return %c0_i32, %c0_i32_0, %c0_i32_1 : i32, i32, i32
  }
  func.func @transform_2(%arg0: i32) -> (i32, i32, i32) {
    %c0_i32 = arith.constant 0 : i32
    %c0_i32_0 = arith.constant 0 : i32
    %c0_i32_1 = arith.constant 0 : i32
    %c0_i32_2 = arith.constant 0 : i32
    return %c0_i32, %c0_i32_0, %c0_i32_1 : i32, i32, i32
  }
  func.func @transform_3(%arg0: i32) -> (i32, i32) {
    %c0_i32 = arith.constant 0 : i32
    %c0_i32_0 = arith.constant 0 : i32
    %c0_i32_1 = arith.constant 0 : i32
    return %c0_i32, %c0_i32_0 : i32, i32
  }
  func.func @transform_4(%arg0: i32) -> (i32, i32, i32) {
    %c0_i32 = arith.constant 0 : i32
    %c0_i32_0 = arith.constant 0 : i32
    %c0_i32_1 = arith.constant 0 : i32
    %c0_i32_2 = arith.constant 0 : i32
    return %c0_i32, %c0_i32_0, %c0_i32_1 : i32, i32, i32
  }
  func.func @transform_5(%arg0: i32) -> (i32, i32, i32) {
    %c0_i32 = arith.constant 0 : i32
    %c0_i32_0 = arith.constant 0 : i32
    %c0_i32_1 = arith.constant 0 : i32
    %c0_i32_2 = arith.constant 0 : i32
    return %c0_i32, %c0_i32_0, %c0_i32_1 : i32, i32, i32
  }
  func.func @transform_6(%arg0: i32) -> (i32, i32) {
    %c0_i32 = arith.constant 0 : i32
    %c0_i32_0 = arith.constant 0 : i32
    %c0_i32_1 = arith.constant 0 : i32
    return %c0_i32, %c0_i32_0 : i32, i32
  }
  func.func @transform_7(%arg0: i32) -> (i32, i32) {
    %c0_i32 = arith.constant 0 : i32
    %c0_i32_0 = arith.constant 0 : i32
    %c0_i32_1 = arith.constant 0 : i32
    return %c0_i32, %c0_i32_0 : i32, i32
  }
  func.func @transform_8(%arg0: i32) -> (i32, i32) {
    %c0_i32 = arith.constant 0 : i32
    %c0_i32_0 = arith.constant 0 : i32
    %c0_i32_1 = arith.constant 0 : i32
    return %c0_i32, %c0_i32_0 : i32, i32
  }
  func.func @transform_9(%arg0: i32) -> (i32, i32) {
    %c0_i32 = arith.constant 0 : i32
    %c0_i32_0 = arith.constant 0 : i32
    %c0_i32_1 = arith.constant 0 : i32
    return %c0_i32, %c0_i32_0 : i32, i32
  }
  func.func @transform_10(%arg0: i32) -> (i32, i32) {
    %c0_i32 = arith.constant 0 : i32
    %c0_i32_0 = arith.constant 0 : i32
    %c0_i32_1 = arith.constant 0 : i32
    return %c0_i32, %c0_i32_0 : i32, i32
  }
  func.func @transform_11(%arg0: i32) -> (i32, i32) {
    %c0_i32 = arith.constant 0 : i32
    %c0_i32_0 = arith.constant 0 : i32
    %c0_i32_1 = arith.constant 0 : i32
    return %c0_i32, %c0_i32_0 : i32, i32
  }
  func.func @transform_12(%arg0: i32) -> (i32, i32) {
    %c0_i32 = arith.constant 0 : i32
    %c0_i32_0 = arith.constant 0 : i32
    %c0_i32_1 = arith.constant 0 : i32
    return %c0_i32, %c0_i32_0 : i32, i32
  }
  func.func @transform_13(%arg0: i32) -> (i32, i32) {
    %c0_i32 = arith.constant 0 : i32
    %c0_i32_0 = arith.constant 0 : i32
    %c0_i32_1 = arith.constant 0 : i32
    return %c0_i32, %c0_i32_0 : i32, i32
  }
  func.func @transform_14(%arg0: i32) -> (i32, i32) {
    %c0_i32 = arith.constant 0 : i32
    %c0_i32_0 = arith.constant 0 : i32
    %c0_i32_1 = arith.constant 0 : i32
    return %c0_i32, %c0_i32_0 : i32, i32
  }
  func.func @transform_15(%arg0: i32) -> (i32, i32, i32) {
    %c0_i32 = arith.constant 0 : i32
    %c0_i32_0 = arith.constant 0 : i32
    %c0_i32_1 = arith.constant 0 : i32
    %c0_i32_2 = arith.constant 0 : i32
    return %c0_i32, %c0_i32_0, %c0_i32_1 : i32, i32, i32
  }
  func.func @transform_16(%arg0: i32) -> (i32, i32, i32) {
    %c0_i32 = arith.constant 0 : i32
    %c0_i32_0 = arith.constant 0 : i32
    %c0_i32_1 = arith.constant 0 : i32
    %c0_i32_2 = arith.constant 0 : i32
    return %c0_i32, %c0_i32_0, %c0_i32_1 : i32, i32, i32
  }
  func.func @transform_17(%arg0: i32) -> (i32, i32) {
    %c0_i32 = arith.constant 0 : i32
    %c0_i32_0 = arith.constant 0 : i32
    %c0_i32_1 = arith.constant 0 : i32
    return %c0_i32, %c0_i32_0 : i32, i32
  }
  func.func @transform_18(%arg0: i32) -> (i32, i32, i32) {
    %c0_i32 = arith.constant 0 : i32
    %c0_i32_0 = arith.constant 0 : i32
    %c0_i32_1 = arith.constant 0 : i32
    %c0_i32_2 = arith.constant 0 : i32
    return %c0_i32, %c0_i32_0, %c0_i32_1 : i32, i32, i32
  }
  func.func @transform_19(%arg0: i32) -> (i32, i32, i32) {
    %c0_i32 = arith.constant 0 : i32
    %c0_i32_0 = arith.constant 0 : i32
    %c0_i32_1 = arith.constant 0 : i32
    %c0_i32_2 = arith.constant 0 : i32
    return %c0_i32, %c0_i32_0, %c0_i32_1 : i32, i32, i32
  }
  func.func @transform_20(%arg0: i32) -> (i32, i32) {
    %c0_i32 = arith.constant 0 : i32
    %c0_i32_0 = arith.constant 0 : i32
    %c0_i32_1 = arith.constant 0 : i32
    return %c0_i32, %c0_i32_0 : i32, i32
  }
  func.func @transform_21(%arg0: i32) -> (i32, i32) {
    %c0_i32 = arith.constant 0 : i32
    %c0_i32_0 = arith.constant 0 : i32
    %c0_i32_1 = arith.constant 0 : i32
    return %c0_i32, %c0_i32_0 : i32, i32
  }
  func.func @transform_22(%arg0: i32) -> (i32, i32) {
    %c0_i32 = arith.constant 0 : i32
    %c0_i32_0 = arith.constant 0 : i32
    %c0_i32_1 = arith.constant 0 : i32
    return %c0_i32, %c0_i32_0 : i32, i32
  }
  func.func @transform_23(%arg0: i32) -> (i32, i32, i32) {
    %c0_i32 = arith.constant 0 : i32
    %c0_i32_0 = arith.constant 0 : i32
    %c0_i32_1 = arith.constant 0 : i32
    return %arg0, %c0_i32, %c0_i32_0 : i32, i32, i32
  }
}

</mosaic_0001>

<llo_original>
// kernel: fused_forward.1
$region0: #{fused_forward.1}
  #allocation0 [shape = 'u32[]', space=smem, size = 0x4, offset = 0x4, fixed_abs, tag = 'smem constant byte address 0x4 - core index']
  #allocation1 [shape = 'u32[144,128]{1,0:T(1,128)}', space=vmem, size = 0x12000, scoped, tag = 'internal scratch']
  %s0 = inlined_call_operand.vmem [shape: f32[2,16,4], index: 0, kind: input, shape index: {}]
  %s1 = inlined_call_operand.vmem [shape: f32[3,7,16], index: 1, kind: input, shape index: {}]
  %s2 = inlined_call_operand.vmem [shape: f32[3,4,8], index: 2, kind: input, shape index: {}]
  %s3 = inlined_call_operand.vmem [shape: f32[1,8], index: 3, kind: input, shape index: {}]
  %s4 = inlined_call_operand.vmem [shape: f32[3,3,7], index: 4, kind: input, shape index: {}]
  %s5 = inlined_call_operand.vmem [shape: f32[3,8,16], index: 5, kind: input, shape index: {}]
  %s6 = inlined_call_operand.vmem [shape: f32[1,16], index: 6, kind: input, shape index: {}]
  %s7 = inlined_call_operand.vmem [shape: f32[16,32], index: 7, kind: input, shape index: {}]
  %s8 = inlined_call_operand.vmem [shape: f32[1,32], index: 8, kind: input, shape index: {}]
  %s9 = inlined_call_operand.vmem [shape: f32[32,32], index: 9, kind: input, shape index: {}]
  %s10 = inlined_call_operand.vmem [shape: f32[1,32], index: 10, kind: input, shape index: {}]
  %s11 = inlined_call_operand.vmem [shape: f32[1,32], index: 11, kind: input, shape index: {}]
  %s12 = inlined_call_operand.vmem [shape: f32[1,32], index: 12, kind: input, shape index: {}]
  %s13 = inlined_call_operand.vmem [shape: f32[3,1], index: 13, kind: input, shape index: {}]
  %s14 = inlined_call_operand.vmem [shape: f32[3,1], index: 14, kind: input, shape index: {}]
  %s15 = inlined_call_operand.vmem [shape: f32[3,7,3], index: 15, kind: input, shape index: {}]
  %s16 = inlined_call_operand.vmem [shape: f32[3,32,16], index: 16, kind: input, shape index: {}]
  %s17 = inlined_call_operand.vmem [shape: f32[1,16], index: 17, kind: input, shape index: {}]
  %s18 = inlined_call_operand.vmem [shape: f32[3,16,7], index: 18, kind: input, shape index: {}]
  %s19 = inlined_call_operand.vmem [shape: f32[3,16,8], index: 19, kind: input, shape index: {}]
  %s20 = inlined_call_operand.vmem [shape: f32[1,8], index: 20, kind: input, shape index: {}]
  %s21 = inlined_call_operand.vmem [shape: f32[8,4], index: 21, kind: input, shape index: {}]
  %s22 = inlined_call_operand.vmem [shape: f32[1,4], index: 22, kind: input, shape index: {}]
  %s23 = inlined_call_operand.vmem [shape: f32[2,16,4], index: 23, kind: output, shape index: {}]
  %s24 = sld [smem:[#allocation0]]
  $region125: #{fused_forward.1} parent=0
    _
  %s26 = ssub.s32 1, %s24
  %s27 = scalar_select 0, %s26, %s24
  loop: start=0, step=1, limit=4
  $region2: #{fused_forward.1} parent=0 // loop_pre_header
    _
  $region3: #{fused_forward.1} parent=0 // loop_header
    %s29 = sphi 0, %s33
    %p30 = scmp.ge.s32.totalorder %s29, 4
    %s39 = sphi 0, %s41
    %s42 = sphi 0, %s39
    %s43 = sphi 0, %s42
    %s59 = sphi 0, %s43
    %s63 = sphi 0, %s63
    %s65 = sphi 0, %s63
    %s66 = sphi 0, %s65
    %s80 = sphi 0, %s66
    %s84 = sphi 0, %s84
    %s86 = sphi 0, %s84
    %s87 = sphi 0, %s86
    %s101 = sphi 0, %s87
    %s105 = sphi 0, %s105
    %s107 = sphi 0, %s105
    %s108 = sphi 0, %s107
    %s122 = sphi 0, %s108
    %s126 = sphi 0, %s126
    %s128 = sphi 0, %s126
    %s129 = sphi 0, %s128
    %s143 = sphi 0, %s129
    %s147 = sphi 0, %s147
    %s149 = sphi 0, %s147
    %s150 = sphi 0, %s149
    %s164 = sphi 0, %s150
    %s168 = sphi 0, %s168
    %s170 = sphi 0, %s168
    %s171 = sphi 0, %s170
    %s185 = sphi 0, %s171
    %s189 = sphi 0, %s189
    %s191 = sphi 0, %s189
    %s192 = sphi 0, %s191
    %s206 = sphi 0, %s192
    %s210 = sphi 0, %s210
    %s212 = sphi 0, %s210
    %s213 = sphi 0, %s212
    %s227 = sphi 0, %s213
    %s231 = sphi 0, %s231
    %s233 = sphi 0, %s231
    %s234 = sphi 0, %s233
    %s248 = sphi 0, %s234
    %s252 = sphi 0, %s252
    %s254 = sphi 0, %s252
    %s255 = sphi 0, %s254
    %s269 = sphi 0, %s255
    %s273 = sphi 0, %s273
    %s275 = sphi 0, %s273
    %s276 = sphi 0, %s275
    %s290 = sphi 0, %s276
    %s294 = sphi 0, %s294
    %s296 = sphi 0, %s294
    %s297 = sphi 0, %s296
    %s311 = sphi 0, %s297
    %s315 = sphi 0, %s315
    %s317 = sphi 0, %s315
    %s318 = sphi 0, %s317
    %s332 = sphi 0, %s318
    %s336 = sphi 0, %s336
    %s338 = sphi 0, %s336
    %s339 = sphi 0, %s338
    %s353 = sphi 0, %s339
    %s357 = sphi 0, %s357
    %s359 = sphi 0, %s357
    %s360 = sphi 0, %s359
    %s374 = sphi 0, %s360
    %s378 = sphi 0, %s378
    %s380 = sphi 0, %s378
    %s381 = sphi 0, %s380
    %s395 = sphi 0, %s381
    %s399 = sphi 0, %s399
    %s401 = sphi 0, %s399
    %s402 = sphi 0, %s401
    %s416 = sphi 0, %s402
    %s420 = sphi 0, %s420
    %s422 = sphi 0, %s420
    %s423 = sphi 0, %s422
    %s437 = sphi 0, %s423
    %s441 = sphi 0, %s441
    %s443 = sphi 0, %s441
    %s444 = sphi 0, %s443
    %s458 = sphi 0, %s444
    %s462 = sphi 0, %s462
    %s464 = sphi 0, %s462
    %s465 = sphi 0, %s464
    %s479 = sphi 0, %s465
    %s483 = sphi 0, %s483
    %s485 = sphi 0, %s483
    %s486 = sphi 0, %s485
    %s500 = sphi 0, %s486
    %s504 = sphi 0, %s504
    %s506 = sphi 0, %s504
    %s507 = sphi 0, %s506
    %s521 = sphi 0, %s507
    %s527 = sphi 0, %s529
    %s530 = sphi 0, %s527
    %s531 = sphi 0, %s530
    %s547 = sphi 0, %s531
  $region4: #{fused_forward.1} parent=0 // loop_header_branch
    %32 = sbr.rel (%p30) target = $region8
  $region5: #{fused_forward.1} parent=0 // loop_body
    %s34 = ssub.s32 %s29, 1
    %s35 = ssub.s32 %s29, 2
    %s36 = sadd.s32 %s29, 1
    %s37 = ssub.s32 %s29, %s36
    %p38 = scmp.eq.s32.totalorder %s37, 0
    %s40 = sadd.s32 %s39, 1
    %s41 = scalar_select %p38, %s39, %s40
    %p44 = pneg %p38
    %p45 = scmp.eq.s32.totalorder %s29, 1
    %p46 = por %p44, %p45
    %p47 = scmp.ne.s32.totalorder %s39, %s42
    %p48 = scmp.eq.s32.totalorder %s29, 0
    %p49 = por %p47, %p48
    %p50 = scmp.ne.s32.totalorder %s39, %s42
    %p51 = scmp.eq.s32.totalorder %s34, 1
    %p52 = por %p50, %p51
    %p53 = scmp.ne.s32.totalorder %s42, %s43
    %p54 = scmp.eq.s32.totalorder %s34, 0
    %p55 = por %p53, %p54
    %p56 = scmp.ne.s32.totalorder %s42, %s43
    %p57 = scmp.eq.s32.totalorder %s35, 1
    %p58 = por %p56, %p57
    %p60 = scmp.ne.s32.totalorder %s43, %s59
    %p61 = scmp.eq.s32.totalorder %s35, 0
    %p62 = por %p60, %p61
    %s64 = sadd.s32 %s63, 1
    %p67 = scmp.eq.s32.totalorder %s29, 1
    %p68 = scmp.ne.s32.totalorder %s63, %s65
    %p69 = scmp.eq.s32.totalorder %s29, 0
    %p70 = por %p68, %p69
    %p71 = scmp.ne.s32.totalorder %s63, %s65
    %p72 = scmp.eq.s32.totalorder %s34, 1
    %p73 = por %p71, %p72
    %p74 = scmp.ne.s32.totalorder %s65, %s66
    %p75 = scmp.eq.s32.totalorder %s34, 0
    %p76 = por %p74, %p75
    %p77 = scmp.ne.s32.totalorder %s65, %s66
    %p78 = scmp.eq.s32.totalorder %s35, 1
    %p79 = por %p77, %p78
    %p81 = scmp.ne.s32.totalorder %s66, %s80
    %p82 = scmp.eq.s32.totalorder %s35, 0
    %p83 = por %p81, %p82
    %s85 = sadd.s32 %s84, 1
    %p88 = scmp.eq.s32.totalorder %s29, 1
    %p89 = scmp.ne.s32.totalorder %s84, %s86
    %p90 = scmp.eq.s32.totalorder %s29, 0
    %p91 = por %p89, %p90
    %p92 = scmp.ne.s32.totalorder %s84, %s86
    %p93 = scmp.eq.s32.totalorder %s34, 1
    %p94 = por %p92, %p93
    %p95 = scmp.ne.s32.totalorder %s86, %s87
    %p96 = scmp.eq.s32.totalorder %s34, 0
    %p97 = por %p95, %p96
    %p98 = scmp.ne.s32.totalorder %s86, %s87
    %p99 = scmp.eq.s32.totalorder %s35, 1
    %p100 = por %p98, %p99
    %p102 = scmp.ne.s32.totalorder %s87, %s101
    %p103 = scmp.eq.s32.totalorder %s35, 0
    %p104 = por %p102, %p103
    %s106 = sadd.s32 %s105, 1
    %p109 = scmp.eq.s32.totalorder %s29, 1
    %p110 = scmp.ne.s32.totalorder %s105, %s107
    %p111 = scmp.eq.s32.totalorder %s29, 0
    %p112 = por %p110, %p111
    %p113 = scmp.ne.s32.totalorder %s105, %s107
    %p114 = scmp.eq.s32.totalorder %s34, 1
    %p115 = por %p113, %p114
    %p116 = scmp.ne.s32.totalorder %s107, %s108
    %p117 = scmp.eq.s32.totalorder %s34, 0
    %p118 = por %p116, %p117
    %p119 = scmp.ne.s32.totalorder %s107, %s108
    %p120 = scmp.eq.s32.totalorder %s35, 1
    %p121 = por %p119, %p120
    %p123 = scmp.ne.s32.totalorder %s108, %s122
    %p124 = scmp.eq.s32.totalorder %s35, 0
    %p125 = por %p123, %p124
    %s127 = sadd.s32 %s126, 1
    %p130 = scmp.eq.s32.totalorder %s29, 1
    %p131 = scmp.ne.s32.totalorder %s126, %s128
    %p132 = scmp.eq.s32.totalorder %s29, 0
    %p133 = por %p131, %p132
    %p134 = scmp.ne.s32.totalorder %s126, %s128
    %p135 = scmp.eq.s32.totalorder %s34, 1
    %p136 = por %p134, %p135
    %p137 = scmp.ne.s32.totalorder %s128, %s129
    %p138 = scmp.eq.s32.totalorder %s34, 0
    %p139 = por %p137, %p138
    %p140 = scmp.ne.s32.totalorder %s128, %s129
    %p141 = scmp.eq.s32.totalorder %s35, 1
    %p142 = por %p140, %p141
    %p144 = scmp.ne.s32.totalorder %s129, %s143
    %p145 = scmp.eq.s32.totalorder %s35, 0
    %p146 = por %p144, %p145
    %s148 = sadd.s32 %s147, 1
    %p151 = scmp.eq.s32.totalorder %s29, 1
    %p152 = scmp.ne.s32.totalorder %s147, %s149
    %p153 = scmp.eq.s32.totalorder %s29, 0
    %p154 = por %p152, %p153
    %p155 = scmp.ne.s32.totalorder %s147, %s149
    %p156 = scmp.eq.s32.totalorder %s34, 1
    %p157 = por %p155, %p156
    %p158 = scmp.ne.s32.totalorder %s149, %s150
    %p159 = scmp.eq.s32.totalorder %s34, 0
    %p160 = por %p158, %p159
    %p161 = scmp.ne.s32.totalorder %s149, %s150
    %p162 = scmp.eq.s32.totalorder %s35, 1
    %p163 = por %p161, %p162
    %p165 = scmp.ne.s32.totalorder %s150, %s164
    %p166 = scmp.eq.s32.totalorder %s35, 0
    %p167 = por %p165, %p166
    %s169 = sadd.s32 %s168, 1
    %p172 = scmp.eq.s32.totalorder %s29, 1
    %p173 = scmp.ne.s32.totalorder %s168, %s170
    %p174 = scmp.eq.s32.totalorder %s29, 0
    %p175 = por %p173, %p174
    %p176 = scmp.ne.s32.totalorder %s168, %s170
    %p177 = scmp.eq.s32.totalorder %s34, 1
    %p178 = por %p176, %p177
    %p179 = scmp.ne.s32.totalorder %s170, %s171
    %p180 = scmp.eq.s32.totalorder %s34, 0
    %p181 = por %p179, %p180
    %p182 = scmp.ne.s32.totalorder %s170, %s171
    %p183 = scmp.eq.s32.totalorder %s35, 1
    %p184 = por %p182, %p183
    %p186 = scmp.ne.s32.totalorder %s171, %s185
    %p187 = scmp.eq.s32.totalorder %s35, 0
    %p188 = por %p186, %p187
    %s190 = sadd.s32 %s189, 1
    %p193 = scmp.eq.s32.totalorder %s29, 1
    %p194 = scmp.ne.s32.totalorder %s189, %s191
    %p195 = scmp.eq.s32.totalorder %s29, 0
    %p196 = por %p194, %p195
    %p197 = scmp.ne.s32.totalorder %s189, %s191
    %p198 = scmp.eq.s32.totalorder %s34, 1
    %p199 = por %p197, %p198
    %p200 = scmp.ne.s32.totalorder %s191, %s192
    %p201 = scmp.eq.s32.totalorder %s34, 0
    %p202 = por %p200, %p201
    %p203 = scmp.ne.s32.totalorder %s191, %s192
    %p204 = scmp.eq.s32.totalorder %s35, 1
    %p205 = por %p203, %p204
    %p207 = scmp.ne.s32.totalorder %s192, %s206
    %p208 = scmp.eq.s32.totalorder %s35, 0
    %p209 = por %p207, %p208
    %s211 = sadd.s32 %s210, 1
    %p214 = scmp.eq.s32.totalorder %s29, 1
    %p215 = scmp.ne.s32.totalorder %s210, %s212
    %p216 = scmp.eq.s32.totalorder %s29, 0
    %p217 = por %p215, %p216
    %p218 = scmp.ne.s32.totalorder %s210, %s212
    %p219 = scmp.eq.s32.totalorder %s34, 1
    %p220 = por %p218, %p219
    %p221 = scmp.ne.s32.totalorder %s212, %s213
    %p222 = scmp.eq.s32.totalorder %s34, 0
    %p223 = por %p221, %p222
    %p224 = scmp.ne.s32.totalorder %s212, %s213
    %p225 = scmp.eq.s32.totalorder %s35, 1
    %p226 = por %p224, %p225
    %p228 = scmp.ne.s32.totalorder %s213, %s227
    %p229 = scmp.eq.s32.totalorder %s35, 0
    %p230 = por %p228, %p229
    %s232 = sadd.s32 %s231, 1
    %p235 = scmp.eq.s32.totalorder %s29, 1
    %p236 = scmp.ne.s32.totalorder %s231, %s233
    %p237 = scmp.eq.s32.totalorder %s29, 0
    %p238 = por %p236, %p237
    %p239 = scmp.ne.s32.totalorder %s231, %s233
    %p240 = scmp.eq.s32.totalorder %s34, 1
    %p241 = por %p239, %p240
    %p242 = scmp.ne.s32.totalorder %s233, %s234
    %p243 = scmp.eq.s32.totalorder %s34, 0
    %p244 = por %p242, %p243
    %p245 = scmp.ne.s32.totalorder %s233, %s234
    %p246 = scmp.eq.s32.totalorder %s35, 1
    %p247 = por %p245, %p246
    %p249 = scmp.ne.s32.totalorder %s234, %s248
    %p250 = scmp.eq.s32.totalorder %s35, 0
    %p251 = por %p249, %p250
    %s253 = sadd.s32 %s252, 1
    %p256 = scmp.eq.s32.totalorder %s29, 1
    %p257 = scmp.ne.s32.totalorder %s252, %s254
    %p258 = scmp.eq.s32.totalorder %s29, 0
    %p259 = por %p257, %p258
    %p260 = scmp.ne.s32.totalorder %s252, %s254
    %p261 = scmp.eq.s32.totalorder %s34, 1
    %p262 = por %p260, %p261
    %p263 = scmp.ne.s32.totalorder %s254, %s255
    %p264 = scmp.eq.s32.totalorder %s34, 0
    %p265 = por %p263, %p264
    %p266 = scmp.ne.s32.totalorder %s254, %s255
    %p267 = scmp.eq.s32.totalorder %s35, 1
    %p268 = por %p266, %p267
    %p270 = scmp.ne.s32.totalorder %s255, %s269
    %p271 = scmp.eq.s32.totalorder %s35, 0
    %p272 = por %p270, %p271
    %s274 = sadd.s32 %s273, 1
    %p277 = scmp.eq.s32.totalorder %s29, 1
    %p278 = scmp.ne.s32.totalorder %s273, %s275
    %p279 = scmp.eq.s32.totalorder %s29, 0
    %p280 = por %p278, %p279
    %p281 = scmp.ne.s32.totalorder %s273, %s275
    %p282 = scmp.eq.s32.totalorder %s34, 1
    %p283 = por %p281, %p282
    %p284 = scmp.ne.s32.totalorder %s275, %s276
    %p285 = scmp.eq.s32.totalorder %s34, 0
    %p286 = por %p284, %p285
    %p287 = scmp.ne.s32.totalorder %s275, %s276
    %p288 = scmp.eq.s32.totalorder %s35, 1
    %p289 = por %p287, %p288
    %p291 = scmp.ne.s32.totalorder %s276, %s290
    %p292 = scmp.eq.s32.totalorder %s35, 0
    %p293 = por %p291, %p292
    %s295 = sadd.s32 %s294, 1
    %p298 = scmp.eq.s32.totalorder %s29, 1
    %p299 = scmp.ne.s32.totalorder %s294, %s296
    %p300 = scmp.eq.s32.totalorder %s29, 0
    %p301 = por %p299, %p300
    %p302 = scmp.ne.s32.totalorder %s294, %s296
    %p303 = scmp.eq.s32.totalorder %s34, 1
    %p304 = por %p302, %p303
    %p305 = scmp.ne.s32.totalorder %s296, %s297
    %p306 = scmp.eq.s32.totalorder %s34, 0
    %p307 = por %p305, %p306
    %p308 = scmp.ne.s32.totalorder %s296, %s297
    %p309 = scmp.eq.s32.totalorder %s35, 1
    %p310 = por %p308, %p309
    %p312 = scmp.ne.s32.totalorder %s297, %s311
    %p313 = scmp.eq.s32.totalorder %s35, 0
    %p314 = por %p312, %p313
    %s316 = sadd.s32 %s315, 1
    %p319 = scmp.eq.s32.totalorder %s29, 1
    %p320 = scmp.ne.s32.totalorder %s315, %s317
    %p321 = scmp.eq.s32.totalorder %s29, 0
    %p322 = por %p320, %p321
    %p323 = scmp.ne.s32.totalorder %s315, %s317
    %p324 = scmp.eq.s32.totalorder %s34, 1
    %p325 = por %p323, %p324
    %p326 = scmp.ne.s32.totalorder %s317, %s318
    %p327 = scmp.eq.s32.totalorder %s34, 0
    %p328 = por %p326, %p327
    %p329 = scmp.ne.s32.totalorder %s317, %s318
    %p330 = scmp.eq.s32.totalorder %s35, 1
    %p331 = por %p329, %p330
    %p333 = scmp.ne.s32.totalorder %s318, %s332
    %p334 = scmp.eq.s32.totalorder %s35, 0
    %p335 = por %p333, %p334
    %s337 = sadd.s32 %s336, 1
    %p340 = scmp.eq.s32.totalorder %s29, 1
    %p341 = scmp.ne.s32.totalorder %s336, %s338
    %p342 = scmp.eq.s32.totalorder %s29, 0
    %p343 = por %p341, %p342
    %p344 = scmp.ne.s32.totalorder %s336, %s338
    %p345 = scmp.eq.s32.totalorder %s34, 1
    %p346 = por %p344, %p345
    %p347 = scmp.ne.s32.totalorder %s338, %s339
    %p348 = scmp.eq.s32.totalorder %s34, 0
    %p349 = por %p347, %p348
    %p350 = scmp.ne.s32.totalorder %s338, %s339
    %p351 = scmp.eq.s32.totalorder %s35, 1
    %p352 = por %p350, %p351
    %p354 = scmp.ne.s32.totalorder %s339, %s353
    %p355 = scmp.eq.s32.totalorder %s35, 0
    %p356 = por %p354, %p355
    %s358 = sadd.s32 %s357, 1
    %p361 = scmp.eq.s32.totalorder %s29, 1
    %p362 = scmp.ne.s32.totalorder %s357, %s359
    %p363 = scmp.eq.s32.totalorder %s29, 0
    %p364 = por %p362, %p363
    %p365 = scmp.ne.s32.totalorder %s357, %s359
    %p366 = scmp.eq.s32.totalorder %s34, 1
    %p367 = por %p365, %p366
    %p368 = scmp.ne.s32.totalorder %s359, %s360
    %p369 = scmp.eq.s32.totalorder %s34, 0
    %p370 = por %p368, %p369
    %p371 = scmp.ne.s32.totalorder %s359, %s360
    %p372 = scmp.eq.s32.totalorder %s35, 1
    %p373 = por %p371, %p372
    %p375 = scmp.ne.s32.totalorder %s360, %s374
    %p376 = scmp.eq.s32.totalorder %s35, 0
    %p377 = por %p375, %p376
    %s379 = sadd.s32 %s378, 1
    %p382 = scmp.eq.s32.totalorder %s29, 1
    %p383 = scmp.ne.s32.totalorder %s378, %s380
    %p384 = scmp.eq.s32.totalorder %s29, 0
    %p385 = por %p383, %p384
    %p386 = scmp.ne.s32.totalorder %s378, %s380
    %p387 = scmp.eq.s32.totalorder %s34, 1
    %p388 = por %p386, %p387
    %p389 = scmp.ne.s32.totalorder %s380, %s381
    %p390 = scmp.eq.s32.totalorder %s34, 0
    %p391 = por %p389, %p390
    %p392 = scmp.ne.s32.totalorder %s380, %s381
    %p393 = scmp.eq.s32.totalorder %s35, 1
    %p394 = por %p392, %p393
    %p396 = scmp.ne.s32.totalorder %s381, %s395
    %p397 = scmp.eq.s32.totalorder %s35, 0
    %p398 = por %p396, %p397
    %s400 = sadd.s32 %s399, 1
    %p403 = scmp.eq.s32.totalorder %s29, 1
    %p404 = scmp.ne.s32.totalorder %s399, %s401
    %p405 = scmp.eq.s32.totalorder %s29, 0
    %p406 = por %p404, %p405
    %p407 = scmp.ne.s32.totalorder %s399, %s401
    %p408 = scmp.eq.s32.totalorder %s34, 1
    %p409 = por %p407, %p408
    %p410 = scmp.ne.s32.totalorder %s401, %s402
    %p411 = scmp.eq.s32.totalorder %s34, 0
    %p412 = por %p410, %p411
    %p413 = scmp.ne.s32.totalorder %s401, %s402
    %p414 = scmp.eq.s32.totalorder %s35, 1
    %p415 = por %p413, %p414
    %p417 = scmp.ne.s32.totalorder %s402, %s416
    %p418 = scmp.eq.s32.totalorder %s35, 0
    %p419 = por %p417, %p418
    %s421 = sadd.s32 %s420, 1
    %p424 = scmp.eq.s32.totalorder %s29, 1
    %p425 = scmp.ne.s32.totalorder %s420, %s422
    %p426 = scmp.eq.s32.totalorder %s29, 0
    %p427 = por %p425, %p426
    %p428 = scmp.ne.s32.totalorder %s420, %s422
    %p429 = scmp.eq.s32.totalorder %s34, 1
    %p430 = por %p428, %p429
    %p431 = scmp.ne.s32.totalorder %s422, %s423
    %p432 = scmp.eq.s32.totalorder %s34, 0
    %p433 = por %p431, %p432
    %p434 = scmp.ne.s32.totalorder %s422, %s423
    %p435 = scmp.eq.s32.totalorder %s35, 1
    %p436 = por %p434, %p435
    %p438 = scmp.ne.s32.totalorder %s423, %s437
    %p439 = scmp.eq.s32.totalorder %s35, 0
    %p440 = por %p438, %p439
    %s442 = sadd.s32 %s441, 1
    %p445 = scmp.eq.s32.totalorder %s29, 1
    %p446 = scmp.ne.s32.totalorder %s441, %s443
    %p447 = scmp.eq.s32.totalorder %s29, 0
    %p448 = por %p446, %p447
    %p449 = scmp.ne.s32.totalorder %s441, %s443
    %p450 = scmp.eq.s32.totalorder %s34, 1
    %p451 = por %p449, %p450
    %p452 = scmp.ne.s32.totalorder %s443, %s444
    %p453 = scmp.eq.s32.totalorder %s34, 0
    %p454 = por %p452, %p453
    %p455 = scmp.ne.s32.totalorder %s443, %s444
    %p456 = scmp.eq.s32.totalorder %s35, 1
    %p457 = por %p455, %p456
    %p459 = scmp.ne.s32.totalorder %s444, %s458
    %p460 = scmp.eq.s32.totalorder %s35, 0
    %p461 = por %p459, %p460
    %s463 = sadd.s32 %s462, 1
    %p466 = scmp.eq.s32.totalorder %s29, 1
    %p467 = scmp.ne.s32.totalorder %s462, %s464
    %p468 = scmp.eq.s32.totalorder %s29, 0
    %p469 = por %p467, %p468
    %p470 = scmp.ne.s32.totalorder %s462, %s464
    %p471 = scmp.eq.s32.totalorder %s34, 1
    %p472 = por %p470, %p471
    %p473 = scmp.ne.s32.totalorder %s464, %s465
    %p474 = scmp.eq.s32.totalorder %s34, 0
    %p475 = por %p473, %p474
    %p476 = scmp.ne.s32.totalorder %s464, %s465
    %p477 = scmp.eq.s32.totalorder %s35, 1
    %p478 = por %p476, %p477
    %p480 = scmp.ne.s32.totalorder %s465, %s479
    %p481 = scmp.eq.s32.totalorder %s35, 0
    %p482 = por %p480, %p481
    %s484 = sadd.s32 %s483, 1
    %p487 = scmp.eq.s32.totalorder %s29, 1
    %p488 = scmp.ne.s32.totalorder %s483, %s485
    %p489 = scmp.eq.s32.totalorder %s29, 0
    %p490 = por %p488, %p489
    %p491 = scmp.ne.s32.totalorder %s483, %s485
    %p492 = scmp.eq.s32.totalorder %s34, 1
    %p493 = por %p491, %p492
    %p494 = scmp.ne.s32.totalorder %s485, %s486
    %p495 = scmp.eq.s32.totalorder %s34, 0
    %p496 = por %p494, %p495
    %p497 = scmp.ne.s32.totalorder %s485, %s486
    %p498 = scmp.eq.s32.totalorder %s35, 1
    %p499 = por %p497, %p498
    %p501 = scmp.ne.s32.totalorder %s486, %s500
    %p502 = scmp.eq.s32.totalorder %s35, 0
    %p503 = por %p501, %p502
    %s505 = sadd.s32 %s504, 1
    %p508 = scmp.eq.s32.totalorder %s29, 1
    %p509 = scmp.ne.s32.totalorder %s504, %s506
    %p510 = scmp.eq.s32.totalorder %s29, 0
    %p511 = por %p509, %p510
    %p512 = scmp.ne.s32.totalorder %s504, %s506
    %p513 = scmp.eq.s32.totalorder %s34, 1
    %p514 = por %p512, %p513
    %p515 = scmp.ne.s32.totalorder %s506, %s507
    %p516 = scmp.eq.s32.totalorder %s34, 0
    %p517 = por %p515, %p516
    %p518 = scmp.ne.s32.totalorder %s506, %s507
    %p519 = scmp.eq.s32.totalorder %s35, 1
    %p520 = por %p518, %p519
    %p522 = scmp.ne.s32.totalorder %s507, %s521
    %p523 = scmp.eq.s32.totalorder %s35, 0
    %p524 = por %p522, %p523
    %s525 = ssub.s32 %s29, %s36
    %p526 = scmp.eq.s32.totalorder %s525, 0
    %s528 = sadd.s32 %s527, 1
    %s529 = scalar_select %p526, %s527, %s528
    %p532 = pneg %p526
    %p533 = scmp.eq.s32.totalorder %s29, 1
    %p534 = por %p532, %p533
    %p535 = scmp.ne.s32.totalorder %s527, %s530
    %p536 = scmp.eq.s32.totalorder %s29, 0
    %p537 = por %p535, %p536
    %p538 = scmp.ne.s32.totalorder %s527, %s530
    %p539 = scmp.eq.s32.totalorder %s34, 1
    %p540 = por %p538, %p539
    %p541 = scmp.ne.s32.totalorder %s530, %s531
    %p542 = scmp.eq.s32.totalorder %s34, 0
    %p543 = por %p541, %p542
    %p544 = scmp.ne.s32.totalorder %s530, %s531
    %p545 = scmp.eq.s32.totalorder %s35, 1
    %p546 = por %p544, %p545
    %p548 = scmp.ne.s32.totalorder %s531, %s547
    %p549 = scmp.eq.s32.totalorder %s35, 0
    %p550 = por %p548, %p549
    %p551 = scmp.le.s32.totalorder 1, %s29
    %p552 = scmp.lt.s32.totalorder %s29, 3
    %p553 = pnand %p551, %p552
    %p554 = pneg %p553
    // Predicated region
    $region9: #{fused_forward.1} parent=5 // pred_check
      _
    $region10: #{fused_forward.1} parent=5 // pred_check_branch
      %556 = sbr.rel (%p553) target = $region12
    $region11: #{fused_forward.1} parent=5 // pred_region
      %s557 = ssub.s32 %s29, 1
      // Predicated region
      $region13: #{fused_forward.1} parent=11 // pred_check
        %p558 = pneg %p76
      $region14: #{fused_forward.1} parent=11 // pred_check_branch
        %560 = sbr.rel (%p558) target = $region16
      $region15: #{fused_forward.1} parent=11 // pred_region
        _
      $region16: #{fused_forward.1} parent=11 // pred_fallthru
        _
      // Predicated region
      $region17: #{fused_forward.1} parent=11 // pred_check
        %p561 = pneg %p97
      $region18: #{fused_forward.1} parent=11 // pred_check_branch
        %563 = sbr.rel (%p561) target = $region20
      $region19: #{fused_forward.1} parent=11 // pred_region
        _
      $region20: #{fused_forward.1} parent=11 // pred_fallthru
        _
      // Predicated region
      $region21: #{fused_forward.1} parent=11 // pred_check
        %p564 = pneg %p118
      $region22: #{fused_forward.1} parent=11 // pred_check_branch
        %566 = sbr.rel (%p564) target = $region24
      $region23: #{fused_forward.1} parent=11 // pred_region
        _
      $region24: #{fused_forward.1} parent=11 // pred_fallthru
        _
      // Predicated region
      $region25: #{fused_forward.1} parent=11 // pred_check
        %p567 = pneg %p139
      $region26: #{fused_forward.1} parent=11 // pred_check_branch
        %569 = sbr.rel (%p567) target = $region28
      $region27: #{fused_forward.1} parent=11 // pred_region
        _
      $region28: #{fused_forward.1} parent=11 // pred_fallthru
        _
      // Predicated region
      $region29: #{fused_forward.1} parent=11 // pred_check
        %p570 = pneg %p160
      $region30: #{fused_forward.1} parent=11 // pred_check_branch
        %572 = sbr.rel (%p570) target = $region32
      $region31: #{fused_forward.1} parent=11 // pred_region
        _
      $region32: #{fused_forward.1} parent=11 // pred_fallthru
        _
      // Predicated region
      $region33: #{fused_forward.1} parent=11 // pred_check
        %p573 = pneg %p181
      $region34: #{fused_forward.1} parent=11 // pred_check_branch
        %575 = sbr.rel (%p573) target = $region36
      $region35: #{fused_forward.1} parent=11 // pred_region
        _
      $region36: #{fused_forward.1} parent=11 // pred_fallthru
        _
      // Predicated region
      $region37: #{fused_forward.1} parent=11 // pred_check
        %p576 = pneg %p202
      $region38: #{fused_forward.1} parent=11 // pred_check_branch
        %578 = sbr.rel (%p576) target = $region40
      $region39: #{fused_forward.1} parent=11 // pred_region
        _
      $region40: #{fused_forward.1} parent=11 // pred_fallthru
        _
      // Predicated region
      $region41: #{fused_forward.1} parent=11 // pred_check
        %p579 = pneg %p223
      $region42: #{fused_forward.1} parent=11 // pred_check_branch
        %581 = sbr.rel (%p579) target = $region44
      $region43: #{fused_forward.1} parent=11 // pred_region
        _
      $region44: #{fused_forward.1} parent=11 // pred_fallthru
        _
      // Predicated region
      $region45: #{fused_forward.1} parent=11 // pred_check
        %p582 = pneg %p244
      $region46: #{fused_forward.1} parent=11 // pred_check_branch
        %584 = sbr.rel (%p582) target = $region48
      $region47: #{fused_forward.1} parent=11 // pred_region
        _
      $region48: #{fused_forward.1} parent=11 // pred_fallthru
        _
      // Predicated region
      $region49: #{fused_forward.1} parent=11 // pred_check
        %p585 = pneg %p265
      $region50: #{fused_forward.1} parent=11 // pred_check_branch
        %587 = sbr.rel (%p585) target = $region52
      $region51: #{fused_forward.1} parent=11 // pred_region
        _
      $region52: #{fused_forward.1} parent=11 // pred_fallthru
        _
      // Predicated region
      $region53: #{fused_forward.1} parent=11 // pred_check
        %p588 = pneg %p286
      $region54: #{fused_forward.1} parent=11 // pred_check_branch
        %590 = sbr.rel (%p588) target = $region56
      $region55: #{fused_forward.1} parent=11 // pred_region
        _
      $region56: #{fused_forward.1} parent=11 // pred_fallthru
        _
      // Predicated region
      $region57: #{fused_forward.1} parent=11 // pred_check
        %p591 = pneg %p307
      $region58: #{fused_forward.1} parent=11 // pred_check_branch
        %593 = sbr.rel (%p591) target = $region60
      $region59: #{fused_forward.1} parent=11 // pred_region
        _
      $region60: #{fused_forward.1} parent=11 // pred_fallthru
        _
      // Predicated region
      $region61: #{fused_forward.1} parent=11 // pred_check
        %p594 = pneg %p328
      $region62: #{fused_forward.1} parent=11 // pred_check_branch
        %596 = sbr.rel (%p594) target = $region64
      $region63: #{fused_forward.1} parent=11 // pred_region
        _
      $region64: #{fused_forward.1} parent=11 // pred_fallthru
        _
      // Predicated region
      $region65: #{fused_forward.1} parent=11 // pred_check
        %p597 = pneg %p349
      $region66: #{fused_forward.1} parent=11 // pred_check_branch
        %599 = sbr.rel (%p597) target = $region68
      $region67: #{fused_forward.1} parent=11 // pred_region
        _
      $region68: #{fused_forward.1} parent=11 // pred_fallthru
        _
      // Predicated region
      $region69: #{fused_forward.1} parent=11 // pred_check
        %p600 = pneg %p370
      $region70: #{fused_forward.1} parent=11 // pred_check_branch
        %602 = sbr.rel (%p600) target = $region72
      $region71: #{fused_forward.1} parent=11 // pred_region
        _
      $region72: #{fused_forward.1} parent=11 // pred_fallthru
        _
      // Predicated region
      $region73: #{fused_forward.1} parent=11 // pred_check
        %p603 = pneg %p391
      $region74: #{fused_forward.1} parent=11 // pred_check_branch
        %605 = sbr.rel (%p603) target = $region76
      $region75: #{fused_forward.1} parent=11 // pred_region
        _
      $region76: #{fused_forward.1} parent=11 // pred_fallthru
        _
      // Predicated region
      $region77: #{fused_forward.1} parent=11 // pred_check
        %p606 = pneg %p412
      $region78: #{fused_forward.1} parent=11 // pred_check_branch
        %608 = sbr.rel (%p606) target = $region80
      $region79: #{fused_forward.1} parent=11 // pred_region
        _
      $region80: #{fused_forward.1} parent=11 // pred_fallthru
        _
      // Predicated region
      $region81: #{fused_forward.1} parent=11 // pred_check
        %p609 = pneg %p433
      $region82: #{fused_forward.1} parent=11 // pred_check_branch
        %611 = sbr.rel (%p609) target = $region84
      $region83: #{fused_forward.1} parent=11 // pred_region
        _
      $region84: #{fused_forward.1} parent=11 // pred_fallthru
        _
      // Predicated region
      $region85: #{fused_forward.1} parent=11 // pred_check
        %p612 = pneg %p454
      $region86: #{fused_forward.1} parent=11 // pred_check_branch
        %614 = sbr.rel (%p612) target = $region88
      $region87: #{fused_forward.1} parent=11 // pred_region
        _
      $region88: #{fused_forward.1} parent=11 // pred_fallthru
        _
      // Predicated region
      $region89: #{fused_forward.1} parent=11 // pred_check
        %p615 = pneg %p475
      $region90: #{fused_forward.1} parent=11 // pred_check_branch
        %617 = sbr.rel (%p615) target = $region92
      $region91: #{fused_forward.1} parent=11 // pred_region
        _
      $region92: #{fused_forward.1} parent=11 // pred_fallthru
        _
      // Predicated region
      $region93: #{fused_forward.1} parent=11 // pred_check
        %p618 = pneg %p496
      $region94: #{fused_forward.1} parent=11 // pred_check_branch
        %620 = sbr.rel (%p618) target = $region96
      $region95: #{fused_forward.1} parent=11 // pred_region
        _
      $region96: #{fused_forward.1} parent=11 // pred_fallthru
        _
      // Predicated region
      $region97: #{fused_forward.1} parent=11 // pred_check
        %p621 = pneg %p517
      $region98: #{fused_forward.1} parent=11 // pred_check_branch
        %623 = sbr.rel (%p621) target = $region100
      $region99: #{fused_forward.1} parent=11 // pred_region
        _
      $region100: #{fused_forward.1} parent=11 // pred_fallthru
        _
    $region12: #{fused_forward.1} parent=5 // pred_fallthru
      _
    %p624 = scmp.lt.s32.totalorder %s29, 2
    // Predicated region
    $region101: #{fused_forward.1} parent=5 // pred_check
      %p625 = pneg %p624
    $region102: #{fused_forward.1} parent=5 // pred_check_branch
      %627 = sbr.rel (%p625) target = $region104
    $region103: #{fused_forward.1} parent=5 // pred_region
      // Predicated region
      $region105: #{fused_forward.1} parent=103 // pred_check
        %p628 = pneg %p49
      $region106: #{fused_forward.1} parent=103 // pred_check_branch
        %630 = sbr.rel (%p628) target = $region108
      $region107: #{fused_forward.1} parent=103 // pred_region
        %p631 = scmp.lt.s32.totalorder %s29, 1
        %s632 = scalar_select %p631, %s29, 1
        %s633 = smul.addr %s632, 2
        %s634 = smul.addr %s633, 8
        %s635 = scalar_lea.vmem %s0, %s634
      $region108: #{fused_forward.1} parent=103 // pred_fallthru
        _
    $region104: #{fused_forward.1} parent=5 // pred_fallthru
      _
    %p636 = scmp.le.s32.totalorder 1, %s29
    %p637 = scmp.lt.s32.totalorder %s29, 3
    %p638 = pnand %p636, %p637
    %p639 = pneg %p638
    // Predicated region
    $region109: #{fused_forward.1} parent=5 // pred_check
      _
    $region110: #{fused_forward.1} parent=5 // pred_check_branch
      %641 = sbr.rel (%p638) target = $region112
    $region111: #{fused_forward.1} parent=5 // pred_region
      %s642 = ssub.s32 %s29, 1
      %p643 = scmp.lt.s32.totalorder %s34, 1
      %s644 = scalar_select %p643, %s34, 1
      %s645 = smul.addr %s644, 2
      %s646 = smul.addr %s645, 8
      %s647 = scalar_lea.vmem %s0, %s646
      %p648 = pneg %p55
      %p649 = pneg %p52
      %p650 = pneg %p76
      %p651 = pneg %p73
      %p652 = pneg %p97
      %p653 = pneg %p94
      %p654 = pneg %p118
      %p655 = pneg %p115
      %p656 = pneg %p139
      %p657 = pneg %p136
      %p658 = pneg %p160
      %p659 = pneg %p157
      %p660 = pneg %p181
      %p661 = pneg %p178
      %p662 = pneg %p202
      %p663 = pneg %p199
      %p664 = pneg %p223
      %p665 = pneg %p220
      %p666 = pneg %p244
      %p667 = pneg %p241
      %p668 = pneg %p265
      %p669 = pneg %p262
      %p670 = pneg %p286
      %p671 = pneg %p283
      %p672 = pneg %p307
      %p673 = pneg %p304
      %p674 = pneg %p328
      %p675 = pneg %p325
      %p676 = pneg %p349
      %p677 = pneg %p346
      %p678 = pneg %p370
      %p679 = pneg %p367
      %p680 = pneg %p391
      %p681 = pneg %p388
      %p682 = pneg %p412
      %p683 = pneg %p409
      %p684 = pneg %p433
      %p685 = pneg %p430
      %p686 = pneg %p454
      %p687 = pneg %p451
      %p688 = pneg %p475
      %p689 = pneg %p472
      %p690 = pneg %p496
      %p691 = pneg %p493
      %p692 = pneg %p517
      %p693 = pneg %p514
      %p694 = pneg %p543
      %p695 = pneg %p540
      %p696 = scmp.lt.s32.totalorder %s34, 1
      %s697 = scalar_select %p696, %s34, 1
      %s698 = smul.addr %s697, 2
      %s699 = smul.addr %s698, 8
      %s700 = scalar_lea.vmem %s23, %s699
      %p701 = scmp.lt.s32.totalorder %s34, 1
      %s702 = scalar_select %p701, %s34, 1
      %s703 = smul.addr %s702, 2
      %s704 = smul.addr %s703, 8
      %s705 = scalar_lea.vmem %s0, %s704
      %p706 = scmp.lt.s32.totalorder %s34, 1
      %s707 = scalar_select %p706, %s34, 1
      %s708 = smul.addr %s707, 2
      %s709 = smul.addr %s708, 8
      %s710 = scalar_lea.vmem %s23, %s709
      %v711 = vld [vmem:[%s705] sm:$0xff]
      %v712 = vld [vmem:[%s705 + $0x8] sm:$0xff]
      %v713 = vld [vmem:[%s3] sm:$0x1]
      %v714 = vld [vmem:[%s1] sm:$0x7f]
      %vm715 = vcmask 130048
      %v717 = vsel %vm715, %v714, 0
      %719 = vmatprep.subr.mxu0 0.0
      %720 = vmatpush1.msra.mxu0 0.0
      %721 = vmatprep.subr.mxu0 0.0
      %722 = vmatpush1.msra.mxu0 0.0
      %723 = vmatprep.subr.mxu0 0.0
      %724 = vmatpush1.msra.mxu0 0.0
      %725 = vmatprep.subr.mxu0 0.0
      %726 = vmatpush1.msra.mxu0 0.0
      %727 = vmatprep.subr.mxu0 0.0
      %728 = vmatpush1.msra.mxu0 0.0
      %729 = vmatprep.subr.mxu0 0.0
      %730 = vmatpush1.msra.mxu0 0.0
      %731 = vmatprep.subr.mxu0 0.0
      %732 = vmatpush1.msra.mxu0 0.0
      %733 = vmatprep.subr.mxu0 0.0
      %734 = vmatpush1.msra.mxu0 0.0
      %735 = vmatprep.subr.mxu0 0.0
      %736 = vmatpush1.msra.mxu0 0.0
      %737 = vmatprep.subr.mxu0 0.0
      %738 = vmatpush1.msra.mxu0 0.0
      %739 = vmatprep.subr.mxu0 0.0
      %740 = vmatpush1.msra.mxu0 0.0
      %741 = vmatprep.subr.mxu0 0.0
      %742 = vmatpush1.msra.mxu0 0.0
      %743 = vmatprep.subr.mxu0 0.0
      %744 = vmatpush1.msra.mxu0 0.0
      %745 = vmatprep.subr.mxu0 0.0
      %746 = vmatpush1.msra.mxu0 0.0
      %747 = vmatprep.subr.mxu0 0.0
      %748 = vmatpush1.msra.mxu0 %v712
      %749 = vmatprep.subr.mxu0 0.0
      %750 = vmatpush1.msra.mxu0 %v711
      %751 = vmatprep.subr.mxu0 0.0
      %752 = vmatpush2.msra.mxu0 0.0
      %753 = vmatprep.subr.mxu0 0.0
      %754 = vmatpush2.msra.mxu0 0.0
      %755 = vmatprep.subr.mxu0 0.0
      %756 = vmatpush2.msra.mxu0 0.0
      %757 = vmatprep.subr.mxu0 0.0
      %758 = vmatpush2.msra.mxu0 0.0
      %759 = vmatprep.subr.mxu0 0.0
      %760 = vmatpush2.msra.mxu0 0.0
      %761 = vmatprep.subr.mxu0 0.0
      %762 = vmatpush2.msra.mxu0 0.0
      %763 = vmatprep.subr.mxu0 0.0
      %764 = vmatpush2.msra.mxu0 0.0
      %765 = vmatprep.subr.mxu0 0.0
      %766 = vmatpush2.msra.mxu0 0.0
      %767 = vmatprep.subr.mxu0 0.0
      %768 = vmatpush2.msra.mxu0 0.0
      %769 = vmatprep.subr.mxu0 0.0
      %770 = vmatpush2.msra.mxu0 0.0
      %771 = vmatprep.subr.mxu0 0.0
      %772 = vmatpush2.msra.mxu0 0.0
      %773 = vmatprep.subr.mxu0 0.0
      %774 = vmatpush2.msra.mxu0 0.0
      %775 = vmatprep.subr.mxu0 0.0
      %776 = vmatpush2.msra.mxu0 0.0
      %777 = vmatprep.subr.mxu0 0.0
      %778 = vmatpush2.msra.mxu0 0.0
      %779 = vmatprep.subr.mxu0 0.0
      %780 = vmatpush2.msra.mxu0 0.0
      %781 = vmatprep.subr.mxu0 0.0
      %782 = vmatpush2.msra.mxu0 0.0
      %783 = vmatprep.mubr.f32.mxu0 0.0
      %784 = vmatmul.mubr.f32.gmra.mxu0 %v717
      %v785 = vpop.f32.mrf.mxu0
      %v786 = vadd.f32 0.0, %v785
      %v787 = vpop.f32.mrf.mxu0
      %788 = vdwg.mxu0
      %v789 = vld [vmem:[%s2] sm:$0xf]
      %vm790 = vcmask 31744
      %v792 = vsel %vm790, %v786, 0
      %vm794 = vcmask 1043456
      %v796 = vsel %vm794, %v789, 0
      %798 = vmatprep.subr.mxu0 0.0
      %799 = vmatpush1.msra.mxu0 0.0
      %800 = vmatprep.subr.mxu0 0.0
      %801 = vmatpush1.msra.mxu0 0.0
      %802 = vmatprep.subr.mxu0 0.0
      %803 = vmatpush1.msra.mxu0 0.0
      %804 = vmatprep.subr.mxu0 0.0
      %805 = vmatpush1.msra.mxu0 0.0
      %806 = vmatprep.subr.mxu0 0.0
      %807 = vmatpush1.msra.mxu0 0.0
      %808 = vmatprep.subr.mxu0 0.0
      %809 = vmatpush1.msra.mxu0 0.0
      %810 = vmatprep.subr.mxu0 0.0
      %811 = vmatpush1.msra.mxu0 0.0
      %812 = vmatprep.subr.mxu0 0.0
      %813 = vmatpush1.msra.mxu0 0.0
      %814 = vmatprep.subr.mxu0 0.0
      %815 = vmatpush1.msra.mxu0 0.0
      %816 = vmatprep.subr.mxu0 0.0
      %817 = vmatpush1.msra.mxu0 0.0
      %818 = vmatprep.subr.mxu0 0.0
      %819 = vmatpush1.msra.mxu0 0.0
      %820 = vmatprep.subr.mxu0 0.0
      %821 = vmatpush1.msra.mxu0 0.0
      %822 = vmatprep.subr.mxu0 0.0
      %823 = vmatpush1.msra.mxu0 0.0
      %824 = vmatprep.subr.mxu0 0.0
      %825 = vmatpush1.msra.mxu0 0.0
      %826 = vmatprep.subr.mxu0 0.0
      %827 = vmatpush1.msra.mxu0 0.0
      %828 = vmatprep.subr.mxu0 0.0
      %829 = vmatpush1.msra.mxu0 %v796
      %830 = vmatprep.subr.mxu0 0.0
      %831 = vmatpush2.msra.mxu0 0.0
      %832 = vmatprep.subr.mxu0 0.0
      %833 = vmatpush2.msra.mxu0 0.0
      %834 = vmatprep.subr.mxu0 0.0
      %835 = vmatpush2.msra.mxu0 0.0
      %836 = vmatprep.subr.mxu0 0.0
      %837 = vmatpush2.msra.mxu0 0.0
      %838 = vmatprep.subr.mxu0 0.0
      %839 = vmatpush2.msra.mxu0 0.0
      %840 = vmatprep.subr.mxu0 0.0
      %841 = vmatpush2.msra.mxu0 0.0
      %842 = vmatprep.subr.mxu0 0.0
      %843 = vmatpush2.msra.mxu0 0.0
      %844 = vmatprep.subr.mxu0 0.0
      %845 = vmatpush2.msra.mxu0 0.0
      %846 = vmatprep.subr.mxu0 0.0
      %847 = vmatpush2.msra.mxu0 0.0
      %848 = vmatprep.subr.mxu0 0.0
      %849 = vmatpush2.msra.mxu0 0.0
      %850 = vmatprep.subr.mxu0 0.0
      %851 = vmatpush2.msra.mxu0 0.0
      %852 = vmatprep.subr.mxu0 0.0
      %853 = vmatpush2.msra.mxu0 0.0
      %854 = vmatprep.subr.mxu0 0.0
      %855 = vmatpush2.msra.mxu0 0.0
      %856 = vmatprep.subr.mxu0 0.0
      %857 = vmatpush2.msra.mxu0 0.0
      %858 = vmatprep.subr.mxu0 0.0
      %859 = vmatpush2.msra.mxu0 0.0
      %860 = vmatprep.subr.mxu0 0.0
      %861 = vmatpush2.msra.mxu0 0.0
      %862 = vmatprep.mubr.f32.mxu0 0.0
      %863 = vmatmul.mubr.f32.gmra.mxu0 %v792
      %v864 = vpop.f32.mrf.mxu0
      %v865 = vadd.f32 0.0, %v864
      %v866 = vpop.f32.mrf.mxu0
      %867 = vdwg.mxu0
      %v869 = vlaneseq
      %v870 = vshrl.u32 %v869, 7
      %v871 = vsub.s32 0, %v870
      %v872 = vrot.slane %v713, %v871
      %v874 = vadd.f32 %v872, %v865
      %s875 = scalar_lea.vmem %s1, 8
      %v876 = vld [vmem:[%s875] sm:$0x7f]
      %v878 = vsel %vm715, %v876, 0
      %880 = vmatprep.subr.mxu0 0.0
      %881 = vmatpush1.msra.mxu0 0.0
      %882 = vmatprep.subr.mxu0 0.0
      %883 = vmatpush1.msra.mxu0 0.0
      %884 = vmatprep.subr.mxu0 0.0
      %885 = vmatpush1.msra.mxu0 0.0
      %886 = vmatprep.subr.mxu0 0.0
      %887 = vmatpush1.msra.mxu0 0.0
      %888 = vmatprep.subr.mxu0 0.0
      %889 = vmatpush1.msra.mxu0 0.0
      %890 = vmatprep.subr.mxu0 0.0
      %891 = vmatpush1.msra.mxu0 0.0
      %892 = vmatprep.subr.mxu0 0.0
      %893 = vmatpush1.msra.mxu0 0.0
      %894 = vmatprep.subr.mxu0 0.0
      %895 = vmatpush1.msra.mxu0 0.0
      %896 = vmatprep.subr.mxu0 0.0
      %897 = vmatpush1.msra.mxu0 0.0
      %898 = vmatprep.subr.mxu0 0.0
      %899 = vmatpush1.msra.mxu0 0.0
      %900 = vmatprep.subr.mxu0 0.0
      %901 = vmatpush1.msra.mxu0 0.0
      %902 = vmatprep.subr.mxu0 0.0
      %903 = vmatpush1.msra.mxu0 0.0
      %904 = vmatprep.subr.mxu0 0.0
      %905 = vmatpush1.msra.mxu0 0.0
      %906 = vmatprep.subr.mxu0 0.0
      %907 = vmatpush1.msra.mxu0 0.0
      %908 = vmatprep.subr.mxu0 0.0
      %909 = vmatpush1.msra.mxu0 %v712
      %910 = vmatprep.subr.mxu0 0.0
      %911 = vmatpush1.msra.mxu0 %v711
      %912 = vmatprep.subr.mxu0 0.0
      %913 = vmatpush2.msra.mxu0 0.0
      %914 = vmatprep.subr.mxu0 0.0
      %915 = vmatpush2.msra.mxu0 0.0
      %916 = vmatprep.subr.mxu0 0.0
      %917 = vmatpush2.msra.mxu0 0.0
      %918 = vmatprep.subr.mxu0 0.0
      %919 = vmatpush2.msra.mxu0 0.0
      %920 = vmatprep.subr.mxu0 0.0
      %921 = vmatpush2.msra.mxu0 0.0
      %922 = vmatprep.subr.mxu0 0.0
      %923 = vmatpush2.msra.mxu0 0.0
      %924 = vmatprep.subr.mxu0 0.0
      %925 = vmatpush2.msra.mxu0 0.0
      %926 = vmatprep.subr.mxu0 0.0
      %927 = vmatpush2.msra.mxu0 0.0
      %928 = vmatprep.subr.mxu0 0.0
      %929 = vmatpush2.msra.mxu0 0.0
      %930 = vmatprep.subr.mxu0 0.0
      %931 = vmatpush2.msra.mxu0 0.0
      %932 = vmatprep.subr.mxu0 0.0
      %933 = vmatpush2.msra.mxu0 0.0
      %934 = vmatprep.subr.mxu0 0.0
      %935 = vmatpush2.msra.mxu0 0.0
      %936 = vmatprep.subr.mxu0 0.0
      %937 = vmatpush2.msra.mxu0 0.0
      %938 = vmatprep.subr.mxu0 0.0
      %939 = vmatpush2.msra.mxu0 0.0
      %940 = vmatprep.subr.mxu0 0.0
      %941 = vmatpush2.msra.mxu0 0.0
      %942 = vmatprep.subr.mxu0 0.0
      %943 = vmatpush2.msra.mxu0 0.0
      %944 = vmatprep.mubr.f32.mxu0 0.0
      %945 = vmatmul.mubr.f32.gmra.mxu0 %v878
      %v946 = vpop.f32.mrf.mxu0
      %v947 = vadd.f32 0.0, %v946
      %v948 = vpop.f32.mrf.mxu0
      %949 = vdwg.mxu0
      %s950 = scalar_lea.vmem %s2, 4
      %v951 = vld [vmem:[%s950] sm:$0xf]
      %v953 = vsel %vm790, %v947, 0
      %v956 = vsel %vm794, %v951, 0
      %958 = vmatprep.subr.mxu0 0.0
      %959 = vmatpush1.msra.mxu0 0.0
      %960 = vmatprep.subr.mxu0 0.0
      %961 = vmatpush1.msra.mxu0 0.0
      %962 = vmatprep.subr.mxu0 0.0
      %963 = vmatpush1.msra.mxu0 0.0
      %964 = vmatprep.subr.mxu0 0.0
      %965 = vmatpush1.msra.mxu0 0.0
      %966 = vmatprep.subr.mxu0 0.0
      %967 = vmatpush1.msra.mxu0 0.0
      %968 = vmatprep.subr.mxu0 0.0
      %969 = vmatpush1.msra.mxu0 0.0
      %970 = vmatprep.subr.mxu0 0.0
      %971 = vmatpush1.msra.mxu0 0.0
      %972 = vmatprep.subr.mxu0 0.0
      %973 = vmatpush1.msra.mxu0 0.0
      %974 = vmatprep.subr.mxu0 0.0
      %975 = vmatpush1.msra.mxu0 0.0
      %976 = vmatprep.subr.mxu0 0.0
      %977 = vmatpush1.msra.mxu0 0.0
      %978 = vmatprep.subr.mxu0 0.0
      %979 = vmatpush1.msra.mxu0 0.0
      %980 = vmatprep.subr.mxu0 0.0
      %981 = vmatpush1.msra.mxu0 0.0
      %982 = vmatprep.subr.mxu0 0.0
      %983 = vmatpush1.msra.mxu0 0.0
      %984 = vmatprep.subr.mxu0 0.0
      %985 = vmatpush1.msra.mxu0 0.0
      %986 = vmatprep.subr.mxu0 0.0
      %987 = vmatpush1.msra.mxu0 0.0
      %988 = vmatprep.subr.mxu0 0.0
      %989 = vmatpush1.msra.mxu0 %v956
      %990 = vmatprep.subr.mxu0 0.0
      %991 = vmatpush2.msra.mxu0 0.0
      %992 = vmatprep.subr.mxu0 0.0
      %993 = vmatpush2.msra.mxu0 0.0
      %994 = vmatprep.subr.mxu0 0.0
      %995 = vmatpush2.msra.mxu0 0.0
      %996 = vmatprep.subr.mxu0 0.0
      %997 = vmatpush2.msra.mxu0 0.0
      %998 = vmatprep.subr.mxu0 0.0
      %999 = vmatpush2.msra.mxu0 0.0
      %1000 = vmatprep.subr.mxu0 0.0
      %1001 = vmatpush2.msra.mxu0 0.0
      %1002 = vmatprep.subr.mxu0 0.0
      %1003 = vmatpush2.msra.mxu0 0.0
      %1004 = vmatprep.subr.mxu0 0.0
      %1005 = vmatpush2.msra.mxu0 0.0
      %1006 = vmatprep.subr.mxu0 0.0
      %1007 = vmatpush2.msra.mxu0 0.0
      %1008 = vmatprep.subr.mxu0 0.0
      %1009 = vmatpush2.msra.mxu0 0.0
      %1010 = vmatprep.subr.mxu0 0.0
      %1011 = vmatpush2.msra.mxu0 0.0
      %1012 = vmatprep.subr.mxu0 0.0
      %1013 = vmatpush2.msra.mxu0 0.0
      %1014 = vmatprep.subr.mxu0 0.0
      %1015 = vmatpush2.msra.mxu0 0.0
      %1016 = vmatprep.subr.mxu0 0.0
      %1017 = vmatpush2.msra.mxu0 0.0
      %1018 = vmatprep.subr.mxu0 0.0
      %1019 = vmatpush2.msra.mxu0 0.0
      %1020 = vmatprep.subr.mxu0 0.0
      %1021 = vmatpush2.msra.mxu0 0.0
      %1022 = vmatprep.mubr.f32.mxu0 0.0
      %1023 = vmatmul.mubr.f32.gmra.mxu0 %v953
      %v1024 = vpop.f32.mrf.mxu0
      %v1025 = vadd.f32 0.0, %v1024
      %v1026 = vpop.f32.mrf.mxu0
      %1027 = vdwg.mxu0
      %v1028 = vadd.f32 %v874, %v1025
      %s1029 = scalar_lea.vmem %s1, 16
      %v1030 = vld [vmem:[%s1029] sm:$0x7f]
      %v1032 = vsel %vm715, %v1030, 0
      %1034 = vmatprep.subr.mxu0 0.0
      %1035 = vmatpush1.msra.mxu0 0.0
      %1036 = vmatprep.subr.mxu0 0.0
      %1037 = vmatpush1.msra.mxu0 0.0
      %1038 = vmatprep.subr.mxu0 0.0
      %1039 = vmatpush1.msra.mxu0 0.0
      %1040 = vmatprep.subr.mxu0 0.0
      %1041 = vmatpush1.msra.mxu0 0.0
      %1042 = vmatprep.subr.mxu0 0.0
      %1043 = vmatpush1.msra.mxu0 0.0
      %1044 = vmatprep.subr.mxu0 0.0
      %1045 = vmatpush1.msra.mxu0 0.0
      %1046 = vmatprep.subr.mxu0 0.0
      %1047 = vmatpush1.msra.mxu0 0.0
      %1048 = vmatprep.subr.mxu0 0.0
      %1049 = vmatpush1.msra.mxu0 0.0
      %1050 = vmatprep.subr.mxu0 0.0
      %1051 = vmatpush1.msra.mxu0 0.0
      %1052 = vmatprep.subr.mxu0 0.0
      %1053 = vmatpush1.msra.mxu0 0.0
      %1054 = vmatprep.subr.mxu0 0.0
      %1055 = vmatpush1.msra.mxu0 0.0
      %1056 = vmatprep.subr.mxu0 0.0
      %1057 = vmatpush1.msra.mxu0 0.0
      %1058 = vmatprep.subr.mxu0 0.0
      %1059 = vmatpush1.msra.mxu0 0.0
      %1060 = vmatprep.subr.mxu0 0.0
      %1061 = vmatpush1.msra.mxu0 0.0
      %1062 = vmatprep.subr.mxu0 0.0
      %1063 = vmatpush1.msra.mxu0 %v712
      %1064 = vmatprep.subr.mxu0 0.0
      %1065 = vmatpush1.msra.mxu0 %v711
      %1066 = vmatprep.subr.mxu0 0.0
      %1067 = vmatpush2.msra.mxu0 0.0
      %1068 = vmatprep.subr.mxu0 0.0
      %1069 = vmatpush2.msra.mxu0 0.0
      %1070 = vmatprep.subr.mxu0 0.0
      %1071 = vmatpush2.msra.mxu0 0.0
      %1072 = vmatprep.subr.mxu0 0.0
      %1073 = vmatpush2.msra.mxu0 0.0
      %1074 = vmatprep.subr.mxu0 0.0
      %1075 = vmatpush2.msra.mxu0 0.0
      %1076 = vmatprep.subr.mxu0 0.0
      %1077 = vmatpush2.msra.mxu0 0.0
      %1078 = vmatprep.subr.mxu0 0.0
      %1079 = vmatpush2.msra.mxu0 0.0
      %1080 = vmatprep.subr.mxu0 0.0
      %1081 = vmatpush2.msra.mxu0 0.0
      %1082 = vmatprep.subr.mxu0 0.0
      %1083 = vmatpush2.msra.mxu0 0.0
      %1084 = vmatprep.subr.mxu0 0.0
      %1085 = vmatpush2.msra.mxu0 0.0
      %1086 = vmatprep.subr.mxu0 0.0
      %1087 = vmatpush2.msra.mxu0 0.0
      %1088 = vmatprep.subr.mxu0 0.0
      %1089 = vmatpush2.msra.mxu0 0.0
      %1090 = vmatprep.subr.mxu0 0.0
      %1091 = vmatpush2.msra.mxu0 0.0
      %1092 = vmatprep.subr.mxu0 0.0
      %1093 = vmatpush2.msra.mxu0 0.0
      %1094 = vmatprep.subr.mxu0 0.0
      %1095 = vmatpush2.msra.mxu0 0.0
      %1096 = vmatprep.subr.mxu0 0.0
      %1097 = vmatpush2.msra.mxu0 0.0
      %1098 = vmatprep.mubr.f32.mxu0 0.0
      %1099 = vmatmul.mubr.f32.gmra.mxu0 %v1032
      %v1100 = vpop.f32.mrf.mxu0
      %v1101 = vadd.f32 0.0, %v1100
      %v1102 = vpop.f32.mrf.mxu0
      %1103 = vdwg.mxu0
      %s1104 = scalar_lea.vmem %s2, 8
      %v1105 = vld [vmem:[%s1104] sm:$0xf]
      %v1107 = vsel %vm790, %v1101, 0
      %v1110 = vsel %vm794, %v1105, 0
      %1112 = vmatprep.subr.mxu0 0.0
      %1113 = vmatpush1.msra.mxu0 0.0
      %1114 = vmatprep.subr.mxu0 0.0
      %1115 = vmatpush1.msra.mxu0 0.0
      %1116 = vmatprep.subr.mxu0 0.0
      %1117 = vmatpush1.msra.mxu0 0.0
      %1118 = vmatprep.subr.mxu0 0.0
      %1119 = vmatpush1.msra.mxu0 0.0
      %1120 = vmatprep.subr.mxu0 0.0
      %1121 = vmatpush1.msra.mxu0 0.0
      %1122 = vmatprep.subr.mxu0 0.0
      %1123 = vmatpush1.msra.mxu0 0.0
      %1124 = vmatprep.subr.mxu0 0.0
      %1125 = vmatpush1.msra.mxu0 0.0
      %1126 = vmatprep.subr.mxu0 0.0
      %1127 = vmatpush1.msra.mxu0 0.0
      %1128 = vmatprep.subr.mxu0 0.0
      %1129 = vmatpush1.msra.mxu0 0.0
      %1130 = vmatprep.subr.mxu0 0.0
      %1131 = vmatpush1.msra.mxu0 0.0
      %1132 = vmatprep.subr.mxu0 0.0
      %1133 = vmatpush1.msra.mxu0 0.0
      %1134 = vmatprep.subr.mxu0 0.0
      %1135 = vmatpush1.msra.mxu0 0.0
      %1136 = vmatprep.subr.mxu0 0.0
      %1137 = vmatpush1.msra.mxu0 0.0
      %1138 = vmatprep.subr.mxu0 0.0
      %1139 = vmatpush1.msra.mxu0 0.0
      %1140 = vmatprep.subr.mxu0 0.0
      %1141 = vmatpush1.msra.mxu0 0.0
      %1142 = vmatprep.subr.mxu0 0.0
      %1143 = vmatpush1.msra.mxu0 %v1110
      %1144 = vmatprep.subr.mxu0 0.0
      %1145 = vmatpush2.msra.mxu0 0.0
      %1146 = vmatprep.subr.mxu0 0.0
      %1147 = vmatpush2.msra.mxu0 0.0
      %1148 = vmatprep.subr.mxu0 0.0
      %1149 = vmatpush2.msra.mxu0 0.0
      %1150 = vmatprep.subr.mxu0 0.0
      %1151 = vmatpush2.msra.mxu0 0.0
      %1152 = vmatprep.subr.mxu0 0.0
      %1153 = vmatpush2.msra.mxu0 0.0
      %1154 = vmatprep.subr.mxu0 0.0
      %1155 = vmatpush2.msra.mxu0 0.0
      %1156 = vmatprep.subr.mxu0 0.0
      %1157 = vmatpush2.msra.mxu0 0.0
      %1158 = vmatprep.subr.mxu0 0.0
      %1159 = vmatpush2.msra.mxu0 0.0
      %1160 = vmatprep.subr.mxu0 0.0
      %1161 = vmatpush2.msra.mxu0 0.0
      %1162 = vmatprep.subr.mxu0 0.0
      %1163 = vmatpush2.msra.mxu0 0.0
      %1164 = vmatprep.subr.mxu0 0.0
      %1165 = vmatpush2.msra.mxu0 0.0
      %1166 = vmatprep.subr.mxu0 0.0
      %1167 = vmatpush2.msra.mxu0 0.0
      %1168 = vmatprep.subr.mxu0 0.0
      %1169 = vmatpush2.msra.mxu0 0.0
      %1170 = vmatprep.subr.mxu0 0.0
      %1171 = vmatpush2.msra.mxu0 0.0
      %1172 = vmatprep.subr.mxu0 0.0
      %1173 = vmatpush2.msra.mxu0 0.0
      %1174 = vmatprep.subr.mxu0 0.0
      %1175 = vmatpush2.msra.mxu0 0.0
      %1176 = vmatprep.mubr.f32.mxu0 0.0
      %1177 = vmatmul.mubr.f32.gmra.mxu0 %v1107
      %v1178 = vpop.f32.mrf.mxu0
      %v1179 = vadd.f32 0.0, %v1178
      %v1180 = vpop.f32.mrf.mxu0
      %1181 = vdwg.mxu0
      %v1182 = vadd.f32 %v1028, %v1179
      %v1183 = vmax.f32 %v1182, 0.0
      %v1184 = vld [vmem:[%s6] sm:$0x1]
      %v1185 = vld [vmem:[%s4] sm:$0x7]
      %vm1186 = vcmask 56320
      %v1188 = vsel %vm1186, %v1185, 0
      %vm1190 = vcmask 1046528
      %v1192 = vsel %vm1190, %v1183, 0
      %1194 = vmatprep.subr.mxu0 0.0
      %1195 = vmatpush1.msra.mxu0 0.0
      %1196 = vmatprep.subr.mxu0 0.0
      %1197 = vmatpush1.msra.mxu0 0.0
      %1198 = vmatprep.subr.mxu0 0.0
      %1199 = vmatpush1.msra.mxu0 0.0
      %1200 = vmatprep.subr.mxu0 0.0
      %1201 = vmatpush1.msra.mxu0 0.0
      %1202 = vmatprep.subr.mxu0 0.0
      %1203 = vmatpush1.msra.mxu0 0.0
      %1204 = vmatprep.subr.mxu0 0.0
      %1205 = vmatpush1.msra.mxu0 0.0
      %1206 = vmatprep.subr.mxu0 0.0
      %1207 = vmatpush1.msra.mxu0 0.0
      %1208 = vmatprep.subr.mxu0 0.0
      %1209 = vmatpush1.msra.mxu0 0.0
      %1210 = vmatprep.subr.mxu0 0.0
      %1211 = vmatpush1.msra.mxu0 0.0
      %1212 = vmatprep.subr.mxu0 0.0
      %1213 = vmatpush1.msra.mxu0 0.0
      %1214 = vmatprep.subr.mxu0 0.0
      %1215 = vmatpush1.msra.mxu0 0.0
      %1216 = vmatprep.subr.mxu0 0.0
      %1217 = vmatpush1.msra.mxu0 0.0
      %1218 = vmatprep.subr.mxu0 0.0
      %1219 = vmatpush1.msra.mxu0 0.0
      %1220 = vmatprep.subr.mxu0 0.0
      %1221 = vmatpush1.msra.mxu0 0.0
      %1222 = vmatprep.subr.mxu0 0.0
      %1223 = vmatpush1.msra.mxu0 0.0
      %1224 = vmatprep.subr.mxu0 0.0
      %1225 = vmatpush1.msra.mxu0 %v1192
      %1226 = vmatprep.subr.mxu0 0.0
      %1227 = vmatpush2.msra.mxu0 0.0
      %1228 = vmatprep.subr.mxu0 0.0
      %1229 = vmatpush2.msra.mxu0 0.0
      %1230 = vmatprep.subr.mxu0 0.0
      %1231 = vmatpush2.msra.mxu0 0.0
      %1232 = vmatprep.subr.mxu0 0.0
      %1233 = vmatpush2.msra.mxu0 0.0
      %1234 = vmatprep.subr.mxu0 0.0
      %1235 = vmatpush2.msra.mxu0 0.0
      %1236 = vmatprep.subr.mxu0 0.0
      %1237 = vmatpush2.msra.mxu0 0.0
      %1238 = vmatprep.subr.mxu0 0.0
      %1239 = vmatpush2.msra.mxu0 0.0
      %1240 = vmatprep.subr.mxu0 0.0
      %1241 = vmatpush2.msra.mxu0 0.0
      %1242 = vmatprep.subr.mxu0 0.0
      %1243 = vmatpush2.msra.mxu0 0.0
      %1244 = vmatprep.subr.mxu0 0.0
      %1245 = vmatpush2.msra.mxu0 0.0
      %1246 = vmatprep.subr.mxu0 0.0
      %1247 = vmatpush2.msra.mxu0 0.0
      %1248 = vmatprep.subr.mxu0 0.0
      %1249 = vmatpush2.msra.mxu0 0.0
      %1250 = vmatprep.subr.mxu0 0.0
      %1251 = vmatpush2.msra.mxu0 0.0
      %1252 = vmatprep.subr.mxu0 0.0
      %1253 = vmatpush2.msra.mxu0 0.0
      %1254 = vmatprep.subr.mxu0 0.0
      %1255 = vmatpush2.msra.mxu0 0.0
      %1256 = vmatprep.subr.mxu0 0.0
      %1257 = vmatpush2.msra.mxu0 0.0
      %1258 = vmatprep.mubr.f32.mxu0 0.0
      %1259 = vmatmul.mubr.f32.gmra.mxu0 %v1188
      %v1260 = vpop.f32.mrf.mxu0
      %v1261 = vadd.f32 0.0, %v1260
      %v1262 = vpop.f32.mrf.mxu0
      %1263 = vdwg.mxu0
      %v1264 = vld [vmem:[%s5] sm:$0xff]
      %vm1265 = vcmask 64512
      %v1267 = vsel %vm1265, %v1261, 0
      %1269 = vmatprep.subr.mxu0 0.0
      %1270 = vmatpush1.msra.mxu0 0.0
      %1271 = vmatprep.subr.mxu0 0.0
      %1272 = vmatpush1.msra.mxu0 0.0
      %1273 = vmatprep.subr.mxu0 0.0
      %1274 = vmatpush1.msra.mxu0 0.0
      %1275 = vmatprep.subr.mxu0 0.0
      %1276 = vmatpush1.msra.mxu0 0.0
      %1277 = vmatprep.subr.mxu0 0.0
      %1278 = vmatpush1.msra.mxu0 0.0
      %1279 = vmatprep.subr.mxu0 0.0
      %1280 = vmatpush1.msra.mxu0 0.0
      %1281 = vmatprep.subr.mxu0 0.0
      %1282 = vmatpush1.msra.mxu0 0.0
      %1283 = vmatprep.subr.mxu0 0.0
      %1284 = vmatpush1.msra.mxu0 0.0
      %1285 = vmatprep.subr.mxu0 0.0
      %1286 = vmatpush1.msra.mxu0 0.0
      %1287 = vmatprep.subr.mxu0 0.0
      %1288 = vmatpush1.msra.mxu0 0.0
      %1289 = vmatprep.subr.mxu0 0.0
      %1290 = vmatpush1.msra.mxu0 0.0
      %1291 = vmatprep.subr.mxu0 0.0
      %1292 = vmatpush1.msra.mxu0 0.0
      %1293 = vmatprep.subr.mxu0 0.0
      %1294 = vmatpush1.msra.mxu0 0.0
      %1295 = vmatprep.subr.mxu0 0.0
      %1296 = vmatpush1.msra.mxu0 0.0
      %1297 = vmatprep.subr.mxu0 0.0
      %1298 = vmatpush1.msra.mxu0 0.0
      %1299 = vmatprep.subr.mxu0 0.0
      %1300 = vmatpush1.msra.mxu0 %v1264
      %1301 = vmatprep.subr.mxu0 0.0
      %1302 = vmatpush2.msra.mxu0 0.0
      %1303 = vmatprep.subr.mxu0 0.0
      %1304 = vmatpush2.msra.mxu0 0.0
      %1305 = vmatprep.subr.mxu0 0.0
      %1306 = vmatpush2.msra.mxu0 0.0
      %1307 = vmatprep.subr.mxu0 0.0
      %1308 = vmatpush2.msra.mxu0 0.0
      %1309 = vmatprep.subr.mxu0 0.0
      %1310 = vmatpush2.msra.mxu0 0.0
      %1311 = vmatprep.subr.mxu0 0.0
      %1312 = vmatpush2.msra.mxu0 0.0
      %1313 = vmatprep.subr.mxu0 0.0
      %1314 = vmatpush2.msra.mxu0 0.0
      %1315 = vmatprep.subr.mxu0 0.0
      %1316 = vmatpush2.msra.mxu0 0.0
      %1317 = vmatprep.subr.mxu0 0.0
      %1318 = vmatpush2.msra.mxu0 0.0
      %1319 = vmatprep.subr.mxu0 0.0
      %1320 = vmatpush2.msra.mxu0 0.0
      %1321 = vmatprep.subr.mxu0 0.0
      %1322 = vmatpush2.msra.mxu0 0.0
      %1323 = vmatprep.subr.mxu0 0.0
      %1324 = vmatpush2.msra.mxu0 0.0
      %1325 = vmatprep.subr.mxu0 0.0
      %1326 = vmatpush2.msra.mxu0 0.0
      %1327 = vmatprep.subr.mxu0 0.0
      %1328 = vmatpush2.msra.mxu0 0.0
      %1329 = vmatprep.subr.mxu0 0.0
      %1330 = vmatpush2.msra.mxu0 0.0
      %1331 = vmatprep.subr.mxu0 0.0
      %1332 = vmatpush2.msra.mxu0 0.0
      %1333 = vmatprep.mubr.f32.mxu0 0.0
      %1334 = vmatmul.mubr.f32.gmra.mxu0 %v1267
      %v1335 = vpop.f32.mrf.mxu0
      %v1336 = vadd.f32 0.0, %v1335
      %v1337 = vpop.f32.mrf.mxu0
      %1338 = vdwg.mxu0
      %v1340 = vlaneseq
      %v1341 = vshrl.u32 %v1340, 7
      %v1342 = vsub.s32 0, %v1341
      %v1343 = vrot.slane %v1184, %v1342
      %v1345 = vadd.f32 %v1343, %v1336
      %s1346 = scalar_lea.vmem %s4, 4
      %v1347 = vld [vmem:[%s1346] sm:$0x7]
      %v1349 = vsel %vm1186, %v1347, 0
      %1351 = vmatprep.subr.mxu0 0.0
      %1352 = vmatpush1.msra.mxu0 0.0
      %1353 = vmatprep.subr.mxu0 0.0
      %1354 = vmatpush1.msra.mxu0 0.0
      %1355 = vmatprep.subr.mxu0 0.0
      %1356 = vmatpush1.msra.mxu0 0.0
      %1357 = vmatprep.subr.mxu0 0.0
      %1358 = vmatpush1.msra.mxu0 0.0
      %1359 = vmatprep.subr.mxu0 0.0
      %1360 = vmatpush1.msra.mxu0 0.0
      %1361 = vmatprep.subr.mxu0 0.0
      %1362 = vmatpush1.msra.mxu0 0.0
      %1363 = vmatprep.subr.mxu0 0.0
      %1364 = vmatpush1.msra.mxu0 0.0
      %1365 = vmatprep.subr.mxu0 0.0
      %1366 = vmatpush1.msra.mxu0 0.0
      %1367 = vmatprep.subr.mxu0 0.0
      %1368 = vmatpush1.msra.mxu0 0.0
      %1369 = vmatprep.subr.mxu0 0.0
      %1370 = vmatpush1.msra.mxu0 0.0
      %1371 = vmatprep.subr.mxu0 0.0
      %1372 = vmatpush1.msra.mxu0 0.0
      %1373 = vmatprep.subr.mxu0 0.0
      %1374 = vmatpush1.msra.mxu0 0.0
      %1375 = vmatprep.subr.mxu0 0.0
      %1376 = vmatpush1.msra.mxu0 0.0
      %1377 = vmatprep.subr.mxu0 0.0
      %1378 = vmatpush1.msra.mxu0 0.0
      %1379 = vmatprep.subr.mxu0 0.0
      %1380 = vmatpush1.msra.mxu0 0.0
      %1381 = vmatprep.subr.mxu0 0.0
      %1382 = vmatpush1.msra.mxu0 %v1192
      %1383 = vmatprep.subr.mxu0 0.0
      %1384 = vmatpush2.msra.mxu0 0.0
      %1385 = vmatprep.subr.mxu0 0.0
      %1386 = vmatpush2.msra.mxu0 0.0
      %1387 = vmatprep.subr.mxu0 0.0
      %1388 = vmatpush2.msra.mxu0 0.0
      %1389 = vmatprep.subr.mxu0 0.0
      %1390 = vmatpush2.msra.mxu0 0.0
      %1391 = vmatprep.subr.mxu0 0.0
      %1392 = vmatpush2.msra.mxu0 0.0
      %1393 = vmatprep.subr.mxu0 0.0
      %1394 = vmatpush2.msra.mxu0 0.0
      %1395 = vmatprep.subr.mxu0 0.0
      %1396 = vmatpush2.msra.mxu0 0.0
      %1397 = vmatprep.subr.mxu0 0.0
      %1398 = vmatpush2.msra.mxu0 0.0
      %1399 = vmatprep.subr.mxu0 0.0
      %1400 = vmatpush2.msra.mxu0 0.0
      %1401 = vmatprep.subr.mxu0 0.0
      %1402 = vmatpush2.msra.mxu0 0.0
      %1403 = vmatprep.subr.mxu0 0.0
      %1404 = vmatpush2.msra.mxu0 0.0
      %1405 = vmatprep.subr.mxu0 0.0
      %1406 = vmatpush2.msra.mxu0 0.0
      %1407 = vmatprep.subr.mxu0 0.0
      %1408 = vmatpush2.msra.mxu0 0.0
      %1409 = vmatprep.subr.mxu0 0.0
      %1410 = vmatpush2.msra.mxu0 0.0
      %1411 = vmatprep.subr.mxu0 0.0
      %1412 = vmatpush2.msra.mxu0 0.0
      %1413 = vmatprep.subr.mxu0 0.0
      %1414 = vmatpush2.msra.mxu0 0.0
      %1415 = vmatprep.mubr.f32.mxu0 0.0
      %1416 = vmatmul.mubr.f32.gmra.mxu0 %v1349
      %v1417 = vpop.f32.mrf.mxu0
      %v1418 = vadd.f32 0.0, %v1417
      %v1419 = vpop.f32.mrf.mxu0
      %1420 = vdwg.mxu0
      %s1421 = scalar_lea.vmem %s5, 8
      %v1422 = vld [vmem:[%s1421] sm:$0xff]
      %v1424 = vsel %vm1265, %v1418, 0
      %1426 = vmatprep.subr.mxu0 0.0
      %1427 = vmatpush1.msra.mxu0 0.0
      %1428 = vmatprep.subr.mxu0 0.0
      %1429 = vmatpush1.msra.mxu0 0.0
      %1430 = vmatprep.subr.mxu0 0.0
      %1431 = vmatpush1.msra.mxu0 0.0
      %1432 = vmatprep.subr.mxu0 0.0
      %1433 = vmatpush1.msra.mxu0 0.0
      %1434 = vmatprep.subr.mxu0 0.0
      %1435 = vmatpush1.msra.mxu0 0.0
      %1436 = vmatprep.subr.mxu0 0.0
      %1437 = vmatpush1.msra.mxu0 0.0
      %1438 = vmatprep.subr.mxu0 0.0
      %1439 = vmatpush1.msra.mxu0 0.0
      %1440 = vmatprep.subr.mxu0 0.0
      %1441 = vmatpush1.msra.mxu0 0.0
      %1442 = vmatprep.subr.mxu0 0.0
      %1443 = vmatpush1.msra.mxu0 0.0
      %1444 = vmatprep.subr.mxu0 0.0
      %1445 = vmatpush1.msra.mxu0 0.0
      %1446 = vmatprep.subr.mxu0 0.0
      %1447 = vmatpush1.msra.mxu0 0.0
      %1448 = vmatprep.subr.mxu0 0.0
      %1449 = vmatpush1.msra.mxu0 0.0
      %1450 = vmatprep.subr.mxu0 0.0
      %1451 = vmatpush1.msra.mxu0 0.0
      %1452 = vmatprep.subr.mxu0 0.0
      %1453 = vmatpush1.msra.mxu0 0.0
      %1454 = vmatprep.subr.mxu0 0.0
      %1455 = vmatpush1.msra.mxu0 0.0
      %1456 = vmatprep.subr.mxu0 0.0
      %1457 = vmatpush1.msra.mxu0 %v1422
      %1458 = vmatprep.subr.mxu0 0.0
      %1459 = vmatpush2.msra.mxu0 0.0
      %1460 = vmatprep.subr.mxu0 0.0
      %1461 = vmatpush2.msra.mxu0 0.0
      %1462 = vmatprep.subr.mxu0 0.0
      %1463 = vmatpush2.msra.mxu0 0.0
      %1464 = vmatprep.subr.mxu0 0.0
      %1465 = vmatpush2.msra.mxu0 0.0
      %1466 = vmatprep.subr.mxu0 0.0
      %1467 = vmatpush2.msra.mxu0 0.0
      %1468 = vmatprep.subr.mxu0 0.0
      %1469 = vmatpush2.msra.mxu0 0.0
      %1470 = vmatprep.subr.mxu0 0.0
      %1471 = vmatpush2.msra.mxu0 0.0
      %1472 = vmatprep.subr.mxu0 0.0
      %1473 = vmatpush2.msra.mxu0 0.0
      %1474 = vmatprep.subr.mxu0 0.0
      %1475 = vmatpush2.msra.mxu0 0.0
      %1476 = vmatprep.subr.mxu0 0.0
      %1477 = vmatpush2.msra.mxu0 0.0
      %1478 = vmatprep.subr.mxu0 0.0
      %1479 = vmatpush2.msra.mxu0 0.0
      %1480 = vmatprep.subr.mxu0 0.0
      %1481 = vmatpush2.msra.mxu0 0.0
      %1482 = vmatprep.subr.mxu0 0.0
      %1483 = vmatpush2.msra.mxu0 0.0
      %1484 = vmatprep.subr.mxu0 0.0
      %1485 = vmatpush2.msra.mxu0 0.0
      %1486 = vmatprep.subr.mxu0 0.0
      %1487 = vmatpush2.msra.mxu0 0.0
      %1488 = vmatprep.subr.mxu0 0.0
      %1489 = vmatpush2.msra.mxu0 0.0
      %1490 = vmatprep.mubr.f32.mxu0 0.0
      %1491 = vmatmul.mubr.f32.gmra.mxu0 %v1424
      %v1492 = vpop.f32.mrf.mxu0
      %v1493 = vadd.f32 0.0, %v1492
      %v1494 = vpop.f32.mrf.mxu0
      %1495 = vdwg.mxu0
      %v1496 = vadd.f32 %v1345, %v1493
      %s1497 = scalar_lea.vmem %s4, 8
      %v1498 = vld [vmem:[%s1497] sm:$0x7]
      %v1500 = vsel %vm1186, %v1498, 0
      %1502 = vmatprep.subr.mxu0 0.0
      %1503 = vmatpush1.msra.mxu0 0.0
      %1504 = vmatprep.subr.mxu0 0.0
      %1505 = vmatpush1.msra.mxu0 0.0
      %1506 = vmatprep.subr.mxu0 0.0
      %1507 = vmatpush1.msra.mxu0 0.0
      %1508 = vmatprep.subr.mxu0 0.0
      %1509 = vmatpush1.msra.mxu0 0.0
      %1510 = vmatprep.subr.mxu0 0.0
      %1511 = vmatpush1.msra.mxu0 0.0
      %1512 = vmatprep.subr.mxu0 0.0
      %1513 = vmatpush1.msra.mxu0 0.0
      %1514 = vmatprep.subr.mxu0 0.0
      %1515 = vmatpush1.msra.mxu0 0.0
      %1516 = vmatprep.subr.mxu0 0.0
      %1517 = vmatpush1.msra.mxu0 0.0
      %1518 = vmatprep.subr.mxu0 0.0
      %1519 = vmatpush1.msra.mxu0 0.0
      %1520 = vmatprep.subr.mxu0 0.0
      %1521 = vmatpush1.msra.mxu0 0.0
      %1522 = vmatprep.subr.mxu0 0.0
      %1523 = vmatpush1.msra.mxu0 0.0
      %1524 = vmatprep.subr.mxu0 0.0
      %1525 = vmatpush1.msra.mxu0 0.0
      %1526 = vmatprep.subr.mxu0 0.0
      %1527 = vmatpush1.msra.mxu0 0.0
      %1528 = vmatprep.subr.mxu0 0.0
      %1529 = vmatpush1.msra.mxu0 0.0
      %1530 = vmatprep.subr.mxu0 0.0
      %1531 = vmatpush1.msra.mxu0 0.0
      %1532 = vmatprep.subr.mxu0 0.0
      %1533 = vmatpush1.msra.mxu0 %v1192
      %1534 = vmatprep.subr.mxu0 0.0
      %1535 = vmatpush2.msra.mxu0 0.0
      %1536 = vmatprep.subr.mxu0 0.0
      %1537 = vmatpush2.msra.mxu0 0.0
      %1538 = vmatprep.subr.mxu0 0.0
      %1539 = vmatpush2.msra.mxu0 0.0
      %1540 = vmatprep.subr.mxu0 0.0
      %1541 = vmatpush2.msra.mxu0 0.0
      %1542 = vmatprep.subr.mxu0 0.0
      %1543 = vmatpush2.msra.mxu0 0.0
      %1544 = vmatprep.subr.mxu0 0.0
      %1545 = vmatpush2.msra.mxu0 0.0
      %1546 = vmatprep.subr.mxu0 0.0
      %1547 = vmatpush2.msra.mxu0 0.0
      %1548 = vmatprep.subr.mxu0 0.0
      %1549 = vmatpush2.msra.mxu0 0.0
      %1550 = vmatprep.subr.mxu0 0.0
      %1551 = vmatpush2.msra.mxu0 0.0
      %1552 = vmatprep.subr.mxu0 0.0
      %1553 = vmatpush2.msra.mxu0 0.0
      %1554 = vmatprep.subr.mxu0 0.0
      %1555 = vmatpush2.msra.mxu0 0.0
      %1556 = vmatprep.subr.mxu0 0.0
      %1557 = vmatpush2.msra.mxu0 0.0
      %1558 = vmatprep.subr.mxu0 0.0
      %1559 = vmatpush2.msra.mxu0 0.0
      %1560 = vmatprep.subr.mxu0 0.0
      %1561 = vmatpush2.msra.mxu0 0.0
      %1562 = vmatprep.subr.mxu0 0.0
      %1563 = vmatpush2.msra.mxu0 0.0
      %1564 = vmatprep.subr.mxu0 0.0
      %1565 = vmatpush2.msra.mxu0 0.0
      %1566 = vmatprep.mubr.f32.mxu0 0.0
      %1567 = vmatmul.mubr.f32.gmra.mxu0 %v1500
      %v1568 = vpop.f32.mrf.mxu0
      %v1569 = vadd.f32 0.0, %v1568
      %v1570 = vpop.f32.mrf.mxu0
      %1571 = vdwg.mxu0
      %s1572 = scalar_lea.vmem %s5, 16
      %v1573 = vld [vmem:[%s1572] sm:$0xff]
      %v1575 = vsel %vm1265, %v1569, 0
      %1577 = vmatprep.subr.mxu0 0.0
      %1578 = vmatpush1.msra.mxu0 0.0
      %1579 = vmatprep.subr.mxu0 0.0
      %1580 = vmatpush1.msra.mxu0 0.0
      %1581 = vmatprep.subr.mxu0 0.0
      %1582 = vmatpush1.msra.mxu0 0.0
      %1583 = vmatprep.subr.mxu0 0.0
      %1584 = vmatpush1.msra.mxu0 0.0
      %1585 = vmatprep.subr.mxu0 0.0
      %1586 = vmatpush1.msra.mxu0 0.0
      %1587 = vmatprep.subr.mxu0 0.0
      %1588 = vmatpush1.msra.mxu0 0.0
      %1589 = vmatprep.subr.mxu0 0.0
      %1590 = vmatpush1.msra.mxu0 0.0
      %1591 = vmatprep.subr.mxu0 0.0
      %1592 = vmatpush1.msra.mxu0 0.0
      %1593 = vmatprep.subr.mxu0 0.0
      %1594 = vmatpush1.msra.mxu0 0.0
      %1595 = vmatprep.subr.mxu0 0.0
      %1596 = vmatpush1.msra.mxu0 0.0
      %1597 = vmatprep.subr.mxu0 0.0
      %1598 = vmatpush1.msra.mxu0 0.0
      %1599 = vmatprep.subr.mxu0 0.0
      %1600 = vmatpush1.msra.mxu0 0.0
      %1601 = vmatprep.subr.mxu0 0.0
      %1602 = vmatpush1.msra.mxu0 0.0
      %1603 = vmatprep.subr.mxu0 0.0
      %1604 = vmatpush1.msra.mxu0 0.0
      %1605 = vmatprep.subr.mxu0 0.0
      %1606 = vmatpush1.msra.mxu0 0.0
      %1607 = vmatprep.subr.mxu0 0.0
      %1608 = vmatpush1.msra.mxu0 %v1573
      %1609 = vmatprep.subr.mxu0 0.0
      %1610 = vmatpush2.msra.mxu0 0.0
      %1611 = vmatprep.subr.mxu0 0.0
      %1612 = vmatpush2.msra.mxu0 0.0
      %1613 = vmatprep.subr.mxu0 0.0
      %1614 = vmatpush2.msra.mxu0 0.0
      %1615 = vmatprep.subr.mxu0 0.0
      %1616 = vmatpush2.msra.mxu0 0.0
      %1617 = vmatprep.subr.mxu0 0.0
      %1618 = vmatpush2.msra.mxu0 0.0
      %1619 = vmatprep.subr.mxu0 0.0
      %1620 = vmatpush2.msra.mxu0 0.0
      %1621 = vmatprep.subr.mxu0 0.0
      %1622 = vmatpush2.msra.mxu0 0.0
      %1623 = vmatprep.subr.mxu0 0.0
      %1624 = vmatpush2.msra.mxu0 0.0
      %1625 = vmatprep.subr.mxu0 0.0
      %1626 = vmatpush2.msra.mxu0 0.0
      %1627 = vmatprep.subr.mxu0 0.0
      %1628 = vmatpush2.msra.mxu0 0.0
      %1629 = vmatprep.subr.mxu0 0.0
      %1630 = vmatpush2.msra.mxu0 0.0
      %1631 = vmatprep.subr.mxu0 0.0
      %1632 = vmatpush2.msra.mxu0 0.0
      %1633 = vmatprep.subr.mxu0 0.0
      %1634 = vmatpush2.msra.mxu0 0.0
      %1635 = vmatprep.subr.mxu0 0.0
      %1636 = vmatpush2.msra.mxu0 0.0
      %1637 = vmatprep.subr.mxu0 0.0
      %1638 = vmatpush2.msra.mxu0 0.0
      %1639 = vmatprep.subr.mxu0 0.0
      %1640 = vmatpush2.msra.mxu0 0.0
      %1641 = vmatprep.mubr.f32.mxu0 0.0
      %1642 = vmatmul.mubr.f32.gmra.mxu0 %v1575
      %v1643 = vpop.f32.mrf.mxu0
      %v1644 = vadd.f32 0.0, %v1643
      %v1645 = vpop.f32.mrf.mxu0
      %1646 = vdwg.mxu0
      %v1647 = vadd.f32 %v1496, %v1644
      %v1648 = vmax.f32 %v1647, 0.0
      %vm1649 = vcmask 124928
      %v1650 = vsel %vm1649, %v1648, -inf
      %v1651 = vrot.slane %v1650, 4
      %v1652 = vmax.f32 %v1650, %v1651
      %v1653 = vrot.slane %v1652, 2
      %v1654 = vmax.f32 %v1652, %v1653
      %v1655 = vrot.slane %v1654, 1
      %v1656 = vmax.f32 %v1654, %v1655
      %v1657 = vld [vmem:[%s7] sm:$0xff]
      %v1658 = vld [vmem:[%s7 + $0x8] sm:$0xff]
      %v1659 = vld [vmem:[%s8] sm:$0x1]
      %v1661 = vsel %vm715, %v1656, 0
      %1663 = vmatprep.subr.mxu0 0.0
      %1664 = vmatpush1.msra.mxu0 0.0
      %1665 = vmatprep.subr.mxu0 0.0
      %1666 = vmatpush1.msra.mxu0 0.0
      %1667 = vmatprep.subr.mxu0 0.0
      %1668 = vmatpush1.msra.mxu0 0.0
      %1669 = vmatprep.subr.mxu0 0.0
      %1670 = vmatpush1.msra.mxu0 0.0
      %1671 = vmatprep.subr.mxu0 0.0
      %1672 = vmatpush1.msra.mxu0 0.0
      %1673 = vmatprep.subr.mxu0 0.0
      %1674 = vmatpush1.msra.mxu0 0.0
      %1675 = vmatprep.subr.mxu0 0.0
      %1676 = vmatpush1.msra.mxu0 0.0
      %1677 = vmatprep.subr.mxu0 0.0
      %1678 = vmatpush1.msra.mxu0 0.0
      %1679 = vmatprep.subr.mxu0 0.0
      %1680 = vmatpush1.msra.mxu0 0.0
      %1681 = vmatprep.subr.mxu0 0.0
      %1682 = vmatpush1.msra.mxu0 0.0
      %1683 = vmatprep.subr.mxu0 0.0
      %1684 = vmatpush1.msra.mxu0 0.0
      %1685 = vmatprep.subr.mxu0 0.0
      %1686 = vmatpush1.msra.mxu0 0.0
      %1687 = vmatprep.subr.mxu0 0.0
      %1688 = vmatpush1.msra.mxu0 0.0
      %1689 = vmatprep.subr.mxu0 0.0
      %1690 = vmatpush1.msra.mxu0 0.0
      %1691 = vmatprep.subr.mxu0 0.0
      %1692 = vmatpush1.msra.mxu0 %v1658
      %1693 = vmatprep.subr.mxu0 0.0
      %1694 = vmatpush1.msra.mxu0 %v1657
      %1695 = vmatprep.subr.mxu0 0.0
      %1696 = vmatpush2.msra.mxu0 0.0
      %1697 = vmatprep.subr.mxu0 0.0
      %1698 = vmatpush2.msra.mxu0 0.0
      %1699 = vmatprep.subr.mxu0 0.0
      %1700 = vmatpush2.msra.mxu0 0.0
      %1701 = vmatprep.subr.mxu0 0.0
      %1702 = vmatpush2.msra.mxu0 0.0
      %1703 = vmatprep.subr.mxu0 0.0
      %1704 = vmatpush2.msra.mxu0 0.0
      %1705 = vmatprep.subr.mxu0 0.0
      %1706 = vmatpush2.msra.mxu0 0.0
      %1707 = vmatprep.subr.mxu0 0.0
      %1708 = vmatpush2.msra.mxu0 0.0
      %1709 = vmatprep.subr.mxu0 0.0
      %1710 = vmatpush2.msra.mxu0 0.0
      %1711 = vmatprep.subr.mxu0 0.0
      %1712 = vmatpush2.msra.mxu0 0.0
      %1713 = vmatprep.subr.mxu0 0.0
      %1714 = vmatpush2.msra.mxu0 0.0
      %1715 = vmatprep.subr.mxu0 0.0
      %1716 = vmatpush2.msra.mxu0 0.0
      %1717 = vmatprep.subr.mxu0 0.0
      %1718 = vmatpush2.msra.mxu0 0.0
      %1719 = vmatprep.subr.mxu0 0.0
      %1720 = vmatpush2.msra.mxu0 0.0
      %1721 = vmatprep.subr.mxu0 0.0
      %1722 = vmatpush2.msra.mxu0 0.0
      %1723 = vmatprep.subr.mxu0 0.0
      %1724 = vmatpush2.msra.mxu0 0.0
      %1725 = vmatprep.subr.mxu0 0.0
      %1726 = vmatpush2.msra.mxu0 0.0
      %1727 = vmatprep.mubr.f32.mxu0 0.0
      %1728 = vmatmul.mubr.f32.gmra.mxu0 %v1661
      %v1729 = vpop.f32.mrf.mxu0
      %v1730 = vadd.f32 %v1659, %v1729
      %v1731 = vpop.f32.mrf.mxu0
      %1732 = vdwg.mxu0
      %v1733 = vld [vmem:[%s9] sm:$0xff]
      %v1734 = vld [vmem:[%s9 + $0x8] sm:$0xff]
      %v1735 = vld [vmem:[%s9 + $0x10] sm:$0xff]
      %v1736 = vld [vmem:[%s9 + $0x18] sm:$0xff]
      %v1737 = vld [vmem:[%s10] sm:$0x1]
      %vm1738 = vcmask 261120
      %v1740 = vsel %vm1738, %v1730, 0
      %1742 = vmatprep.subr.mxu0 0.0
      %1743 = vmatpush1.msra.mxu0 0.0
      %1744 = vmatprep.subr.mxu0 0.0
      %1745 = vmatpush1.msra.mxu0 0.0
      %1746 = vmatprep.subr.mxu0 0.0
      %1747 = vmatpush1.msra.mxu0 0.0
      %1748 = vmatprep.subr.mxu0 0.0
      %1749 = vmatpush1.msra.mxu0 0.0
      %1750 = vmatprep.subr.mxu0 0.0
      %1751 = vmatpush1.msra.mxu0 0.0
      %1752 = vmatprep.subr.mxu0 0.0
      %1753 = vmatpush1.msra.mxu0 0.0
      %1754 = vmatprep.subr.mxu0 0.0
      %1755 = vmatpush1.msra.mxu0 0.0
      %1756 = vmatprep.subr.mxu0 0.0
      %1757 = vmatpush1.msra.mxu0 0.0
      %1758 = vmatprep.subr.mxu0 0.0
      %1759 = vmatpush1.msra.mxu0 0.0
      %1760 = vmatprep.subr.mxu0 0.0
      %1761 = vmatpush1.msra.mxu0 0.0
      %1762 = vmatprep.subr.mxu0 0.0
      %1763 = vmatpush1.msra.mxu0 0.0
      %1764 = vmatprep.subr.mxu0 0.0
      %1765 = vmatpush1.msra.mxu0 0.0
      %1766 = vmatprep.subr.mxu0 0.0
      %1767 = vmatpush1.msra.mxu0 %v1736
      %1768 = vmatprep.subr.mxu0 0.0
      %1769 = vmatpush1.msra.mxu0 %v1735
      %1770 = vmatprep.subr.mxu0 0.0
      %1771 = vmatpush1.msra.mxu0 %v1734
      %1772 = vmatprep.subr.mxu0 0.0
      %1773 = vmatpush1.msra.mxu0 %v1733
      %1774 = vmatprep.subr.mxu0 0.0
      %1775 = vmatpush2.msra.mxu0 0.0
      %1776 = vmatprep.subr.mxu0 0.0
      %1777 = vmatpush2.msra.mxu0 0.0
      %1778 = vmatprep.subr.mxu0 0.0
      %1779 = vmatpush2.msra.mxu0 0.0
      %1780 = vmatprep.subr.mxu0 0.0
      %1781 = vmatpush2.msra.mxu0 0.0
      %1782 = vmatprep.subr.mxu0 0.0
      %1783 = vmatpush2.msra.mxu0 0.0
      %1784 = vmatprep.subr.mxu0 0.0
      %1785 = vmatpush2.msra.mxu0 0.0
      %1786 = vmatprep.subr.mxu0 0.0
      %1787 = vmatpush2.msra.mxu0 0.0
      %1788 = vmatprep.subr.mxu0 0.0
      %1789 = vmatpush2.msra.mxu0 0.0
      %1790 = vmatprep.subr.mxu0 0.0
      %1791 = vmatpush2.msra.mxu0 0.0
      %1792 = vmatprep.subr.mxu0 0.0
      %1793 = vmatpush2.msra.mxu0 0.0
      %1794 = vmatprep.subr.mxu0 0.0
      %1795 = vmatpush2.msra.mxu0 0.0
      %1796 = vmatprep.subr.mxu0 0.0
      %1797 = vmatpush2.msra.mxu0 0.0
      %1798 = vmatprep.subr.mxu0 0.0
      %1799 = vmatpush2.msra.mxu0 0.0
      %1800 = vmatprep.subr.mxu0 0.0
      %1801 = vmatpush2.msra.mxu0 0.0
      %1802 = vmatprep.subr.mxu0 0.0
      %1803 = vmatpush2.msra.mxu0 0.0
      %1804 = vmatprep.subr.mxu0 0.0
      %1805 = vmatpush2.msra.mxu0 0.0
      %1806 = vmatprep.mubr.f32.mxu0 0.0
      %1807 = vmatmul.mubr.f32.gmra.mxu0 %v1740
      %v1808 = vpop.f32.mrf.mxu0
      %v1809 = vadd.f32 %v1737, %v1808
      %v1810 = vpop.f32.mrf.mxu0
      %1811 = vdwg.mxu0
      %v1812 = vadd.f32 %v1809, %v1730
      %vm1813 = vcmask 253952
      %v1814 = vsel %vm1813, %v1812, 0.0
      %1815 = vadd.xlane.f32.xlu0 %v1814
      %v1816 = vpop.xlane.xlu0 %1815
      %v1817 = vrcp.pop 32.0
      %v1818 = vmul.f32 %v1816, %v1817
      %v1819 = vsub.f32 %v1812, %v1818
      %v1820 = vmul.f32 %v1819, %v1819
      %v1821 = vsel %vm1813, %v1820, 0.0
      %1822 = vadd.xlane.f32.xlu0 %v1821
      %v1823 = vpop.xlane.xlu0 %1822
      %v1824 = vmul.f32 %v1823, %v1817
      %v1825 = vadd.f32 %v1824, 1e-05
      %v1826 = vrsqrt.pop %v1825
      %v1827 = vmul.f32 %v1819, %v1826
      %v1828 = vld [vmem:[%s11] sm:$0x1]
      %v1829 = vmul.f32 %v1827, %v1828
      %v1830 = vld [vmem:[%s12] sm:$0x1]
      %v1831 = vadd.f32 %v1829, %v1830
      %v1832 = vld [vmem:[%s13] sm:$0x7]
      %v1833 = vlaneseq
      %v1834 = vshrl.u32 %v1833, 7
      %v1835 = vsub.s32 0, %v1834
      %v1836 = vrot.slane %v1831, %v1835
      %1838 = vset.pattern.permute.xlu0 0
      %1839 = vperm.xlu0 %1838, %v1832
      %v1840 = vpop.permute.xlu0 %1839
      %v1842 = vmul.f32 %v1836, %v1840
      %v1843 = vld [vmem:[%s14] sm:$0x7]
      %1845 = vset.pattern.permute.xlu0 0
      %1846 = vperm.xlu0 %1845, %v1843
      %v1847 = vpop.permute.xlu0 %1846
      %v1849 = vadd.f32 %v1842, %v1847
      %v1850 = vld [vmem:[%s17] sm:$0x1]
      %v1851 = vld [vmem:[%s15] sm:$0x7f]
      %vm1852 = vcmask 23552
      %v1854 = vsel %vm1852, %v1851, 0
      %vm1856 = vcmask 1042432
      %v1858 = vsel %vm1856, %v1849, 0
      %1860 = vmatprep.subr.mxu0 0.0
      %1861 = vmatpush1.msra.mxu0 0.0
      %1862 = vmatprep.subr.mxu0 0.0
      %1863 = vmatpush1.msra.mxu0 0.0
      %1864 = vmatprep.subr.mxu0 0.0
      %1865 = vmatpush1.msra.mxu0 0.0
      %1866 = vmatprep.subr.mxu0 0.0
      %1867 = vmatpush1.msra.mxu0 0.0
      %1868 = vmatprep.subr.mxu0 0.0
      %1869 = vmatpush1.msra.mxu0 0.0
      %1870 = vmatprep.subr.mxu0 0.0
      %1871 = vmatpush1.msra.mxu0 0.0
      %1872 = vmatprep.subr.mxu0 0.0
      %1873 = vmatpush1.msra.mxu0 0.0
      %1874 = vmatprep.subr.mxu0 0.0
      %1875 = vmatpush1.msra.mxu0 0.0
      %1876 = vmatprep.subr.mxu0 0.0
      %1877 = vmatpush1.msra.mxu0 0.0
      %1878 = vmatprep.subr.mxu0 0.0
      %1879 = vmatpush1.msra.mxu0 0.0
      %1880 = vmatprep.subr.mxu0 0.0
      %1881 = vmatpush1.msra.mxu0 0.0
      %1882 = vmatprep.subr.mxu0 0.0
      %1883 = vmatpush1.msra.mxu0 0.0
      %1884 = vmatprep.subr.mxu0 0.0
      %1885 = vmatpush1.msra.mxu0 0.0
      %1886 = vmatprep.subr.mxu0 0.0
      %1887 = vmatpush1.msra.mxu0 0.0
      %1888 = vmatprep.subr.mxu0 0.0
      %1889 = vmatpush1.msra.mxu0 0.0
      %1890 = vmatprep.subr.mxu0 0.0
      %1891 = vmatpush1.msra.mxu0 %v1858
      %1892 = vmatprep.subr.mxu0 0.0
      %1893 = vmatpush2.msra.mxu0 0.0
      %1894 = vmatprep.subr.mxu0 0.0
      %1895 = vmatpush2.msra.mxu0 0.0
      %1896 = vmatprep.subr.mxu0 0.0
      %1897 = vmatpush2.msra.mxu0 0.0
      %1898 = vmatprep.subr.mxu0 0.0
      %1899 = vmatpush2.msra.mxu0 0.0
      %1900 = vmatprep.subr.mxu0 0.0
      %1901 = vmatpush2.msra.mxu0 0.0
      %1902 = vmatprep.subr.mxu0 0.0
      %1903 = vmatpush2.msra.mxu0 0.0
      %1904 = vmatprep.subr.mxu0 0.0
      %1905 = vmatpush2.msra.mxu0 0.0
      %1906 = vmatprep.subr.mxu0 0.0
      %1907 = vmatpush2.msra.mxu0 0.0
      %1908 = vmatprep.subr.mxu0 0.0
      %1909 = vmatpush2.msra.mxu0 0.0
      %1910 = vmatprep.subr.mxu0 0.0
      %1911 = vmatpush2.msra.mxu0 0.0
      %1912 = vmatprep.subr.mxu0 0.0
      %1913 = vmatpush2.msra.mxu0 0.0
      %1914 = vmatprep.subr.mxu0 0.0
      %1915 = vmatpush2.msra.mxu0 0.0
      %1916 = vmatprep.subr.mxu0 0.0
      %1917 = vmatpush2.msra.mxu0 0.0
      %1918 = vmatprep.subr.mxu0 0.0
      %1919 = vmatpush2.msra.mxu0 0.0
      %1920 = vmatprep.subr.mxu0 0.0
      %1921 = vmatpush2.msra.mxu0 0.0
      %1922 = vmatprep.subr.mxu0 0.0
      %1923 = vmatpush2.msra.mxu0 0.0
      %1924 = vmatprep.mubr.f32.mxu0 0.0
      %1925 = vmatmul.mubr.f32.gmra.mxu0 %v1854
      %v1926 = vpop.f32.mrf.mxu0
      %v1927 = vadd.f32 0.0, %v1926
      %v1928 = vpop.f32.mrf.mxu0
      %1929 = vdwg.mxu0
      %v1930 = vld [vmem:[%s16] sm:$0xff]
      %v1931 = vld [vmem:[%s16 + $0x8] sm:$0xff]
      %v1932 = vld [vmem:[%s16 + $0x10] sm:$0xff]
      %v1933 = vld [vmem:[%s16 + $0x18] sm:$0xff]
      %v1935 = vsel %vm1738, %v1927, 0
      %1937 = vmatprep.subr.mxu0 0.0
      %1938 = vmatpush1.msra.mxu0 0.0
      %1939 = vmatprep.subr.mxu0 0.0
      %1940 = vmatpush1.msra.mxu0 0.0
      %1941 = vmatprep.subr.mxu0 0.0
      %1942 = vmatpush1.msra.mxu0 0.0
      %1943 = vmatprep.subr.mxu0 0.0
      %1944 = vmatpush1.msra.mxu0 0.0
      %1945 = vmatprep.subr.mxu0 0.0
      %1946 = vmatpush1.msra.mxu0 0.0
      %1947 = vmatprep.subr.mxu0 0.0
      %1948 = vmatpush1.msra.mxu0 0.0
      %1949 = vmatprep.subr.mxu0 0.0
      %1950 = vmatpush1.msra.mxu0 0.0
      %1951 = vmatprep.subr.mxu0 0.0
      %1952 = vmatpush1.msra.mxu0 0.0
      %1953 = vmatprep.subr.mxu0 0.0
      %1954 = vmatpush1.msra.mxu0 0.0
      %1955 = vmatprep.subr.mxu0 0.0
      %1956 = vmatpush1.msra.mxu0 0.0
      %1957 = vmatprep.subr.mxu0 0.0
      %1958 = vmatpush1.msra.mxu0 0.0
      %1959 = vmatprep.subr.mxu0 0.0
      %1960 = vmatpush1.msra.mxu0 0.0
      %1961 = vmatprep.subr.mxu0 0.0
      %1962 = vmatpush1.msra.mxu0 %v1933
      %1963 = vmatprep.subr.mxu0 0.0
      %1964 = vmatpush1.msra.mxu0 %v1932
      %1965 = vmatprep.subr.mxu0 0.0
      %1966 = vmatpush1.msra.mxu0 %v1931
      %1967 = vmatprep.subr.mxu0 0.0
      %1968 = vmatpush1.msra.mxu0 %v1930
      %1969 = vmatprep.subr.mxu0 0.0
      %1970 = vmatpush2.msra.mxu0 0.0
      %1971 = vmatprep.subr.mxu0 0.0
      %1972 = vmatpush2.msra.mxu0 0.0
      %1973 = vmatprep.subr.mxu0 0.0
      %1974 = vmatpush2.msra.mxu0 0.0
      %1975 = vmatprep.subr.mxu0 0.0
      %1976 = vmatpush2.msra.mxu0 0.0
      %1977 = vmatprep.subr.mxu0 0.0
      %1978 = vmatpush2.msra.mxu0 0.0
      %1979 = vmatprep.subr.mxu0 0.0
      %1980 = vmatpush2.msra.mxu0 0.0
      %1981 = vmatprep.subr.mxu0 0.0
      %1982 = vmatpush2.msra.mxu0 0.0
      %1983 = vmatprep.subr.mxu0 0.0
      %1984 = vmatpush2.msra.mxu0 0.0
      %1985 = vmatprep.subr.mxu0 0.0
      %1986 = vmatpush2.msra.mxu0 0.0
      %1987 = vmatprep.subr.mxu0 0.0
      %1988 = vmatpush2.msra.mxu0 0.0
      %1989 = vmatprep.subr.mxu0 0.0
      %1990 = vmatpush2.msra.mxu0 0.0
      %1991 = vmatprep.subr.mxu0 0.0
      %1992 = vmatpush2.msra.mxu0 0.0
      %1993 = vmatprep.subr.mxu0 0.0
      %1994 = vmatpush2.msra.mxu0 0.0
      %1995 = vmatprep.subr.mxu0 0.0
      %1996 = vmatpush2.msra.mxu0 0.0
      %1997 = vmatprep.subr.mxu0 0.0
      %1998 = vmatpush2.msra.mxu0 0.0
      %1999 = vmatprep.subr.mxu0 0.0
      %2000 = vmatpush2.msra.mxu0 0.0
      %2001 = vmatprep.mubr.f32.mxu0 0.0
      %2002 = vmatmul.mubr.f32.gmra.mxu0 %v1935
      %v2003 = vpop.f32.mrf.mxu0
      %v2004 = vadd.f32 0.0, %v2003
      %v2005 = vpop.f32.mrf.mxu0
      %2006 = vdwg.mxu0
      %v2008 = vlaneseq
      %v2009 = vshrl.u32 %v2008, 7
      %v2010 = vsub.s32 0, %v2009
      %v2011 = vrot.slane %v1850, %v2010
      %v2013 = vadd.f32 %v2011, %v2004
      %s2014 = scalar_lea.vmem %s15, 8
      %v2015 = vld [vmem:[%s2014] sm:$0x7f]
      %v2017 = vsel %vm1852, %v2015, 0
      %2019 = vmatprep.subr.mxu0 0.0
      %2020 = vmatpush1.msra.mxu0 0.0
      %2021 = vmatprep.subr.mxu0 0.0
      %2022 = vmatpush1.msra.mxu0 0.0
      %2023 = vmatprep.subr.mxu0 0.0
      %2024 = vmatpush1.msra.mxu0 0.0
      %2025 = vmatprep.subr.mxu0 0.0
      %2026 = vmatpush1.msra.mxu0 0.0
      %2027 = vmatprep.subr.mxu0 0.0
      %2028 = vmatpush1.msra.mxu0 0.0
      %2029 = vmatprep.subr.mxu0 0.0
      %2030 = vmatpush1.msra.mxu0 0.0
      %2031 = vmatprep.subr.mxu0 0.0
      %2032 = vmatpush1.msra.mxu0 0.0
      %2033 = vmatprep.subr.mxu0 0.0
      %2034 = vmatpush1.msra.mxu0 0.0
      %2035 = vmatprep.subr.mxu0 0.0
      %2036 = vmatpush1.msra.mxu0 0.0
      %2037 = vmatprep.subr.mxu0 0.0
      %2038 = vmatpush1.msra.mxu0 0.0
      %2039 = vmatprep.subr.mxu0 0.0
      %2040 = vmatpush1.msra.mxu0 0.0
      %2041 = vmatprep.subr.mxu0 0.0
      %2042 = vmatpush1.msra.mxu0 0.0
      %2043 = vmatprep.subr.mxu0 0.0
      %2044 = vmatpush1.msra.mxu0 0.0
      %2045 = vmatprep.subr.mxu0 0.0
      %2046 = vmatpush1.msra.mxu0 0.0
      %2047 = vmatprep.subr.mxu0 0.0
      %2048 = vmatpush1.msra.mxu0 0.0
      %2049 = vmatprep.subr.mxu0 0.0
      %2050 = vmatpush1.msra.mxu0 %v1858
      %2051 = vmatprep.subr.mxu0 0.0
      %2052 = vmatpush2.msra.mxu0 0.0
      %2053 = vmatprep.subr.mxu0 0.0
      %2054 = vmatpush2.msra.mxu0 0.0
      %2055 = vmatprep.subr.mxu0 0.0
      %2056 = vmatpush2.msra.mxu0 0.0
      %2057 = vmatprep.subr.mxu0 0.0
      %2058 = vmatpush2.msra.mxu0 0.0
      %2059 = vmatprep.subr.mxu0 0.0
      %2060 = vmatpush2.msra.mxu0 0.0
      %2061 = vmatprep.subr.mxu0 0.0
      %2062 = vmatpush2.msra.mxu0 0.0
      %2063 = vmatprep.subr.mxu0 0.0
      %2064 = vmatpush2.msra.mxu0 0.0
      %2065 = vmatprep.subr.mxu0 0.0
      %2066 = vmatpush2.msra.mxu0 0.0
      %2067 = vmatprep.subr.mxu0 0.0
      %2068 = vmatpush2.msra.mxu0 0.0
      %2069 = vmatprep.subr.mxu0 0.0
      %2070 = vmatpush2.msra.mxu0 0.0
      %2071 = vmatprep.subr.mxu0 0.0
      %2072 = vmatpush2.msra.mxu0 0.0
      %2073 = vmatprep.subr.mxu0 0.0
      %2074 = vmatpush2.msra.mxu0 0.0
      %2075 = vmatprep.subr.mxu0 0.0
      %2076 = vmatpush2.msra.mxu0 0.0
      %2077 = vmatprep.subr.mxu0 0.0
      %2078 = vmatpush2.msra.mxu0 0.0
      %2079 = vmatprep.subr.mxu0 0.0
      %2080 = vmatpush2.msra.mxu0 0.0
      %2081 = vmatprep.subr.mxu0 0.0
      %2082 = vmatpush2.msra.mxu0 0.0
      %2083 = vmatprep.mubr.f32.mxu0 0.0
      %2084 = vmatmul.mubr.f32.gmra.mxu0 %v2017
      %v2085 = vpop.f32.mrf.mxu0
      %v2086 = vadd.f32 0.0, %v2085
      %v2087 = vpop.f32.mrf.mxu0
      %2088 = vdwg.mxu0
      %s2089 = scalar_lea.vmem %s16, 32
      %v2090 = vld [vmem:[%s2089] sm:$0xff]
      %v2091 = vld [vmem:[%s2089 + $0x8] sm:$0xff]
      %v2092 = vld [vmem:[%s2089 + $0x10] sm:$0xff]
      %v2093 = vld [vmem:[%s2089 + $0x18] sm:$0xff]
      %v2095 = vsel %vm1738, %v2086, 0
      %2097 = vmatprep.subr.mxu0 0.0
      %2098 = vmatpush1.msra.mxu0 0.0
      %2099 = vmatprep.subr.mxu0 0.0
      %2100 = vmatpush1.msra.mxu0 0.0
      %2101 = vmatprep.subr.mxu0 0.0
      %2102 = vmatpush1.msra.mxu0 0.0
      %2103 = vmatprep.subr.mxu0 0.0
      %2104 = vmatpush1.msra.mxu0 0.0
      %2105 = vmatprep.subr.mxu0 0.0
      %2106 = vmatpush1.msra.mxu0 0.0
      %2107 = vmatprep.subr.mxu0 0.0
      %2108 = vmatpush1.msra.mxu0 0.0
      %2109 = vmatprep.subr.mxu0 0.0
      %2110 = vmatpush1.msra.mxu0 0.0
      %2111 = vmatprep.subr.mxu0 0.0
      %2112 = vmatpush1.msra.mxu0 0.0
      %2113 = vmatprep.subr.mxu0 0.0
      %2114 = vmatpush1.msra.mxu0 0.0
      %2115 = vmatprep.subr.mxu0 0.0
      %2116 = vmatpush1.msra.mxu0 0.0
      %2117 = vmatprep.subr.mxu0 0.0
      %2118 = vmatpush1.msra.mxu0 0.0
      %2119 = vmatprep.subr.mxu0 0.0
      %2120 = vmatpush1.msra.mxu0 0.0
      %2121 = vmatprep.subr.mxu0 0.0
      %2122 = vmatpush1.msra.mxu0 %v2093
      %2123 = vmatprep.subr.mxu0 0.0
      %2124 = vmatpush1.msra.mxu0 %v2092
      %2125 = vmatprep.subr.mxu0 0.0
      %2126 = vmatpush1.msra.mxu0 %v2091
      %2127 = vmatprep.subr.mxu0 0.0
      %2128 = vmatpush1.msra.mxu0 %v2090
      %2129 = vmatprep.subr.mxu0 0.0
      %2130 = vmatpush2.msra.mxu0 0.0
      %2131 = vmatprep.subr.mxu0 0.0
      %2132 = vmatpush2.msra.mxu0 0.0
      %2133 = vmatprep.subr.mxu0 0.0
      %2134 = vmatpush2.msra.mxu0 0.0
      %2135 = vmatprep.subr.mxu0 0.0
      %2136 = vmatpush2.msra.mxu0 0.0
      %2137 = vmatprep.subr.mxu0 0.0
      %2138 = vmatpush2.msra.mxu0 0.0
      %2139 = vmatprep.subr.mxu0 0.0
      %2140 = vmatpush2.msra.mxu0 0.0
      %2141 = vmatprep.subr.mxu0 0.0
      %2142 = vmatpush2.msra.mxu0 0.0
      %2143 = vmatprep.subr.mxu0 0.0
      %2144 = vmatpush2.msra.mxu0 0.0
      %2145 = vmatprep.subr.mxu0 0.0
      %2146 = vmatpush2.msra.mxu0 0.0
      %2147 = vmatprep.subr.mxu0 0.0
      %2148 = vmatpush2.msra.mxu0 0.0
      %2149 = vmatprep.subr.mxu0 0.0
      %2150 = vmatpush2.msra.mxu0 0.0
      %2151 = vmatprep.subr.mxu0 0.0
      %2152 = vmatpush2.msra.mxu0 0.0
      %2153 = vmatprep.subr.mxu0 0.0
      %2154 = vmatpush2.msra.mxu0 0.0
      %2155 = vmatprep.subr.mxu0 0.0
      %2156 = vmatpush2.msra.mxu0 0.0
      %2157 = vmatprep.subr.mxu0 0.0
      %2158 = vmatpush2.msra.mxu0 0.0
      %2159 = vmatprep.subr.mxu0 0.0
      %2160 = vmatpush2.msra.mxu0 0.0
      %2161 = vmatprep.mubr.f32.mxu0 0.0
      %2162 = vmatmul.mubr.f32.gmra.mxu0 %v2095
      %v2163 = vpop.f32.mrf.mxu0
      %v2164 = vadd.f32 0.0, %v2163
      %v2165 = vpop.f32.mrf.mxu0
      %2166 = vdwg.mxu0
      %v2167 = vadd.f32 %v2013, %v2164
      %s2168 = scalar_lea.vmem %s15, 16
      %v2169 = vld [vmem:[%s2168] sm:$0x7f]
      %v2171 = vsel %vm1852, %v2169, 0
      %2173 = vmatprep.subr.mxu0 0.0
      %2174 = vmatpush1.msra.mxu0 0.0
      %2175 = vmatprep.subr.mxu0 0.0
      %2176 = vmatpush1.msra.mxu0 0.0
      %2177 = vmatprep.subr.mxu0 0.0
      %2178 = vmatpush1.msra.mxu0 0.0
      %2179 = vmatprep.subr.mxu0 0.0
      %2180 = vmatpush1.msra.mxu0 0.0
      %2181 = vmatprep.subr.mxu0 0.0
      %2182 = vmatpush1.msra.mxu0 0.0
      %2183 = vmatprep.subr.mxu0 0.0
      %2184 = vmatpush1.msra.mxu0 0.0
      %2185 = vmatprep.subr.mxu0 0.0
      %2186 = vmatpush1.msra.mxu0 0.0
      %2187 = vmatprep.subr.mxu0 0.0
      %2188 = vmatpush1.msra.mxu0 0.0
      %2189 = vmatprep.subr.mxu0 0.0
      %2190 = vmatpush1.msra.mxu0 0.0
      %2191 = vmatprep.subr.mxu0 0.0
      %2192 = vmatpush1.msra.mxu0 0.0
      %2193 = vmatprep.subr.mxu0 0.0
      %2194 = vmatpush1.msra.mxu0 0.0
      %2195 = vmatprep.subr.mxu0 0.0
      %2196 = vmatpush1.msra.mxu0 0.0
      %2197 = vmatprep.subr.mxu0 0.0
      %2198 = vmatpush1.msra.mxu0 0.0
      %2199 = vmatprep.subr.mxu0 0.0
      %2200 = vmatpush1.msra.mxu0 0.0
      %2201 = vmatprep.subr.mxu0 0.0
      %2202 = vmatpush1.msra.mxu0 0.0
      %2203 = vmatprep.subr.mxu0 0.0
      %2204 = vmatpush1.msra.mxu0 %v1858
      %2205 = vmatprep.subr.mxu0 0.0
      %2206 = vmatpush2.msra.mxu0 0.0
      %2207 = vmatprep.subr.mxu0 0.0
      %2208 = vmatpush2.msra.mxu0 0.0
      %2209 = vmatprep.subr.mxu0 0.0
      %2210 = vmatpush2.msra.mxu0 0.0
      %2211 = vmatprep.subr.mxu0 0.0
      %2212 = vmatpush2.msra.mxu0 0.0
      %2213 = vmatprep.subr.mxu0 0.0
      %2214 = vmatpush2.msra.mxu0 0.0
      %2215 = vmatprep.subr.mxu0 0.0
      %2216 = vmatpush2.msra.mxu0 0.0
      %2217 = vmatprep.subr.mxu0 0.0
      %2218 = vmatpush2.msra.mxu0 0.0
      %2219 = vmatprep.subr.mxu0 0.0
      %2220 = vmatpush2.msra.mxu0 0.0
      %2221 = vmatprep.subr.mxu0 0.0
      %2222 = vmatpush2.msra.mxu0 0.0
      %2223 = vmatprep.subr.mxu0 0.0
      %2224 = vmatpush2.msra.mxu0 0.0
      %2225 = vmatprep.subr.mxu0 0.0
      %2226 = vmatpush2.msra.mxu0 0.0
      %2227 = vmatprep.subr.mxu0 0.0
      %2228 = vmatpush2.msra.mxu0 0.0
      %2229 = vmatprep.subr.mxu0 0.0
      %2230 = vmatpush2.msra.mxu0 0.0
      %2231 = vmatprep.subr.mxu0 0.0
      %2232 = vmatpush2.msra.mxu0 0.0
      %2233 = vmatprep.subr.mxu0 0.0
      %2234 = vmatpush2.msra.mxu0 0.0
      %2235 = vmatprep.subr.mxu0 0.0
      %2236 = vmatpush2.msra.mxu0 0.0
      %2237 = vmatprep.mubr.f32.mxu0 0.0
      %2238 = vmatmul.mubr.f32.gmra.mxu0 %v2171
      %v2239 = vpop.f32.mrf.mxu0
      %v2240 = vadd.f32 0.0, %v2239
      %v2241 = vpop.f32.mrf.mxu0
      %2242 = vdwg.mxu0
      %s2243 = scalar_lea.vmem %s16, 64
      %v2244 = vld [vmem:[%s2243] sm:$0xff]
      %v2245 = vld [vmem:[%s2243 + $0x8] sm:$0xff]
      %v2246 = vld [vmem:[%s2243 + $0x10] sm:$0xff]
      %v2247 = vld [vmem:[%s2243 + $0x18] sm:$0xff]
      %v2249 = vsel %vm1738, %v2240, 0
      %2251 = vmatprep.subr.mxu0 0.0
      %2252 = vmatpush1.msra.mxu0 0.0
      %2253 = vmatprep.subr.mxu0 0.0
      %2254 = vmatpush1.msra.mxu0 0.0
      %2255 = vmatprep.subr.mxu0 0.0
      %2256 = vmatpush1.msra.mxu0 0.0
      %2257 = vmatprep.subr.mxu0 0.0
      %2258 = vmatpush1.msra.mxu0 0.0
      %2259 = vmatprep.subr.mxu0 0.0
      %2260 = vmatpush1.msra.mxu0 0.0
      %2261 = vmatprep.subr.mxu0 0.0
      %2262 = vmatpush1.msra.mxu0 0.0
      %2263 = vmatprep.subr.mxu0 0.0
      %2264 = vmatpush1.msra.mxu0 0.0
      %2265 = vmatprep.subr.mxu0 0.0
      %2266 = vmatpush1.msra.mxu0 0.0
      %2267 = vmatprep.subr.mxu0 0.0
      %2268 = vmatpush1.msra.mxu0 0.0
      %2269 = vmatprep.subr.mxu0 0.0
      %2270 = vmatpush1.msra.mxu0 0.0
      %2271 = vmatprep.subr.mxu0 0.0
      %2272 = vmatpush1.msra.mxu0 0.0
      %2273 = vmatprep.subr.mxu0 0.0
      %2274 = vmatpush1.msra.mxu0 0.0
      %2275 = vmatprep.subr.mxu0 0.0
      %2276 = vmatpush1.msra.mxu0 %v2247
      %2277 = vmatprep.subr.mxu0 0.0
      %2278 = vmatpush1.msra.mxu0 %v2246
      %2279 = vmatprep.subr.mxu0 0.0
      %2280 = vmatpush1.msra.mxu0 %v2245
      %2281 = vmatprep.subr.mxu0 0.0
      %2282 = vmatpush1.msra.mxu0 %v2244
      %2283 = vmatprep.subr.mxu0 0.0
      %2284 = vmatpush2.msra.mxu0 0.0
      %2285 = vmatprep.subr.mxu0 0.0
      %2286 = vmatpush2.msra.mxu0 0.0
      %2287 = vmatprep.subr.mxu0 0.0
      %2288 = vmatpush2.msra.mxu0 0.0
      %2289 = vmatprep.subr.mxu0 0.0
      %2290 = vmatpush2.msra.mxu0 0.0
      %2291 = vmatprep.subr.mxu0 0.0
      %2292 = vmatpush2.msra.mxu0 0.0
      %2293 = vmatprep.subr.mxu0 0.0
      %2294 = vmatpush2.msra.mxu0 0.0
      %2295 = vmatprep.subr.mxu0 0.0
      %2296 = vmatpush2.msra.mxu0 0.0
      %2297 = vmatprep.subr.mxu0 0.0
      %2298 = vmatpush2.msra.mxu0 0.0
      %2299 = vmatprep.subr.mxu0 0.0
      %2300 = vmatpush2.msra.mxu0 0.0
      %2301 = vmatprep.subr.mxu0 0.0
      %2302 = vmatpush2.msra.mxu0 0.0
      %2303 = vmatprep.subr.mxu0 0.0
      %2304 = vmatpush2.msra.mxu0 0.0
      %2305 = vmatprep.subr.mxu0 0.0
      %2306 = vmatpush2.msra.mxu0 0.0
      %2307 = vmatprep.subr.mxu0 0.0
      %2308 = vmatpush2.msra.mxu0 0.0
      %2309 = vmatprep.subr.mxu0 0.0
      %2310 = vmatpush2.msra.mxu0 0.0
      %2311 = vmatprep.subr.mxu0 0.0
      %2312 = vmatpush2.msra.mxu0 0.0
      %2313 = vmatprep.subr.mxu0 0.0
      %2314 = vmatpush2.msra.mxu0 0.0
      %2315 = vmatprep.mubr.f32.mxu0 0.0
      %2316 = vmatmul.mubr.f32.gmra.mxu0 %v2249
      %v2317 = vpop.f32.mrf.mxu0
      %v2318 = vadd.f32 0.0, %v2317
      %v2319 = vpop.f32.mrf.mxu0
      %2320 = vdwg.mxu0
      %v2321 = vadd.f32 %v2167, %v2318
      %v2322 = vmax.f32 %v2321, 0.0
      %v2323 = vld [vmem:[%s20] sm:$0x1]
      %v2324 = vld [vmem:[%s18] sm:$0xff]
      %v2325 = vld [vmem:[%s18 + $0x8] sm:$0xff]
      %v2327 = vsel %vm1186, %v2324, 0
      %v2330 = vsel %vm1186, %v2325, 0
      %v2333 = vsel %vm1190, %v2322, 0
      %2335 = vmatprep.subr.mxu0 0.0
      %2336 = vmatpush1.msra.mxu0 0.0
      %2337 = vmatprep.subr.mxu0 0.0
      %2338 = vmatpush1.msra.mxu0 0.0
      %2339 = vmatprep.subr.mxu0 0.0
      %2340 = vmatpush1.msra.mxu0 0.0
      %2341 = vmatprep.subr.mxu0 0.0
      %2342 = vmatpush1.msra.mxu0 0.0
      %2343 = vmatprep.subr.mxu0 0.0
      %2344 = vmatpush1.msra.mxu0 0.0
      %2345 = vmatprep.subr.mxu0 0.0
      %2346 = vmatpush1.msra.mxu0 0.0
      %2347 = vmatprep.subr.mxu0 0.0
      %2348 = vmatpush1.msra.mxu0 0.0
      %2349 = vmatprep.subr.mxu0 0.0
      %2350 = vmatpush1.msra.mxu0 0.0
      %2351 = vmatprep.subr.mxu0 0.0
      %2352 = vmatpush1.msra.mxu0 0.0
      %2353 = vmatprep.subr.mxu0 0.0
      %2354 = vmatpush1.msra.mxu0 0.0
      %2355 = vmatprep.subr.mxu0 0.0
      %2356 = vmatpush1.msra.mxu0 0.0
      %2357 = vmatprep.subr.mxu0 0.0
      %2358 = vmatpush1.msra.mxu0 0.0
      %2359 = vmatprep.subr.mxu0 0.0
      %2360 = vmatpush1.msra.mxu0 0.0
      %2361 = vmatprep.subr.mxu0 0.0
      %2362 = vmatpush1.msra.mxu0 0.0
      %2363 = vmatprep.subr.mxu0 0.0
      %2364 = vmatpush1.msra.mxu0 0.0
      %2365 = vmatprep.subr.mxu0 0.0
      %2366 = vmatpush1.msra.mxu0 %v2333
      %2367 = vmatprep.subr.mxu0 0.0
      %2368 = vmatpush2.msra.mxu0 0.0
      %2369 = vmatprep.subr.mxu0 0.0
      %2370 = vmatpush2.msra.mxu0 0.0
      %2371 = vmatprep.subr.mxu0 0.0
      %2372 = vmatpush2.msra.mxu0 0.0
      %2373 = vmatprep.subr.mxu0 0.0
      %2374 = vmatpush2.msra.mxu0 0.0
      %2375 = vmatprep.subr.mxu0 0.0
      %2376 = vmatpush2.msra.mxu0 0.0
      %2377 = vmatprep.subr.mxu0 0.0
      %2378 = vmatpush2.msra.mxu0 0.0
      %2379 = vmatprep.subr.mxu0 0.0
      %2380 = vmatpush2.msra.mxu0 0.0
      %2381 = vmatprep.subr.mxu0 0.0
      %2382 = vmatpush2.msra.mxu0 0.0
      %2383 = vmatprep.subr.mxu0 0.0
      %2384 = vmatpush2.msra.mxu0 0.0
      %2385 = vmatprep.subr.mxu0 0.0
      %2386 = vmatpush2.msra.mxu0 0.0
      %2387 = vmatprep.subr.mxu0 0.0
      %2388 = vmatpush2.msra.mxu0 0.0
      %2389 = vmatprep.subr.mxu0 0.0
      %2390 = vmatpush2.msra.mxu0 0.0
      %2391 = vmatprep.subr.mxu0 0.0
      %2392 = vmatpush2.msra.mxu0 0.0
      %2393 = vmatprep.subr.mxu0 0.0
      %2394 = vmatpush2.msra.mxu0 0.0
      %2395 = vmatprep.subr.mxu0 0.0
      %2396 = vmatpush2.msra.mxu0 0.0
      %2397 = vmatprep.subr.mxu0 0.0
      %2398 = vmatpush2.msra.mxu0 0.0
      %2399 = vmatprep.mubr.f32.mxu0 0.0
      %2400 = vmatmul.mubr.f32.gmra.mxu0 %v2327
      %v2401 = vpop.f32.mrf.mxu0
      %v2402 = vadd.f32 0.0, %v2401
      %v2403 = vpop.f32.mrf.mxu0
      %2404 = vmatprep.mubr.f32.mxu0 0.0
      %2405 = vmatmul.mubr.f32.gmra.mxu0 %v2330
      %v2406 = vpop.f32.mrf.mxu0
      %v2407 = vadd.f32 0.0, %v2406
      %v2408 = vpop.f32.mrf.mxu0
      %2409 = vdwg.mxu0
      %v2410 = vld [vmem:[%s19] sm:$0xff]
      %v2411 = vld [vmem:[%s19 + $0x8] sm:$0xff]
      %v2413 = vsel %vm715, %v2402, 0
      %v2416 = vsel %vm715, %v2407, 0
      %2418 = vmatprep.subr.mxu0 0.0
      %2419 = vmatpush1.msra.mxu0 0.0
      %2420 = vmatprep.subr.mxu0 0.0
      %2421 = vmatpush1.msra.mxu0 0.0
      %2422 = vmatprep.subr.mxu0 0.0
      %2423 = vmatpush1.msra.mxu0 0.0
      %2424 = vmatprep.subr.mxu0 0.0
      %2425 = vmatpush1.msra.mxu0 0.0
      %2426 = vmatprep.subr.mxu0 0.0
      %2427 = vmatpush1.msra.mxu0 0.0
      %2428 = vmatprep.subr.mxu0 0.0
      %2429 = vmatpush1.msra.mxu0 0.0
      %2430 = vmatprep.subr.mxu0 0.0
      %2431 = vmatpush1.msra.mxu0 0.0
      %2432 = vmatprep.subr.mxu0 0.0
      %2433 = vmatpush1.msra.mxu0 0.0
      %2434 = vmatprep.subr.mxu0 0.0
      %2435 = vmatpush1.msra.mxu0 0.0
      %2436 = vmatprep.subr.mxu0 0.0
      %2437 = vmatpush1.msra.mxu0 0.0
      %2438 = vmatprep.subr.mxu0 0.0
      %2439 = vmatpush1.msra.mxu0 0.0
      %2440 = vmatprep.subr.mxu0 0.0
      %2441 = vmatpush1.msra.mxu0 0.0
      %2442 = vmatprep.subr.mxu0 0.0
      %2443 = vmatpush1.msra.mxu0 0.0
      %2444 = vmatprep.subr.mxu0 0.0
      %2445 = vmatpush1.msra.mxu0 0.0
      %2446 = vmatprep.subr.mxu0 0.0
      %2447 = vmatpush1.msra.mxu0 %v2411
      %2448 = vmatprep.subr.mxu0 0.0
      %2449 = vmatpush1.msra.mxu0 %v2410
      %2450 = vmatprep.subr.mxu0 0.0
      %2451 = vmatpush2.msra.mxu0 0.0
      %2452 = vmatprep.subr.mxu0 0.0
      %2453 = vmatpush2.msra.mxu0 0.0
      %2454 = vmatprep.subr.mxu0 0.0
      %2455 = vmatpush2.msra.mxu0 0.0
      %2456 = vmatprep.subr.mxu0 0.0
      %2457 = vmatpush2.msra.mxu0 0.0
      %2458 = vmatprep.subr.mxu0 0.0
      %2459 = vmatpush2.msra.mxu0 0.0
      %2460 = vmatprep.subr.mxu0 0.0
      %2461 = vmatpush2.msra.mxu0 0.0
      %2462 = vmatprep.subr.mxu0 0.0
      %2463 = vmatpush2.msra.mxu0 0.0
      %2464 = vmatprep.subr.mxu0 0.0
      %2465 = vmatpush2.msra.mxu0 0.0
      %2466 = vmatprep.subr.mxu0 0.0
      %2467 = vmatpush2.msra.mxu0 0.0
      %2468 = vmatprep.subr.mxu0 0.0
      %2469 = vmatpush2.msra.mxu0 0.0
      %2470 = vmatprep.subr.mxu0 0.0
      %2471 = vmatpush2.msra.mxu0 0.0
      %2472 = vmatprep.subr.mxu0 0.0
      %2473 = vmatpush2.msra.mxu0 0.0
      %2474 = vmatprep.subr.mxu0 0.0
      %2475 = vmatpush2.msra.mxu0 0.0
      %2476 = vmatprep.subr.mxu0 0.0
      %2477 = vmatpush2.msra.mxu0 0.0
      %2478 = vmatprep.subr.mxu0 0.0
      %2479 = vmatpush2.msra.mxu0 0.0
      %2480 = vmatprep.subr.mxu0 0.0
      %2481 = vmatpush2.msra.mxu0 0.0
      %2482 = vmatprep.mubr.f32.mxu0 0.0
      %2483 = vmatmul.mubr.f32.gmra.mxu0 %v2413
      %v2484 = vpop.f32.mrf.mxu0
      %v2485 = vadd.f32 0.0, %v2484
      %v2486 = vpop.f32.mrf.mxu0
      %2487 = vmatprep.mubr.f32.mxu0 0.0
      %2488 = vmatmul.mubr.f32.gmra.mxu0 %v2416
      %v2489 = vpop.f32.mrf.mxu0
      %v2490 = vadd.f32 0.0, %v2489
      %v2491 = vpop.f32.mrf.mxu0
      %2492 = vdwg.mxu0
      %v2494 = vlaneseq
      %v2495 = vshrl.u32 %v2494, 7
      %v2496 = vsub.s32 0, %v2495
      %v2497 = vrot.slane %v2323, %v2496
      %v2499 = vadd.f32 %v2497, %v2485
      %v2500 = vadd.f32 %v2497, %v2490
      %s2501 = scalar_lea.vmem %s18, 16
      %v2502 = vld [vmem:[%s2501] sm:$0xff]
      %v2503 = vld [vmem:[%s2501 + $0x8] sm:$0xff]
      %v2505 = vsel %vm1186, %v2502, 0
      %v2508 = vsel %vm1186, %v2503, 0
      %2510 = vmatprep.subr.mxu0 0.0
      %2511 = vmatpush1.msra.mxu0 0.0
      %2512 = vmatprep.subr.mxu0 0.0
      %2513 = vmatpush1.msra.mxu0 0.0
      %2514 = vmatprep.subr.mxu0 0.0
      %2515 = vmatpush1.msra.mxu0 0.0
      %2516 = vmatprep.subr.mxu0 0.0
      %2517 = vmatpush1.msra.mxu0 0.0
      %2518 = vmatprep.subr.mxu0 0.0
      %2519 = vmatpush1.msra.mxu0 0.0
      %2520 = vmatprep.subr.mxu0 0.0
      %2521 = vmatpush1.msra.mxu0 0.0
      %2522 = vmatprep.subr.mxu0 0.0
      %2523 = vmatpush1.msra.mxu0 0.0
      %2524 = vmatprep.subr.mxu0 0.0
      %2525 = vmatpush1.msra.mxu0 0.0
      %2526 = vmatprep.subr.mxu0 0.0
      %2527 = vmatpush1.msra.mxu0 0.0
      %2528 = vmatprep.subr.mxu0 0.0
      %2529 = vmatpush1.msra.mxu0 0.0
      %2530 = vmatprep.subr.mxu0 0.0
      %2531 = vmatpush1.msra.mxu0 0.0
      %2532 = vmatprep.subr.mxu0 0.0
      %2533 = vmatpush1.msra.mxu0 0.0
      %2534 = vmatprep.subr.mxu0 0.0
      %2535 = vmatpush1.msra.mxu0 0.0
      %2536 = vmatprep.subr.mxu0 0.0
      %2537 = vmatpush1.msra.mxu0 0.0
      %2538 = vmatprep.subr.mxu0 0.0
      %2539 = vmatpush1.msra.mxu0 0.0
      %2540 = vmatprep.subr.mxu0 0.0
      %2541 = vmatpush1.msra.mxu0 %v2333
      %2542 = vmatprep.subr.mxu0 0.0
      %2543 = vmatpush2.msra.mxu0 0.0
      %2544 = vmatprep.subr.mxu0 0.0
      %2545 = vmatpush2.msra.mxu0 0.0
      %2546 = vmatprep.subr.mxu0 0.0
      %2547 = vmatpush2.msra.mxu0 0.0
      %2548 = vmatprep.subr.mxu0 0.0
      %2549 = vmatpush2.msra.mxu0 0.0
      %2550 = vmatprep.subr.mxu0 0.0
      %2551 = vmatpush2.msra.mxu0 0.0
      %2552 = vmatprep.subr.mxu0 0.0
      %2553 = vmatpush2.msra.mxu0 0.0
      %2554 = vmatprep.subr.mxu0 0.0
      %2555 = vmatpush2.msra.mxu0 0.0
      %2556 = vmatprep.subr.mxu0 0.0
      %2557 = vmatpush2.msra.mxu0 0.0
      %2558 = vmatprep.subr.mxu0 0.0
      %2559 = vmatpush2.msra.mxu0 0.0
      %2560 = vmatprep.subr.mxu0 0.0
      %2561 = vmatpush2.msra.mxu0 0.0
      %2562 = vmatprep.subr.mxu0 0.0
      %2563 = vmatpush2.msra.mxu0 0.0
      %2564 = vmatprep.subr.mxu0 0.0
      %2565 = vmatpush2.msra.mxu0 0.0
      %2566 = vmatprep.subr.mxu0 0.0
      %2567 = vmatpush2.msra.mxu0 0.0
      %2568 = vmatprep.subr.mxu0 0.0
      %2569 = vmatpush2.msra.mxu0 0.0
      %2570 = vmatprep.subr.mxu0 0.0
      %2571 = vmatpush2.msra.mxu0 0.0
      %2572 = vmatprep.subr.mxu0 0.0
      %2573 = vmatpush2.msra.mxu0 0.0
      %2574 = vmatprep.mubr.f32.mxu0 0.0
      %2575 = vmatmul.mubr.f32.gmra.mxu0 %v2505
      %v2576 = vpop.f32.mrf.mxu0
      %v2577 = vadd.f32 0.0, %v2576
      %v2578 = vpop.f32.mrf.mxu0
      %2579 = vmatprep.mubr.f32.mxu0 0.0
      %2580 = vmatmul.mubr.f32.gmra.mxu0 %v2508
      %v2581 = vpop.f32.mrf.mxu0
      %v2582 = vadd.f32 0.0, %v2581
      %v2583 = vpop.f32.mrf.mxu0
      %2584 = vdwg.mxu0
      %s2585 = scalar_lea.vmem %s19, 16
      %v2586 = vld [vmem:[%s2585] sm:$0xff]
      %v2587 = vld [vmem:[%s2585 + $0x8] sm:$0xff]
      %v2589 = vsel %vm715, %v2577, 0
      %v2592 = vsel %vm715, %v2582, 0
      %2594 = vmatprep.subr.mxu0 0.0
      %2595 = vmatpush1.msra.mxu0 0.0
      %2596 = vmatprep.subr.mxu0 0.0
      %2597 = vmatpush1.msra.mxu0 0.0
      %2598 = vmatprep.subr.mxu0 0.0
      %2599 = vmatpush1.msra.mxu0 0.0
      %2600 = vmatprep.subr.mxu0 0.0
      %2601 = vmatpush1.msra.mxu0 0.0
      %2602 = vmatprep.subr.mxu0 0.0
      %2603 = vmatpush1.msra.mxu0 0.0
      %2604 = vmatprep.subr.mxu0 0.0
      %2605 = vmatpush1.msra.mxu0 0.0
      %2606 = vmatprep.subr.mxu0 0.0
      %2607 = vmatpush1.msra.mxu0 0.0
      %2608 = vmatprep.subr.mxu0 0.0
      %2609 = vmatpush1.msra.mxu0 0.0
      %2610 = vmatprep.subr.mxu0 0.0
      %2611 = vmatpush1.msra.mxu0 0.0
      %2612 = vmatprep.subr.mxu0 0.0
      %2613 = vmatpush1.msra.mxu0 0.0
      %2614 = vmatprep.subr.mxu0 0.0
      %2615 = vmatpush1.msra.mxu0 0.0
      %2616 = vmatprep.subr.mxu0 0.0
      %2617 = vmatpush1.msra.mxu0 0.0
      %2618 = vmatprep.subr.mxu0 0.0
      %2619 = vmatpush1.msra.mxu0 0.0
      %2620 = vmatprep.subr.mxu0 0.0
      %2621 = vmatpush1.msra.mxu0 0.0
      %2622 = vmatprep.subr.mxu0 0.0
      %2623 = vmatpush1.msra.mxu0 %v2587
      %2624 = vmatprep.subr.mxu0 0.0
      %2625 = vmatpush1.msra.mxu0 %v2586
      %2626 = vmatprep.subr.mxu0 0.0
      %2627 = vmatpush2.msra.mxu0 0.0
      %2628 = vmatprep.subr.mxu0 0.0
      %2629 = vmatpush2.msra.mxu0 0.0
      %2630 = vmatprep.subr.mxu0 0.0
      %2631 = vmatpush2.msra.mxu0 0.0
      %2632 = vmatprep.subr.mxu0 0.0
      %2633 = vmatpush2.msra.mxu0 0.0
      %2634 = vmatprep.subr.mxu0 0.0
      %2635 = vmatpush2.msra.mxu0 0.0
      %2636 = vmatprep.subr.mxu0 0.0
      %2637 = vmatpush2.msra.mxu0 0.0
      %2638 = vmatprep.subr.mxu0 0.0
      %2639 = vmatpush2.msra.mxu0 0.0
      %2640 = vmatprep.subr.mxu0 0.0
      %2641 = vmatpush2.msra.mxu0 0.0
      %2642 = vmatprep.subr.mxu0 0.0
      %2643 = vmatpush2.msra.mxu0 0.0
      %2644 = vmatprep.subr.mxu0 0.0
      %2645 = vmatpush2.msra.mxu0 0.0
      %2646 = vmatprep.subr.mxu0 0.0
      %2647 = vmatpush2.msra.mxu0 0.0
      %2648 = vmatprep.subr.mxu0 0.0
      %2649 = vmatpush2.msra.mxu0 0.0
      %2650 = vmatprep.subr.mxu0 0.0
      %2651 = vmatpush2.msra.mxu0 0.0
      %2652 = vmatprep.subr.mxu0 0.0
      %2653 = vmatpush2.msra.mxu0 0.0
      %2654 = vmatprep.subr.mxu0 0.0
      %2655 = vmatpush2.msra.mxu0 0.0
      %2656 = vmatprep.subr.mxu0 0.0
      %2657 = vmatpush2.msra.mxu0 0.0
      %2658 = vmatprep.mubr.f32.mxu0 0.0
      %2659 = vmatmul.mubr.f32.gmra.mxu0 %v2589
      %v2660 = vpop.f32.mrf.mxu0
      %v2661 = vadd.f32 0.0, %v2660
      %v2662 = vpop.f32.mrf.mxu0
      %2663 = vmatprep.mubr.f32.mxu0 0.0
      %2664 = vmatmul.mubr.f32.gmra.mxu0 %v2592
      %v2665 = vpop.f32.mrf.mxu0
      %v2666 = vadd.f32 0.0, %v2665
      %v2667 = vpop.f32.mrf.mxu0
      %2668 = vdwg.mxu0
      %v2669 = vadd.f32 %v2499, %v2661
      %v2670 = vadd.f32 %v2500, %v2666
      %s2671 = scalar_lea.vmem %s18, 32
      %v2672 = vld [vmem:[%s2671] sm:$0xff]
      %v2673 = vld [vmem:[%s2671 + $0x8] sm:$0xff]
      %v2675 = vsel %vm1186, %v2672, 0
      %v2678 = vsel %vm1186, %v2673, 0
      %2680 = vmatprep.subr.mxu0 0.0
      %2681 = vmatpush1.msra.mxu0 0.0
      %2682 = vmatprep.subr.mxu0 0.0
      %2683 = vmatpush1.msra.mxu0 0.0
      %2684 = vmatprep.subr.mxu0 0.0
      %2685 = vmatpush1.msra.mxu0 0.0
      %2686 = vmatprep.subr.mxu0 0.0
      %2687 = vmatpush1.msra.mxu0 0.0
      %2688 = vmatprep.subr.mxu0 0.0
      %2689 = vmatpush1.msra.mxu0 0.0
      %2690 = vmatprep.subr.mxu0 0.0
      %2691 = vmatpush1.msra.mxu0 0.0
      %2692 = vmatprep.subr.mxu0 0.0
      %2693 = vmatpush1.msra.mxu0 0.0
      %2694 = vmatprep.subr.mxu0 0.0
      %2695 = vmatpush1.msra.mxu0 0.0
      %2696 = vmatprep.subr.mxu0 0.0
      %2697 = vmatpush1.msra.mxu0 0.0
      %2698 = vmatprep.subr.mxu0 0.0
      %2699 = vmatpush1.msra.mxu0 0.0
      %2700 = vmatprep.subr.mxu0 0.0
      %2701 = vmatpush1.msra.mxu0 0.0
      %2702 = vmatprep.subr.mxu0 0.0
      %2703 = vmatpush1.msra.mxu0 0.0
      %2704 = vmatprep.subr.mxu0 0.0
      %2705 = vmatpush1.msra.mxu0 0.0
      %2706 = vmatprep.subr.mxu0 0.0
      %2707 = vmatpush1.msra.mxu0 0.0
      %2708 = vmatprep.subr.mxu0 0.0
      %2709 = vmatpush1.msra.mxu0 0.0
      %2710 = vmatprep.subr.mxu0 0.0
      %2711 = vmatpush1.msra.mxu0 %v2333
      %2712 = vmatprep.subr.mxu0 0.0
      %2713 = vmatpush2.msra.mxu0 0.0
      %2714 = vmatprep.subr.mxu0 0.0
      %2715 = vmatpush2.msra.mxu0 0.0
      %2716 = vmatprep.subr.mxu0 0.0
      %2717 = vmatpush2.msra.mxu0 0.0
      %2718 = vmatprep.subr.mxu0 0.0
      %2719 = vmatpush2.msra.mxu0 0.0
      %2720 = vmatprep.subr.mxu0 0.0
      %2721 = vmatpush2.msra.mxu0 0.0
      %2722 = vmatprep.subr.mxu0 0.0
      %2723 = vmatpush2.msra.mxu0 0.0
      %2724 = vmatprep.subr.mxu0 0.0
      %2725 = vmatpush2.msra.mxu0 0.0
      %2726 = vmatprep.subr.mxu0 0.0
      %2727 = vmatpush2.msra.mxu0 0.0
      %2728 = vmatprep.subr.mxu0 0.0
      %2729 = vmatpush2.msra.mxu0 0.0
      %2730 = vmatprep.subr.mxu0 0.0
      %2731 = vmatpush2.msra.mxu0 0.0
      %2732 = vmatprep.subr.mxu0 0.0
      %2733 = vmatpush2.msra.mxu0 0.0
      %2734 = vmatprep.subr.mxu0 0.0
      %2735 = vmatpush2.msra.mxu0 0.0
      %2736 = vmatprep.subr.mxu0 0.0
      %2737 = vmatpush2.msra.mxu0 0.0
      %2738 = vmatprep.subr.mxu0 0.0
      %2739 = vmatpush2.msra.mxu0 0.0
      %2740 = vmatprep.subr.mxu0 0.0
      %2741 = vmatpush2.msra.mxu0 0.0
      %2742 = vmatprep.subr.mxu0 0.0
      %2743 = vmatpush2.msra.mxu0 0.0
      %2744 = vmatprep.mubr.f32.mxu0 0.0
      %2745 = vmatmul.mubr.f32.gmra.mxu0 %v2675
      %v2746 = vpop.f32.mrf.mxu0
      %v2747 = vadd.f32 0.0, %v2746
      %v2748 = vpop.f32.mrf.mxu0
      %2749 = vmatprep.mubr.f32.mxu0 0.0
      %2750 = vmatmul.mubr.f32.gmra.mxu0 %v2678
      %v2751 = vpop.f32.mrf.mxu0
      %v2752 = vadd.f32 0.0, %v2751
      %v2753 = vpop.f32.mrf.mxu0
      %2754 = vdwg.mxu0
      %s2755 = scalar_lea.vmem %s19, 32
      %v2756 = vld [vmem:[%s2755] sm:$0xff]
      %v2757 = vld [vmem:[%s2755 + $0x8] sm:$0xff]
      %v2759 = vsel %vm715, %v2747, 0
      %v2762 = vsel %vm715, %v2752, 0
      %2764 = vmatprep.subr.mxu0 0.0
      %2765 = vmatpush1.msra.mxu0 0.0
      %2766 = vmatprep.subr.mxu0 0.0
      %2767 = vmatpush1.msra.mxu0 0.0
      %2768 = vmatprep.subr.mxu0 0.0
      %2769 = vmatpush1.msra.mxu0 0.0
      %2770 = vmatprep.subr.mxu0 0.0
      %2771 = vmatpush1.msra.mxu0 0.0
      %2772 = vmatprep.subr.mxu0 0.0
      %2773 = vmatpush1.msra.mxu0 0.0
      %2774 = vmatprep.subr.mxu0 0.0
      %2775 = vmatpush1.msra.mxu0 0.0
      %2776 = vmatprep.subr.mxu0 0.0
      %2777 = vmatpush1.msra.mxu0 0.0
      %2778 = vmatprep.subr.mxu0 0.0
      %2779 = vmatpush1.msra.mxu0 0.0
      %2780 = vmatprep.subr.mxu0 0.0
      %2781 = vmatpush1.msra.mxu0 0.0
      %2782 = vmatprep.subr.mxu0 0.0
      %2783 = vmatpush1.msra.mxu0 0.0
      %2784 = vmatprep.subr.mxu0 0.0
      %2785 = vmatpush1.msra.mxu0 0.0
      %2786 = vmatprep.subr.mxu0 0.0
      %2787 = vmatpush1.msra.mxu0 0.0
      %2788 = vmatprep.subr.mxu0 0.0
      %2789 = vmatpush1.msra.mxu0 0.0
      %2790 = vmatprep.subr.mxu0 0.0
      %2791 = vmatpush1.msra.mxu0 0.0
      %2792 = vmatprep.subr.mxu0 0.0
      %2793 = vmatpush1.msra.mxu0 %v2757
      %2794 = vmatprep.subr.mxu0 0.0
      %2795 = vmatpush1.msra.mxu0 %v2756
      %2796 = vmatprep.subr.mxu0 0.0
      %2797 = vmatpush2.msra.mxu0 0.0
      %2798 = vmatprep.subr.mxu0 0.0
      %2799 = vmatpush2.msra.mxu0 0.0
      %2800 = vmatprep.subr.mxu0 0.0
      %2801 = vmatpush2.msra.mxu0 0.0
      %2802 = vmatprep.subr.mxu0 0.0
      %2803 = vmatpush2.msra.mxu0 0.0
      %2804 = vmatprep.subr.mxu0 0.0
      %2805 = vmatpush2.msra.mxu0 0.0
      %2806 = vmatprep.subr.mxu0 0.0
      %2807 = vmatpush2.msra.mxu0 0.0
      %2808 = vmatprep.subr.mxu0 0.0
      %2809 = vmatpush2.msra.mxu0 0.0
      %2810 = vmatprep.subr.mxu0 0.0
      %2811 = vmatpush2.msra.mxu0 0.0
      %2812 = vmatprep.subr.mxu0 0.0
      %2813 = vmatpush2.msra.mxu0 0.0
      %2814 = vmatprep.subr.mxu0 0.0
      %2815 = vmatpush2.msra.mxu0 0.0
      %2816 = vmatprep.subr.mxu0 0.0
      %2817 = vmatpush2.msra.mxu0 0.0
      %2818 = vmatprep.subr.mxu0 0.0
      %2819 = vmatpush2.msra.mxu0 0.0
      %2820 = vmatprep.subr.mxu0 0.0
      %2821 = vmatpush2.msra.mxu0 0.0
      %2822 = vmatprep.subr.mxu0 0.0
      %2823 = vmatpush2.msra.mxu0 0.0
      %2824 = vmatprep.subr.mxu0 0.0
      %2825 = vmatpush2.msra.mxu0 0.0
      %2826 = vmatprep.subr.mxu0 0.0
      %2827 = vmatpush2.msra.mxu0 0.0
      %2828 = vmatprep.mubr.f32.mxu0 0.0
      %2829 = vmatmul.mubr.f32.gmra.mxu0 %v2759
      %v2830 = vpop.f32.mrf.mxu0
      %v2831 = vadd.f32 0.0, %v2830
      %v2832 = vpop.f32.mrf.mxu0
      %2833 = vmatprep.mubr.f32.mxu0 0.0
      %2834 = vmatmul.mubr.f32.gmra.mxu0 %v2762
      %v2835 = vpop.f32.mrf.mxu0
      %v2836 = vadd.f32 0.0, %v2835
      %v2837 = vpop.f32.mrf.mxu0
      %2838 = vdwg.mxu0
      %v2839 = vadd.f32 %v2669, %v2831
      %v2840 = vadd.f32 %v2670, %v2836
      %v2841 = vmax.f32 %v2839, 0.0
      %v2842 = vmax.f32 %v2840, 0.0
      %v2843 = vld [vmem:[%s21] sm:$0xff]
      %v2844 = vld [vmem:[%s22] sm:$0x1]
      %v2846 = vlaneseq
      %v2847 = vshrl.u32 %v2846, 7
      %v2848 = vsub.s32 0, %v2847
      %v2849 = vrot.slane %v2844, %v2848
      %v2852 = vsel %vm1265, %v2841, 0
      %v2855 = vsel %vm1265, %v2842, 0
      %2857 = vmatprep.subr.mxu0 0.0
      %2858 = vmatpush1.msra.mxu0 0.0
      %2859 = vmatprep.subr.mxu0 0.0
      %2860 = vmatpush1.msra.mxu0 0.0
      %2861 = vmatprep.subr.mxu0 0.0
      %2862 = vmatpush1.msra.mxu0 0.0
      %2863 = vmatprep.subr.mxu0 0.0
      %2864 = vmatpush1.msra.mxu0 0.0
      %2865 = vmatprep.subr.mxu0 0.0
      %2866 = vmatpush1.msra.mxu0 0.0
      %2867 = vmatprep.subr.mxu0 0.0
      %2868 = vmatpush1.msra.mxu0 0.0
      %2869 = vmatprep.subr.mxu0 0.0
      %2870 = vmatpush1.msra.mxu0 0.0
      %2871 = vmatprep.subr.mxu0 0.0
      %2872 = vmatpush1.msra.mxu0 0.0
      %2873 = vmatprep.subr.mxu0 0.0
      %2874 = vmatpush1.msra.mxu0 0.0
      %2875 = vmatprep.subr.mxu0 0.0
      %2876 = vmatpush1.msra.mxu0 0.0
      %2877 = vmatprep.subr.mxu0 0.0
      %2878 = vmatpush1.msra.mxu0 0.0
      %2879 = vmatprep.subr.mxu0 0.0
      %2880 = vmatpush1.msra.mxu0 0.0
      %2881 = vmatprep.subr.mxu0 0.0
      %2882 = vmatpush1.msra.mxu0 0.0
      %2883 = vmatprep.subr.mxu0 0.0
      %2884 = vmatpush1.msra.mxu0 0.0
      %2885 = vmatprep.subr.mxu0 0.0
      %2886 = vmatpush1.msra.mxu0 0.0
      %2887 = vmatprep.subr.mxu0 0.0
      %2888 = vmatpush1.msra.mxu0 %v2843
      %2889 = vmatprep.subr.mxu0 0.0
      %2890 = vmatpush2.msra.mxu0 0.0
      %2891 = vmatprep.subr.mxu0 0.0
      %2892 = vmatpush2.msra.mxu0 0.0
      %2893 = vmatprep.subr.mxu0 0.0
      %2894 = vmatpush2.msra.mxu0 0.0
      %2895 = vmatprep.subr.mxu0 0.0
      %2896 = vmatpush2.msra.mxu0 0.0
      %2897 = vmatprep.subr.mxu0 0.0
      %2898 = vmatpush2.msra.mxu0 0.0
      %2899 = vmatprep.subr.mxu0 0.0
      %2900 = vmatpush2.msra.mxu0 0.0
      %2901 = vmatprep.subr.mxu0 0.0
      %2902 = vmatpush2.msra.mxu0 0.0
      %2903 = vmatprep.subr.mxu0 0.0
      %2904 = vmatpush2.msra.mxu0 0.0
      %2905 = vmatprep.subr.mxu0 0.0
      %2906 = vmatpush2.msra.mxu0 0.0
      %2907 = vmatprep.subr.mxu0 0.0
      %2908 = vmatpush2.msra.mxu0 0.0
      %2909 = vmatprep.subr.mxu0 0.0
      %2910 = vmatpush2.msra.mxu0 0.0
      %2911 = vmatprep.subr.mxu0 0.0
      %2912 = vmatpush2.msra.mxu0 0.0
      %2913 = vmatprep.subr.mxu0 0.0
      %2914 = vmatpush2.msra.mxu0 0.0
      %2915 = vmatprep.subr.mxu0 0.0
      %2916 = vmatpush2.msra.mxu0 0.0
      %2917 = vmatprep.subr.mxu0 0.0
      %2918 = vmatpush2.msra.mxu0 0.0
      %2919 = vmatprep.subr.mxu0 0.0
      %2920 = vmatpush2.msra.mxu0 0.0
      %2921 = vmatprep.mubr.f32.mxu0 0.0
      %2922 = vmatmul.mubr.f32.gmra.mxu0 %v2852
      %v2923 = vpop.f32.mrf.mxu0
      %v2924 = vadd.f32 %v2849, %v2923
      %v2925 = vpop.f32.mrf.mxu0
      %2926 = vmatprep.mubr.f32.mxu0 0.0
      %2927 = vmatmul.mubr.f32.gmra.mxu0 %v2855
      %v2928 = vpop.f32.mrf.mxu0
      %v2929 = vadd.f32 %v2849, %v2928
      %v2930 = vpop.f32.mrf.mxu0
      %2931 = vdwg.mxu0
      %2932 = vst.msk [vmem:[%s710] sm:$0xff] %vm790, %v2924
      %2933 = vst.msk [vmem:[%s710 + $0x8] sm:$0xff] %vm790, %v2929
      %p2934 = scmp.lt.s32.totalorder %s34, 1
      %s2935 = scalar_select %p2934, %s34, 1
      %s2936 = smul.addr %s2935, 2
      %s2937 = smul.addr %s2936, 8
      %s2938 = scalar_lea.vmem %s23, %s2937
      // Predicated region
      $region113: #{fused_forward.1} parent=111 // pred_check
        %p2939 = pneg %p540
      $region114: #{fused_forward.1} parent=111 // pred_check_branch
        %2941 = sbr.rel (%p2939) target = $region116
      $region115: #{fused_forward.1} parent=111 // pred_region
        _
      $region116: #{fused_forward.1} parent=111 // pred_fallthru
        _
    $region112: #{fused_forward.1} parent=5 // pred_fallthru
      _
    %p2942 = scmp.le.s32.totalorder 2, %s29
    // Predicated region
    $region117: #{fused_forward.1} parent=5 // pred_check
      %p2943 = pneg %p2942
    $region118: #{fused_forward.1} parent=5 // pred_check_branch
      %2945 = sbr.rel (%p2943) target = $region120
    $region119: #{fused_forward.1} parent=5 // pred_region
      %s2946 = ssub.s32 %s29, 2
      // Predicated region
      $region121: #{fused_forward.1} parent=119 // pred_check
        %p2947 = pneg %p546
      $region122: #{fused_forward.1} parent=119 // pred_check_branch
        %2949 = sbr.rel (%p2947) target = $region124
      $region123: #{fused_forward.1} parent=119 // pred_region
        %p2950 = scmp.lt.s32.totalorder %s35, 1
        %s2951 = scalar_select %p2950, %s35, 1
        %s2952 = smul.addr %s2951, 2
        %s2953 = smul.addr %s2952, 8
        %s2954 = scalar_lea.vmem %s23, %s2953
      $region124: #{fused_forward.1} parent=119 // pred_fallthru
        _
    $region120: #{fused_forward.1} parent=5 // pred_fallthru
      _
  $region6: #{fused_forward.1} parent=0 // loop_footer
    %s33 = sadd.s32 1, %s29
  $region7: #{fused_forward.1} parent=0 // loop_footer_branch
    %28 = sbr.rel target = $region3
  $region8: #{fused_forward.1} parent=0 // loop_exit
    _

</llo_original>
